<compile_context>
chip_gen: v7x
topology: tpu7x:2x2x1
jax: 0.10.0
libtpu: 0.0.40
codegen_flags: <defaults>
</compile_context>

<pallas_src>
import math

import jax
import jax.numpy as jnp
from jax.experimental import pallas as pl
from jax.experimental.pallas import tpu as pltpu

EPS = 1e-5
EXPANSION = 4            # CFUN Bottleneck expansion

_VMEM_LIMIT = None


def _vmem_limit():
    """~3/4 of physical VMEM, capped (v5e/v6e -> ~96 MiB, v7x -> ~48 MiB)."""
    global _VMEM_LIMIT
    if _VMEM_LIMIT is None:
        cap = 64 * 1024 * 1024
        try:
            info = pltpu.get_tpu_info()
            cap = int(getattr(info, "vmem_capacity_bytes", cap) or cap)
        except Exception:
            pass
        _VMEM_LIMIT = int(min(cap * 3 // 4, 96 * 1024 * 1024))
    return _VMEM_LIMIT


def _round_up(x, m):
    return (x + m - 1) // m * m


def _affine(bn, cout, conv_bias=None):
    gamma, beta, mean, var = bn
    scale = gamma / jnp.sqrt(var + EPS)
    shift = beta - mean * scale
    if conv_bias is not None:
        shift = shift + conv_bias * scale
    return (scale.reshape(cout, 1).astype(jnp.float32),
            shift.reshape(cout, 1).astype(jnp.float32))


# ------------------------- C1 stem: conv + BN + ReLU + pool -------------------

def _stem_pool_kernel(nw):
    """GEMM + BN + ReLU, then a running max over the pooling-window grid axis."""

    def kernel(w_ref, p_ref, s_ref, c_ref, o_ref, acc_ref):
        wi = pl.program_id(1)
        y = jnp.dot(w_ref[...], p_ref[...], preferred_element_type=jnp.float32)
        y = jnp.maximum(y * s_ref[...] + c_ref[...], 0.0)

        @pl.when(wi == 0)
        def _():
            acc_ref[...] = jnp.full(acc_ref.shape, -jnp.inf, acc_ref.dtype)

        acc_ref[...] = jnp.maximum(acc_ref[...], y)

        @pl.when(wi == nw - 1)
        def _():
            o_ref[...] = acc_ref[...].astype(o_ref.dtype)

    return kernel


def stem_c1_pool(x_cm, w, bias, bn):
    """Conv3d(k=(3,5,5), s=2, p=(1,3,3)) + BN + ReLU + MaxPool3d(2,2), fused with
    the stride-2 subsample of C2's first bottleneck (always present in P3D).

    x_cm: (Cin, N, D, H, W) bf16.  Returns ((C0, N*Qd*Qh*Qw) bf16, (N,Qd,Qh,Qw))."""
    Cin, N, D, H, W = x_cm.shape
    kd, kh, kw, _, C0 = w.shape
    pd, ph, pw = 1, 3, 3                       # module-hardcoded padding, stride 2
    Dc = (D + 2 * pd - kd) // 2 + 1
    Hc = (H + 2 * ph - kh) // 2 + 1
    Wc = (W + 2 * pw - kw) // 2 + 1
    # MaxPool3d(2,2) then [::2] subsample == 2x2x2 windows with stride 4.
    Qd, Qh, Qw = (Dc // 2 + 1) // 2, (Hc // 2 + 1) // 2, (Wc // 2 + 1) // 2
    NQ = N * Qd * Qh * Qw

    xp = jnp.pad(x_cm, ((0, 0), (0, 0), (pd, pd), (ph, ph), (pw, pw)))

    K0 = kd * kh * kw * Cin
    Kp = _round_up(K0, 16)                     # bf16 sublane pack
    wm = jnp.transpose(w.reshape(K0, C0)).astype(jnp.bfloat16)
    if Kp > K0:
        wm = jnp.pad(wm, ((0, 0), (0, Kp - K0)))

    # im2col only at the conv positions that survive pool+subsample, grouped by
    # the 2x2x2 window position (outermost) so pooling becomes a grid-axis max.
    groups = []
    for i in range(2):
        for j in range(2):
            for k in range(2):
                taps = []
                for a in range(kd):
                    for b in range(kh):
                        for c in range(kw):
                            d0, h0, w0 = 2 * i + a, 2 * j + b, 2 * k + c
                            sl = xp[:, :,
                                    d0:d0 + 8 * (Qd - 1) + 1:8,
                                    h0:h0 + 8 * (Qh - 1) + 1:8,
                                    w0:w0 + 8 * (Qw - 1) + 1:8]
                            taps.append(sl.reshape(Cin, NQ))
                g = jnp.concatenate(taps, axis=0)
                if Kp > K0:
                    g = jnp.pad(g, ((0, Kp - K0), (0, 0)))
                groups.append(g)
    patches = jnp.stack(groups, axis=0)        # (8, Kp, NQ) bf16

    scale, shift = _affine(bn, C0, conv_bias=bias)

    tm = NQ if NQ <= 2048 else 512
    nm = pl.cdiv(NQ, tm)

    out = pl.pallas_call(
        _stem_pool_kernel(8),
        out_shape=jax.ShapeDtypeStruct((C0, NQ), jnp.bfloat16),
        grid=(nm, 8),
        in_specs=[
            pl.BlockSpec((C0, Kp), lambda m, wi: (0, 0)),
            pl.BlockSpec((None, Kp, tm), lambda m, wi: (wi, 0, m)),
            pl.BlockSpec((C0, 1), lambda m, wi: (0, 0)),
            pl.BlockSpec((C0, 1), lambda m, wi: (0, 0)),
        ],
        out_specs=pl.BlockSpec((C0, tm), lambda m, wi: (0, m)),
        scratch_shapes=[pltpu.VMEM((C0, tm), jnp.float32)],
        compiler_params=pltpu.CompilerParams(
            dimension_semantics=("parallel", "arbitrary"),
            vmem_limit_bytes=_vmem_limit()),
    )(wm, patches, scale, shift)
    return out, (N, Qd, Qh, Qw)


# ------------------------- fused P3D bottleneck kernel ------------------------

def _shift_lanes(x, rel, nm):
    """shifted[:, m] = x[:, (m + rel) mod nm]; wrapped columns are masked by caller."""
    r = rel % nm
    if r == 0:
        return x
    if nm % 128 == 0:
        return pltpu.roll(x, shift=(-rel) % nm, axis=1)     # XLU lane rotation
    return jnp.concatenate([x[:, r:], x[:, :r]], axis=1)


def _make_bottleneck_kernel(kind, has_ds, rel_s, rel_t, nm):
    """conv1(1x1x1)+BN+ReLU -> conv_S(1,3,3)+BN+ReLU -> conv_T(3,1,1)+BN+ReLU ->
    ST branch merge -> conv4(1x1x1)+BN + residual + ReLU, all in one kernel."""

    def tap_gemm(src, rels, masks, w_ref, s_ref, c_ref):
        # Micro-im2col: stack all shifted+masked taps -> ONE big-K MXU dot.
        parts = []
        for t, rel in enumerate(rels):
            parts.append(_shift_lanes(src, rel, nm) * masks[t:t + 1, :])
        stacked = jnp.concatenate(parts, axis=0)             # (ntaps*planes, nm)
        y = jnp.dot(w_ref[...], stacked, preferred_element_type=jnp.float32)
        return jnp.maximum(y * s_ref[...] + c_ref[...], 0.0)

    def kernel(x_ref, w1_ref, ws_ref, wt_ref, w4_ref, *rest):
        i = 0
        if has_ds:
            wd_ref = rest[i]; i += 1
        ms_ref, mt_ref = rest[i], rest[i + 1]; i += 2
        s1, c1, s2, c2, s3, c3, s4, c4 = rest[i:i + 8]; i += 8
        if has_ds:
            sd, cd = rest[i], rest[i + 1]; i += 2
        o_ref = rest[-1]

        x = x_ref[...]
        mask_s = ms_ref[...]
        mask_t = mt_ref[...]

        # conv1 (1x1x1) + BN + ReLU
        h1 = jnp.dot(w1_ref[...], x, preferred_element_type=jnp.float32)
        h1 = jnp.maximum(h1 * s1[...] + c1[...], 0.0).astype(jnp.bfloat16)

        # conv_S (1,3,3) + BN + ReLU  (zero padding realized by the masks)
        s_out = tap_gemm(h1, rel_s, mask_s, ws_ref, s2, c2)
        # conv_T (3,1,1) + BN + ReLU
        t_src = h1 if kind == "B" else s_out.astype(jnp.bfloat16)
        t_out = tap_gemm(t_src, rel_t, mask_t, wt_ref, s3, c3)
        x4 = t_out if kind == "A" else (t_out + s_out)       # branch merge in f32

        # conv4 (1x1x1) + BN + residual add + ReLU
        y = jnp.dot(w4_ref[...], x4.astype(jnp.bfloat16),
                    preferred_element_type=jnp.float32)
        y = y * s4[...] + c4[...]
        if has_ds:
            r = jnp.dot(wd_ref[...], x, preferred_element_type=jnp.float32)
            r = r * sd[...] + cd[...]
        else:
            r = x.astype(jnp.float32)
        o_ref[...] = jnp.maximum(y + r, 0.0).astype(o_ref.dtype)

    return kernel


def bottleneck(x2d, spatial, p, n_s, downsample, stride):
    """x2d: (Cin, N*D*H*W) bf16 channel-major flat.  Returns (out2d, new_spatial)."""
    N, D, H, W = spatial
    Cin = x2d.shape[0]
    if stride != 1:
        # TODO(synk): fold this stride-2 subsample into the producing kernel's
        # writeback; currently one strided XLA slice per layer transition.
        Do, Ho, Wo = -(-D // stride), -(-H // stride), -(-W // stride)
        x2d = x2d.reshape(Cin, N, D, H, W)[:, :, ::stride, ::stride, ::stride]
        D, H, W = Do, Ho, Wo
        x2d = x2d.reshape(Cin, N * D * H * W)
    DHW = D * H * W
    NM = N * DHW

    planes = p["conv1"].shape[-1]
    cout = planes * EXPANSION
    if not downsample:
        assert Cin == cout, (Cin, cout)

    # GEMM-shaped weights (bf16 operands, f32 MXU accumulation in the kernel).
    w1 = jnp.transpose(p["conv1"].reshape(Cin, planes)).astype(jnp.bfloat16)
    ws = jnp.transpose(p["conv2"].reshape(9, planes, planes),
                       (2, 0, 1)).reshape(planes, 9 * planes).astype(jnp.bfloat16)
    wt = jnp.transpose(p["conv3"].reshape(3, planes, planes),
                       (2, 0, 1)).reshape(planes, 3 * planes).astype(jnp.bfloat16)
    w4 = jnp.transpose(p["conv4"].reshape(planes, cout)).astype(jnp.bfloat16)

    s1, c1 = _affine(p["bn1"], planes)
    s2, c2 = _affine(p["bn2"], planes)
    s3, c3 = _affine(p["bn3"], planes)
    s4, c4 = _affine(p["bn4"], cout)

    # Zero-padding masks for the tap convs; periodic per sample in the packed layout.
    col = jnp.arange(NM, dtype=jnp.int32)
    loc = col % DHW
    dloc, hloc, wloc = loc // (H * W), (loc // W) % H, loc % W
    rel_s, rows_s = [], []
    for dh in range(3):
        for dw in range(3):
            rel_s.append((dh - 1) * W + (dw - 1))
            hh, ww = hloc + (dh - 1), wloc + (dw - 1)
            rows_s.append((hh >= 0) & (hh < H) & (ww >= 0) & (ww < W))
    rel_t, rows_t = [], []
    for dd in range(3):
        rel_t.append((dd - 1) * H * W)
        de = dloc + (dd - 1)
        rows_t.append((de >= 0) & (de < D))
    mask_s = jnp.stack(rows_s).astype(jnp.bfloat16)          # (9, NM)
    mask_t = jnp.stack(rows_t).astype(jnp.bfloat16)          # (3, NM)

    # TODO(synk): the CFUN Bottleneck class is not in the provided snippet; the
    # P3D ST-A/B/C cycling and relu/add ordering follow the previous port.
    kind = "ABC"[(n_s - 1) % 3]

    args = [x2d, w1, ws, wt, w4]
    if downsample:
        wd = jnp.transpose(p["ds_conv"].reshape(Cin, cout)).astype(jnp.bfloat16)
        args.append(wd)
    args += [mask_s, mask_t, s1, c1, s2, c2, s3, c3, s4, c4]
    if downsample:
        sds, cds = _affine(p["ds_bn"], cout)
        args += [sds, cds]

    # Whole bottleneck in a single pallas_call; intermediates never leave VMEM.
    # TODO(synk): M-tile (with tap halos) when N*D*H*W no longer fits in VMEM.
    out = pl.pallas_call(
        _make_bottleneck_kernel(kind, downsample, tuple(rel_s), tuple(rel_t), NM),
        out_shape=jax.ShapeDtypeStruct((cout, NM), jnp.bfloat16),
        compiler_params=pltpu.CompilerParams(vmem_limit_bytes=_vmem_limit()),
    )(*args)
    return out, (N, D, H, W)


# --------------------------- parameter init -----------------------------------

def _conv_w(key, ksize, cin, cout):
    kd, kh, kw = ksize
    n = kd * kh * cout  # matches P3D.__init__: kernel_size[0]*kernel_size[1]*out_channels
    std = math.sqrt(2.0 / n)
    return std * jax.random.normal(key, (kd, kh, kw, cin, cout), jnp.float32)


def _bn(c):
    # (gamma, beta, running_mean, running_var) - PyTorch defaults
    return (jnp.ones((c,), jnp.float32), jnp.zeros((c,), jnp.float32),
            jnp.zeros((c,), jnp.float32), jnp.ones((c,), jnp.float32))


def init_bottleneck(key, inplanes, planes, downsample):
    ks = jax.random.split(key, 5)
    p = {
        "conv1": _conv_w(ks[0], (1, 1, 1), inplanes, planes), "bn1": _bn(planes),
        "conv2": _conv_w(ks[1], (1, 3, 3), planes, planes),   "bn2": _bn(planes),
        "conv3": _conv_w(ks[2], (3, 1, 1), planes, planes),   "bn3": _bn(planes),
        "conv4": _conv_w(ks[3], (1, 1, 1), planes, planes * EXPANSION),
        "bn4": _bn(planes * EXPANSION),
    }
    if downsample:
        p["ds_conv"] = _conv_w(ks[4], (1, 1, 1), inplanes, planes * EXPANSION)
        p["ds_bn"] = _bn(planes * EXPANSION)
    return p


def init_p3d_params(key, layers, input_channel, channels):
    nkeys = 2 + sum(layers)
    ks = jax.random.split(key, nkeys)
    c0 = channels[0]
    params = {"c1_conv": _conv_w(ks[0], (3, 5, 5), input_channel, c0)}
    fan_in = input_channel * 3 * 5 * 5
    bound = 1.0 / math.sqrt(fan_in)
    params["c1_bias"] = jax.random.uniform(ks[1], (c0,), jnp.float32, -bound, bound)
    params["c1_bn"] = _bn(c0)

    inplanes = c0
    ki = 2
    all_layers = []
    for planes, nblocks in zip(channels, layers):
        layer = []
        for bi in range(nblocks):
            downsample = (bi == 0)
            stride = 2 if bi == 0 else 1
            bp = init_bottleneck(ks[ki], inplanes, planes, downsample)
            layer.append((bp, bi + 1, downsample, stride))
            inplanes = planes * EXPANSION
            ki += 1
        all_layers.append(layer)
    params["layers"] = all_layers
    return params


# --------------------------- forward pass -------------------------------------

def p3d_forward(params, x_ncdhw):
    # channel-major, bf16, lane-packed (C, N*D*H*W) activations end-to-end
    x = jnp.transpose(x_ncdhw.astype(jnp.bfloat16), (1, 0, 2, 3, 4))
    x2d, spatial = stem_c1_pool(x, params["c1_conv"], params["c1_bias"],
                                params["c1_bn"])
    for li, layer in enumerate(params["layers"]):
        for bi, (bp, n_s, downsample, stride) in enumerate(layer):
            if li == 0 and bi == 0:
                stride = 1   # the stem already folded this subsample into the pool
            x2d, spatial = bottleneck(x2d, spatial, bp, n_s, downsample, stride)
    N, D, H, W = spatial
    C = x2d.shape[0]
    out = jnp.transpose(x2d.reshape(C, N, D, H, W), (1, 0, 2, 3, 4))
    return out.astype(jnp.float32)      # NCDHW out, same as PyTorch


# --------------------------- main ----------------------------------------------

if __name__ == "__main__":
    key = jax.random.PRNGKey(0)
    kp, kx = jax.random.split(key)

    # config.BACKBONE_CHANNELS and layers (small, synthetic)
    channels = (8, 16)
    layers = (2, 2)
    input_channel = 1

    params = init_p3d_params(kp, layers, input_channel, channels)

    # NCDHW input, as a PyTorch nn.Conv3d would take it
    x = jax.random.normal(kx, (2, input_channel, 16, 16, 16), jnp.float32)

    fwd = jax.jit(lambda inp: p3d_forward(params, inp))
    y = jax.block_until_ready(fwd(x))

    expected = (2, channels[1] * EXPANSION, 1, 1, 1)
    assert y.shape == expected, (y.shape, expected)
    assert bool(jnp.all(jnp.isfinite(y)))
    print("KERNEL_OK")
</pallas_src>

<mosaic_0001>
module attributes {stable_mosaic.version = 11 : i64} {
  func.func @kernel(%arg0: i32, %arg1: i32, %arg2: memref<8x80xbf16, #tpu.memory_space<vmem>>, %arg3: memref<1x80x16xbf16, #tpu.memory_space<vmem>>, %arg4: memref<8x1xf32, #tpu.memory_space<vmem>>, %arg5: memref<8x1xf32, #tpu.memory_space<vmem>>, %arg6: memref<8x16xbf16, #tpu.memory_space<vmem>>, %arg7: memref<8x16xf32, #tpu.memory_space<vmem>>) attributes {dimension_semantics = [#tpu.dimension_semantics<parallel>, #tpu.dimension_semantics<arbitrary>], iteration_bounds = array<i64: 1, 8>, scalar_prefetch = 0 : i64, scratch_operands = 1 : i64, tpu.core_type = #tpu.core_type<tc>, window_params = [{pipeline_mode = #tpu.pipeline_mode<synchronous>, transform_indices = @transform_0, window_bounds = array<i64: 8, 80>}, {transform_indices = @transform_1, window_bounds = array<i64: 1, 80, 16>}, {pipeline_mode = #tpu.pipeline_mode<synchronous>, transform_indices = @transform_2, window_bounds = array<i64: 8, 1>}, {pipeline_mode = #tpu.pipeline_mode<synchronous>, transform_indices = @transform_3, window_bounds = array<i64: 8, 1>}, {transform_indices = @transform_4, window_bounds = array<i64: 8, 16>}]} {
    %c0 = arith.constant 0 : index
    %c0_0 = arith.constant 0 : index
    %0 = vector.load %arg2[%c0, %c0_0] : memref<8x80xbf16, #tpu.memory_space<vmem>>, vector<8x80xbf16>
    %c0_1 = arith.constant 0 : index
    %c0_2 = arith.constant 0 : index
    %c0_3 = arith.constant 0 : index
    %1 = vector.load %arg3[%c0_1, %c0_2, %c0_3] : memref<1x80x16xbf16, #tpu.memory_space<vmem>>, vector<1x80x16xbf16>
    %2 = vector.shape_cast %1 : vector<1x80x16xbf16> to vector<80x16xbf16>
    %cst = arith.constant dense<0.000000e+00> : vector<8x16xf32>
    %3 = tpu.matmul %0, %2, %cst {dimension_numbers = #tpu.dot_dimension_numbers<[1], [0], [0], [1], [0, 0, 1, 1], [], []>} : vector<8x80xbf16>, vector<80x16xbf16>, vector<8x16xf32> -> vector<8x16xf32>
    %c0_4 = arith.constant 0 : index
    %c0_5 = arith.constant 0 : index
    %4 = vector.load %arg4[%c0_4, %c0_5] : memref<8x1xf32, #tpu.memory_space<vmem>>, vector<8x1xf32>
    %5 = vector.broadcast %4 : vector<8x1xf32> to vector<8x16xf32>
    %6 = arith.mulf %3, %5 : vector<8x16xf32>
    %c0_6 = arith.constant 0 : index
    %c0_7 = arith.constant 0 : index
    %7 = vector.load %arg5[%c0_6, %c0_7] : memref<8x1xf32, #tpu.memory_space<vmem>>, vector<8x1xf32>
    %8 = vector.broadcast %7 : vector<8x1xf32> to vector<8x16xf32>
    %9 = arith.addf %6, %8 : vector<8x16xf32>
    %cst_8 = arith.constant 0.000000e+00 : f32
    %10 = vector.broadcast %cst_8 : f32 to vector<8x16xf32>
    %11 = arith.maximumf %9, %10 : vector<8x16xf32>
    %c0_i32 = arith.constant 0 : i32
    %12 = arith.cmpi eq, %arg1, %c0_i32 : i32
    %13 = arith.extui %12 : i1 to i32
    %c0_i32_9 = arith.constant 0 : i32
    %14 = arith.cmpi ne, %13, %c0_i32_9 : i32
    scf.if %14 {
      %cst_15 = arith.constant 0xFF800000 : f32
      %21 = vector.broadcast %cst_15 : f32 to vector<8x16xf32>
      %c0_16 = arith.constant 0 : index
      %c0_17 = arith.constant 0 : index
      %22 = vector.load %arg7[%c0_16, %c0_17] : memref<8x16xf32, #tpu.memory_space<vmem>>, vector<8x16xf32>
      tpu.vector_store %arg7[%c0_16, %c0_17], %21 {strides = array<i32>} : memref<8x16xf32, #tpu.memory_space<vmem>>, vector<8x16xf32>,
    } else {
    }
    %c0_10 = arith.constant 0 : index
    %c0_11 = arith.constant 0 : index
    %15 = vector.load %arg7[%c0_10, %c0_11] : memref<8x16xf32, #tpu.memory_space<vmem>>, vector<8x16xf32>
    %16 = arith.maximumf %15, %11 : vector<8x16xf32>
    %c0_12 = arith.constant 0 : index
    %c0_13 = arith.constant 0 : index
    %17 = vector.load %arg7[%c0_12, %c0_13] : memref<8x16xf32, #tpu.memory_space<vmem>>, vector<8x16xf32>
    tpu.vector_store %arg7[%c0_12, %c0_13], %16 {strides = array<i32>} : memref<8x16xf32, #tpu.memory_space<vmem>>, vector<8x16xf32>,
    %c7_i32 = arith.constant 7 : i32
    %18 = arith.cmpi eq, %arg1, %c7_i32 : i32
    %19 = arith.extui %18 : i1 to i32
    %c0_i32_14 = arith.constant 0 : i32
    %20 = arith.cmpi ne, %19, %c0_i32_14 : i32
    scf.if %20 {
      %c0_15 = arith.constant 0 : index
      %c0_16 = arith.constant 0 : index
      %21 = vector.load %arg7[%c0_15, %c0_16] : memref<8x16xf32, #tpu.memory_space<vmem>>, vector<8x16xf32>
      %22 = arith.truncf %21 : vector<8x16xf32> to vector<8x16xbf16>
      %c0_17 = arith.constant 0 : index
      %c0_18 = arith.constant 0 : index
      %23 = vector.load %arg6[%c0_17, %c0_18] : memref<8x16xbf16, #tpu.memory_space<vmem>>, vector<8x16xbf16>
      tpu.vector_store %arg6[%c0_17, %c0_18], %22 {strides = array<i32>} : memref<8x16xbf16, #tpu.memory_space<vmem>>, vector<8x16xbf16>,
    } else {
    }
    return
  }
  func.func @transform_0(%arg0: i32, %arg1: i32) -> (i32, i32) {
    %c0_i32 = arith.constant 0 : i32
    %c0_i32_0 = arith.constant 0 : i32
    %c0_i32_1 = arith.constant 0 : i32
    return %c0_i32, %c0_i32_0 : i32, i32
  }
  func.func @transform_1(%arg0: i32, %arg1: i32) -> (i32, i32, i32) {
    %c0_i32 = arith.constant 0 : i32
    %c0_i32_0 = arith.constant 0 : i32
    return %arg1, %c0_i32, %arg0 : i32, i32, i32
  }
  func.func @transform_2(%arg0: i32, %arg1: i32) -> (i32, i32) {
    %c0_i32 = arith.constant 0 : i32
    %c0_i32_0 = arith.constant 0 : i32
    %c0_i32_1 = arith.constant 0 : i32
    return %c0_i32, %c0_i32_0 : i32, i32
  }
  func.func @transform_3(%arg0: i32, %arg1: i32) -> (i32, i32) {
    %c0_i32 = arith.constant 0 : i32
    %c0_i32_0 = arith.constant 0 : i32
    %c0_i32_1 = arith.constant 0 : i32
    return %c0_i32, %c0_i32_0 : i32, i32
  }
  func.func @transform_4(%arg0: i32, %arg1: i32) -> (i32, i32) {
    %c0_i32 = arith.constant 0 : i32
    %c0_i32_0 = arith.constant 0 : i32
    return %c0_i32, %arg0 : i32, i32
  }
}

module attributes {stable_mosaic.version = 11 : i64} {
  func.func @kernel(%arg0: memref<8x16xbf16, #tpu.memory_space<vmem>>, %arg1: memref<8x8xbf16, #tpu.memory_space<vmem>>, %arg2: memref<8x72xbf16, #tpu.memory_space<vmem>>, %arg3: memref<8x24xbf16, #tpu.memory_space<vmem>>, %arg4: memref<32x8xbf16, #tpu.memory_space<vmem>>, %arg5: memref<32x8xbf16, #tpu.memory_space<vmem>>, %arg6: memref<9x16xbf16, #tpu.memory_space<vmem>>, %arg7: memref<3x16xbf16, #tpu.memory_space<vmem>>, %arg8: memref<8x1xf32, #tpu.memory_space<vmem>>, %arg9: memref<8x1xf32, #tpu.memory_space<vmem>>, %arg10: memref<8x1xf32, #tpu.memory_space<vmem>>, %arg11: memref<8x1xf32, #tpu.memory_space<vmem>>, %arg12: memref<8x1xf32, #tpu.memory_space<vmem>>, %arg13: memref<8x1xf32, #tpu.memory_space<vmem>>, %arg14: memref<32x1xf32, #tpu.memory_space<vmem>>, %arg15: memref<32x1xf32, #tpu.memory_space<vmem>>, %arg16: memref<32x1xf32, #tpu.memory_space<vmem>>, %arg17: memref<32x1xf32, #tpu.memory_space<vmem>>, %arg18: memref<32x16xbf16, #tpu.memory_space<vmem>>) attributes {dimension_semantics = [], scalar_prefetch = 0 : i64, scratch_operands = 0 : i64, tpu.core_type = #tpu.core_type<tc>} {
    %c0 = arith.constant 0 : index
    %c0_0 = arith.constant 0 : index
    %0 = vector.load %arg0[%c0, %c0_0] : memref<8x16xbf16, #tpu.memory_space<vmem>>, vector<8x16xbf16>
    %c0_1 = arith.constant 0 : index
    %c0_2 = arith.constant 0 : index
    %1 = vector.load %arg6[%c0_1, %c0_2] : memref<9x16xbf16, #tpu.memory_space<vmem>>, vector<9x16xbf16>
    %c0_3 = arith.constant 0 : index
    %c0_4 = arith.constant 0 : index
    %2 = vector.load %arg7[%c0_3, %c0_4] : memref<3x16xbf16, #tpu.memory_space<vmem>>, vector<3x16xbf16>
    %c0_5 = arith.constant 0 : index
    %c0_6 = arith.constant 0 : index
    %3 = vector.load %arg1[%c0_5, %c0_6] : memref<8x8xbf16, #tpu.memory_space<vmem>>, vector<8x8xbf16>
    %cst = arith.constant dense<0.000000e+00> : vector<8x16xf32>
    %4 = tpu.matmul %3, %0, %cst {dimension_numbers = #tpu.dot_dimension_numbers<[1], [0], [0], [1], [0, 0, 1, 1], [], []>} : vector<8x8xbf16>, vector<8x16xbf16>, vector<8x16xf32> -> vector<8x16xf32>
    %c0_7 = arith.constant 0 : index
    %c0_8 = arith.constant 0 : index
    %5 = vector.load %arg8[%c0_7, %c0_8] : memref<8x1xf32, #tpu.memory_space<vmem>>, vector<8x1xf32>
    %6 = vector.broadcast %5 : vector<8x1xf32> to vector<8x16xf32>
    %7 = arith.mulf %4, %6 : vector<8x16xf32>
    %c0_9 = arith.constant 0 : index
    %c0_10 = arith.constant 0 : index
    %8 = vector.load %arg9[%c0_9, %c0_10] : memref<8x1xf32, #tpu.memory_space<vmem>>, vector<8x1xf32>
    %9 = vector.broadcast %8 : vector<8x1xf32> to vector<8x16xf32>
    %10 = arith.addf %7, %9 : vector<8x16xf32>
    %cst_11 = arith.constant 0.000000e+00 : f32
    %11 = vector.broadcast %cst_11 : f32 to vector<8x16xf32>
    %12 = arith.maximumf %10, %11 : vector<8x16xf32>
    %13 = arith.truncf %12 : vector<8x16xf32> to vector<8x16xbf16>
    %14 = vector.extract_strided_slice %13 {offsets = [0, 13], sizes = [8, 3], strides = [1, 1]} : vector<8x16xbf16> to vector<8x3xbf16>
    %15 = vector.extract_strided_slice %13 {offsets = [0, 0], sizes = [8, 13], strides = [1, 1]} : vector<8x16xbf16> to vector<8x13xbf16>
    %16 = tpu.concatenate %14, %15 in 1 : vector<8x3xbf16>, vector<8x13xbf16> -> vector<8x16xbf16>
    %17 = vector.extract_strided_slice %1 {offsets = [0, 0], sizes = [1, 16], strides = [1, 1]} : vector<9x16xbf16> to vector<1x16xbf16>
    %18 = vector.broadcast %17 : vector<1x16xbf16> to vector<8x16xbf16>
    %19 = arith.mulf %16, %18 : vector<8x16xbf16>
    %20 = vector.extract_strided_slice %13 {offsets = [0, 14], sizes = [8, 2], strides = [1, 1]} : vector<8x16xbf16> to vector<8x2xbf16>
    %21 = vector.extract_strided_slice %13 {offsets = [0, 0], sizes = [8, 14], strides = [1, 1]} : vector<8x16xbf16> to vector<8x14xbf16>
    %22 = tpu.concatenate %20, %21 in 1 : vector<8x2xbf16>, vector<8x14xbf16> -> vector<8x16xbf16>
    %23 = vector.extract_strided_slice %1 {offsets = [1, 0], sizes = [1, 16], strides = [1, 1]} : vector<9x16xbf16> to vector<1x16xbf16>
    %24 = vector.broadcast %23 : vector<1x16xbf16> to vector<8x16xbf16>
    %25 = arith.mulf %22, %24 : vector<8x16xbf16>
    %26 = vector.extract_strided_slice %13 {offsets = [0, 15], sizes = [8, 1], strides = [1, 1]} : vector<8x16xbf16> to vector<8x1xbf16>
    %27 = vector.extract_strided_slice %13 {offsets = [0, 0], sizes = [8, 15], strides = [1, 1]} : vector<8x16xbf16> to vector<8x15xbf16>
    %28 = tpu.concatenate %26, %27 in 1 : vector<8x1xbf16>, vector<8x15xbf16> -> vector<8x16xbf16>
    %29 = vector.extract_strided_slice %1 {offsets = [2, 0], sizes = [1, 16], strides = [1, 1]} : vector<9x16xbf16> to vector<1x16xbf16>
    %30 = vector.broadcast %29 : vector<1x16xbf16> to vector<8x16xbf16>
    %31 = arith.mulf %28, %30 : vector<8x16xbf16>
    %32 = vector.extract_strided_slice %13 {offsets = [0, 15], sizes = [8, 1], strides = [1, 1]} : vector<8x16xbf16> to vector<8x1xbf16>
    %33 = vector.extract_strided_slice %13 {offsets = [0, 0], sizes = [8, 15], strides = [1, 1]} : vector<8x16xbf16> to vector<8x15xbf16>
    %34 = tpu.concatenate %32, %33 in 1 : vector<8x1xbf16>, vector<8x15xbf16> -> vector<8x16xbf16>
    %35 = vector.extract_strided_slice %1 {offsets = [3, 0], sizes = [1, 16], strides = [1, 1]} : vector<9x16xbf16> to vector<1x16xbf16>
    %36 = vector.broadcast %35 : vector<1x16xbf16> to vector<8x16xbf16>
    %37 = arith.mulf %34, %36 : vector<8x16xbf16>
    %38 = vector.extract_strided_slice %1 {offsets = [4, 0], sizes = [1, 16], strides = [1, 1]} : vector<9x16xbf16> to vector<1x16xbf16>
    %39 = vector.broadcast %38 : vector<1x16xbf16> to vector<8x16xbf16>
    %40 = arith.mulf %13, %39 : vector<8x16xbf16>
    %41 = vector.extract_strided_slice %13 {offsets = [0, 1], sizes = [8, 15], strides = [1, 1]} : vector<8x16xbf16> to vector<8x15xbf16>
    %42 = vector.extract_strided_slice %13 {offsets = [0, 0], sizes = [8, 1], strides = [1, 1]} : vector<8x16xbf16> to vector<8x1xbf16>
    %43 = tpu.concatenate %41, %42 in 1 : vector<8x15xbf16>, vector<8x1xbf16> -> vector<8x16xbf16>
    %44 = vector.extract_strided_slice %1 {offsets = [5, 0], sizes = [1, 16], strides = [1, 1]} : vector<9x16xbf16> to vector<1x16xbf16>
    %45 = vector.broadcast %44 : vector<1x16xbf16> to vector<8x16xbf16>
    %46 = arith.mulf %43, %45 : vector<8x16xbf16>
    %47 = vector.extract_strided_slice %13 {offsets = [0, 1], sizes = [8, 15], strides = [1, 1]} : vector<8x16xbf16> to vector<8x15xbf16>
    %48 = vector.extract_strided_slice %13 {offsets = [0, 0], sizes = [8, 1], strides = [1, 1]} : vector<8x16xbf16> to vector<8x1xbf16>
    %49 = tpu.concatenate %47, %48 in 1 : vector<8x15xbf16>, vector<8x1xbf16> -> vector<8x16xbf16>
    %50 = vector.extract_strided_slice %1 {offsets = [6, 0], sizes = [1, 16], strides = [1, 1]} : vector<9x16xbf16> to vector<1x16xbf16>
    %51 = vector.broadcast %50 : vector<1x16xbf16> to vector<8x16xbf16>
    %52 = arith.mulf %49, %51 : vector<8x16xbf16>
    %53 = vector.extract_strided_slice %13 {offsets = [0, 2], sizes = [8, 14], strides = [1, 1]} : vector<8x16xbf16> to vector<8x14xbf16>
    %54 = vector.extract_strided_slice %13 {offsets = [0, 0], sizes = [8, 2], strides = [1, 1]} : vector<8x16xbf16> to vector<8x2xbf16>
    %55 = tpu.concatenate %53, %54 in 1 : vector<8x14xbf16>, vector<8x2xbf16> -> vector<8x16xbf16>
    %56 = vector.extract_strided_slice %1 {offsets = [7, 0], sizes = [1, 16], strides = [1, 1]} : vector<9x16xbf16> to vector<1x16xbf16>
    %57 = vector.broadcast %56 : vector<1x16xbf16> to vector<8x16xbf16>
    %58 = arith.mulf %55, %57 : vector<8x16xbf16>
    %59 = vector.extract_strided_slice %13 {offsets = [0, 3], sizes = [8, 13], strides = [1, 1]} : vector<8x16xbf16> to vector<8x13xbf16>
    %60 = vector.extract_strided_slice %13 {offsets = [0, 0], sizes = [8, 3], strides = [1, 1]} : vector<8x16xbf16> to vector<8x3xbf16>
    %61 = tpu.concatenate %59, %60 in 1 : vector<8x13xbf16>, vector<8x3xbf16> -> vector<8x16xbf16>
    %62 = vector.extract_strided_slice %1 {offsets = [8, 0], sizes = [1, 16], strides = [1, 1]} : vector<9x16xbf16> to vector<1x16xbf16>
    %63 = vector.broadcast %62 : vector<1x16xbf16> to vector<8x16xbf16>
    %64 = arith.mulf %61, %63 : vector<8x16xbf16>
    %65 = tpu.concatenate %19, %25, %31, %37, %40, %46, %52, %58, %64 in 0 : vector<8x16xbf16>, vector<8x16xbf16>, vector<8x16xbf16>, vector<8x16xbf16>, vector<8x16xbf16>, vector<8x16xbf16>, vector<8x16xbf16>, vector<8x16xbf16>, vector<8x16xbf16> -> vector<72x16xbf16>
    %c0_12 = arith.constant 0 : index
    %c0_13 = arith.constant 0 : index
    %66 = vector.load %arg2[%c0_12, %c0_13] : memref<8x72xbf16, #tpu.memory_space<vmem>>, vector<8x72xbf16>
    %cst_14 = arith.constant dense<0.000000e+00> : vector<8x16xf32>
    %67 = tpu.matmul %66, %65, %cst_14 {dimension_numbers = #tpu.dot_dimension_numbers<[1], [0], [0], [1], [0, 0, 1, 1], [], []>} : vector<8x72xbf16>, vector<72x16xbf16>, vector<8x16xf32> -> vector<8x16xf32>
    %c0_15 = arith.constant 0 : index
    %c0_16 = arith.constant 0 : index
    %68 = vector.load %arg10[%c0_15, %c0_16] : memref<8x1xf32, #tpu.memory_space<vmem>>, vector<8x1xf32>
    %69 = vector.broadcast %68 : vector<8x1xf32> to vector<8x16xf32>
    %70 = arith.mulf %67, %69 : vector<8x16xf32>
    %c0_17 = arith.constant 0 : index
    %c0_18 = arith.constant 0 : index
    %71 = vector.load %arg11[%c0_17, %c0_18] : memref<8x1xf32, #tpu.memory_space<vmem>>, vector<8x1xf32>
    %72 = vector.broadcast %71 : vector<8x1xf32> to vector<8x16xf32>
    %73 = arith.addf %70, %72 : vector<8x16xf32>
    %cst_19 = arith.constant 0.000000e+00 : f32
    %74 = vector.broadcast %cst_19 : f32 to vector<8x16xf32>
    %75 = arith.maximumf %73, %74 : vector<8x16xf32>
    %76 = arith.truncf %75 : vector<8x16xf32> to vector<8x16xbf16>
    %77 = vector.extract_strided_slice %76 {offsets = [0, 12], sizes = [8, 4], strides = [1, 1]} : vector<8x16xbf16> to vector<8x4xbf16>
    %78 = vector.extract_strided_slice %76 {offsets = [0, 0], sizes = [8, 12], strides = [1, 1]} : vector<8x16xbf16> to vector<8x12xbf16>
    %79 = tpu.concatenate %77, %78 in 1 : vector<8x4xbf16>, vector<8x12xbf16> -> vector<8x16xbf16>
    %80 = vector.extract_strided_slice %2 {offsets = [0, 0], sizes = [1, 16], strides = [1, 1]} : vector<3x16xbf16> to vector<1x16xbf16>
    %81 = vector.broadcast %80 : vector<1x16xbf16> to vector<8x16xbf16>
    %82 = arith.mulf %79, %81 : vector<8x16xbf16>
    %83 = vector.extract_strided_slice %2 {offsets = [1, 0], sizes = [1, 16], strides = [1, 1]} : vector<3x16xbf16> to vector<1x16xbf16>
    %84 = vector.broadcast %83 : vector<1x16xbf16> to vector<8x16xbf16>
    %85 = arith.mulf %76, %84 : vector<8x16xbf16>
    %86 = vector.extract_strided_slice %76 {offsets = [0, 4], sizes = [8, 12], strides = [1, 1]} : vector<8x16xbf16> to vector<8x12xbf16>
    %87 = vector.extract_strided_slice %76 {offsets = [0, 0], sizes = [8, 4], strides = [1, 1]} : vector<8x16xbf16> to vector<8x4xbf16>
    %88 = tpu.concatenate %86, %87 in 1 : vector<8x12xbf16>, vector<8x4xbf16> -> vector<8x16xbf16>
    %89 = vector.extract_strided_slice %2 {offsets = [2, 0], sizes = [1, 16], strides = [1, 1]} : vector<3x16xbf16> to vector<1x16xbf16>
    %90 = vector.broadcast %89 : vector<1x16xbf16> to vector<8x16xbf16>
    %91 = arith.mulf %88, %90 : vector<8x16xbf16>
    %92 = tpu.concatenate %82, %85, %91 in 0 : vector<8x16xbf16>, vector<8x16xbf16>, vector<8x16xbf16> -> vector<24x16xbf16>
    %c0_20 = arith.constant 0 : index
    %c0_21 = arith.constant 0 : index
    %93 = vector.load %arg3[%c0_20, %c0_21] : memref<8x24xbf16, #tpu.memory_space<vmem>>, vector<8x24xbf16>
    %cst_22 = arith.constant dense<0.000000e+00> : vector<8x16xf32>
    %94 = tpu.matmul %93, %92, %cst_22 {dimension_numbers = #tpu.dot_dimension_numbers<[1], [0], [0], [1], [0, 0, 1, 1], [], []>} : vector<8x24xbf16>, vector<24x16xbf16>, vector<8x16xf32> -> vector<8x16xf32>
    %c0_23 = arith.constant 0 : index
    %c0_24 = arith.constant 0 : index
    %95 = vector.load %arg12[%c0_23, %c0_24] : memref<8x1xf32, #tpu.memory_space<vmem>>, vector<8x1xf32>
    %96 = vector.broadcast %95 : vector<8x1xf32> to vector<8x16xf32>
    %97 = arith.mulf %94, %96 : vector<8x16xf32>
    %c0_25 = arith.constant 0 : index
    %c0_26 = arith.constant 0 : index
    %98 = vector.load %arg13[%c0_25, %c0_26] : memref<8x1xf32, #tpu.memory_space<vmem>>, vector<8x1xf32>
    %99 = vector.broadcast %98 : vector<8x1xf32> to vector<8x16xf32>
    %100 = arith.addf %97, %99 : vector<8x16xf32>
    %cst_27 = arith.constant 0.000000e+00 : f32
    %101 = vector.broadcast %cst_27 : f32 to vector<8x16xf32>
    %102 = arith.maximumf %100, %101 : vector<8x16xf32>
    %c0_28 = arith.constant 0 : index
    %c0_29 = arith.constant 0 : index
    %103 = vector.load %arg4[%c0_28, %c0_29] : memref<32x8xbf16, #tpu.memory_space<vmem>>, vector<32x8xbf16>
    %104 = arith.truncf %102 : vector<8x16xf32> to vector<8x16xbf16>
    %cst_30 = arith.constant dense<0.000000e+00> : vector<32x16xf32>
    %105 = tpu.matmul %103, %104, %cst_30 {dimension_numbers = #tpu.dot_dimension_numbers<[1], [0], [0], [1], [0, 0, 1, 1], [], []>} : vector<32x8xbf16>, vector<8x16xbf16>, vector<32x16xf32> -> vector<32x16xf32>
    %c0_31 = arith.constant 0 : index
    %c0_32 = arith.constant 0 : index
    %106 = vector.load %arg14[%c0_31, %c0_32] : memref<32x1xf32, #tpu.memory_space<vmem>>, vector<32x1xf32>
    %107 = vector.broadcast %106 : vector<32x1xf32> to vector<32x16xf32>
    %108 = arith.mulf %105, %107 : vector<32x16xf32>
    %c0_33 = arith.constant 0 : index
    %c0_34 = arith.constant 0 : index
    %109 = vector.load %arg15[%c0_33, %c0_34] : memref<32x1xf32, #tpu.memory_space<vmem>>, vector<32x1xf32>
    %110 = vector.broadcast %109 : vector<32x1xf32> to vector<32x16xf32>
    %111 = arith.addf %108, %110 : vector<32x16xf32>
    %c0_35 = arith.constant 0 : index
    %c0_36 = arith.constant 0 : index
    %112 = vector.load %arg5[%c0_35, %c0_36] : memref<32x8xbf16, #tpu.memory_space<vmem>>, vector<32x8xbf16>
    %cst_37 = arith.constant dense<0.000000e+00> : vector<32x16xf32>
    %113 = tpu.matmul %112, %0, %cst_37 {dimension_numbers = #tpu.dot_dimension_numbers<[1], [0], [0], [1], [0, 0, 1, 1], [], []>} : vector<32x8xbf16>, vector<8x16xbf16>, vector<32x16xf32> -> vector<32x16xf32>
    %c0_38 = arith.constant 0 : index
    %c0_39 = arith.constant 0 : index
    %114 = vector.load %arg16[%c0_38, %c0_39] : memref<32x1xf32, #tpu.memory_space<vmem>>, vector<32x1xf32>
    %115 = vector.broadcast %114 : vector<32x1xf32> to vector<32x16xf32>
    %116 = arith.mulf %113, %115 : vector<32x16xf32>
    %c0_40 = arith.constant 0 : index
    %c0_41 = arith.constant 0 : index
    %117 = vector.load %arg17[%c0_40, %c0_41] : memref<32x1xf32, #tpu.memory_space<vmem>>, vector<32x1xf32>
    %118 = vector.broadcast %117 : vector<32x1xf32> to vector<32x16xf32>
    %119 = arith.addf %116, %118 : vector<32x16xf32>
    %120 = arith.addf %111, %119 : vector<32x16xf32>
    %cst_42 = arith.constant 0.000000e+00 : f32
    %121 = vector.broadcast %cst_42 : f32 to vector<32x16xf32>
    %122 = arith.maximumf %120, %121 : vector<32x16xf32>
    %123 = arith.truncf %122 : vector<32x16xf32> to vector<32x16xbf16>
    %c0_43 = arith.constant 0 : index
    %c0_44 = arith.constant 0 : index
    %124 = vector.load %arg18[%c0_43, %c0_44] : memref<32x16xbf16, #tpu.memory_space<vmem>>, vector<32x16xbf16>
    tpu.vector_store %arg18[%c0_43, %c0_44], %123 {strides = array<i32>} : memref<32x16xbf16, #tpu.memory_space<vmem>>, vector<32x16xbf16>,
    return
  }
}

module attributes {stable_mosaic.version = 11 : i64} {
  func.func @kernel(%arg0: memref<32x16xbf16, #tpu.memory_space<vmem>>, %arg1: memref<8x32xbf16, #tpu.memory_space<vmem>>, %arg2: memref<8x72xbf16, #tpu.memory_space<vmem>>, %arg3: memref<8x24xbf16, #tpu.memory_space<vmem>>, %arg4: memref<32x8xbf16, #tpu.memory_space<vmem>>, %arg5: memref<9x16xbf16, #tpu.memory_space<vmem>>, %arg6: memref<3x16xbf16, #tpu.memory_space<vmem>>, %arg7: memref<8x1xf32, #tpu.memory_space<vmem>>, %arg8: memref<8x1xf32, #tpu.memory_space<vmem>>, %arg9: memref<8x1xf32, #tpu.memory_space<vmem>>, %arg10: memref<8x1xf32, #tpu.memory_space<vmem>>, %arg11: memref<8x1xf32, #tpu.memory_space<vmem>>, %arg12: memref<8x1xf32, #tpu.memory_space<vmem>>, %arg13: memref<32x1xf32, #tpu.memory_space<vmem>>, %arg14: memref<32x1xf32, #tpu.memory_space<vmem>>, %arg15: memref<32x16xbf16, #tpu.memory_space<vmem>>) attributes {dimension_semantics = [], scalar_prefetch = 0 : i64, scratch_operands = 0 : i64, tpu.core_type = #tpu.core_type<tc>} {
    %c0 = arith.constant 0 : index
    %c0_0 = arith.constant 0 : index
    %0 = vector.load %arg0[%c0, %c0_0] : memref<32x16xbf16, #tpu.memory_space<vmem>>, vector<32x16xbf16>
    %c0_1 = arith.constant 0 : index
    %c0_2 = arith.constant 0 : index
    %1 = vector.load %arg5[%c0_1, %c0_2] : memref<9x16xbf16, #tpu.memory_space<vmem>>, vector<9x16xbf16>
    %c0_3 = arith.constant 0 : index
    %c0_4 = arith.constant 0 : index
    %2 = vector.load %arg6[%c0_3, %c0_4] : memref<3x16xbf16, #tpu.memory_space<vmem>>, vector<3x16xbf16>
    %c0_5 = arith.constant 0 : index
    %c0_6 = arith.constant 0 : index
    %3 = vector.load %arg1[%c0_5, %c0_6] : memref<8x32xbf16, #tpu.memory_space<vmem>>, vector<8x32xbf16>
    %cst = arith.constant dense<0.000000e+00> : vector<8x16xf32>
    %4 = tpu.matmul %3, %0, %cst {dimension_numbers = #tpu.dot_dimension_numbers<[1], [0], [0], [1], [0, 0, 1, 1], [], []>} : vector<8x32xbf16>, vector<32x16xbf16>, vector<8x16xf32> -> vector<8x16xf32>
    %c0_7 = arith.constant 0 : index
    %c0_8 = arith.constant 0 : index
    %5 = vector.load %arg7[%c0_7, %c0_8] : memref<8x1xf32, #tpu.memory_space<vmem>>, vector<8x1xf32>
    %6 = vector.broadcast %5 : vector<8x1xf32> to vector<8x16xf32>
    %7 = arith.mulf %4, %6 : vector<8x16xf32>
    %c0_9 = arith.constant 0 : index
    %c0_10 = arith.constant 0 : index
    %8 = vector.load %arg8[%c0_9, %c0_10] : memref<8x1xf32, #tpu.memory_space<vmem>>, vector<8x1xf32>
    %9 = vector.broadcast %8 : vector<8x1xf32> to vector<8x16xf32>
    %10 = arith.addf %7, %9 : vector<8x16xf32>
    %cst_11 = arith.constant 0.000000e+00 : f32
    %11 = vector.broadcast %cst_11 : f32 to vector<8x16xf32>
    %12 = arith.maximumf %10, %11 : vector<8x16xf32>
    %13 = arith.truncf %12 : vector<8x16xf32> to vector<8x16xbf16>
    %14 = vector.extract_strided_slice %13 {offsets = [0, 13], sizes = [8, 3], strides = [1, 1]} : vector<8x16xbf16> to vector<8x3xbf16>
    %15 = vector.extract_strided_slice %13 {offsets = [0, 0], sizes = [8, 13], strides = [1, 1]} : vector<8x16xbf16> to vector<8x13xbf16>
    %16 = tpu.concatenate %14, %15 in 1 : vector<8x3xbf16>, vector<8x13xbf16> -> vector<8x16xbf16>
    %17 = vector.extract_strided_slice %1 {offsets = [0, 0], sizes = [1, 16], strides = [1, 1]} : vector<9x16xbf16> to vector<1x16xbf16>
    %18 = vector.broadcast %17 : vector<1x16xbf16> to vector<8x16xbf16>
    %19 = arith.mulf %16, %18 : vector<8x16xbf16>
    %20 = vector.extract_strided_slice %13 {offsets = [0, 14], sizes = [8, 2], strides = [1, 1]} : vector<8x16xbf16> to vector<8x2xbf16>
    %21 = vector.extract_strided_slice %13 {offsets = [0, 0], sizes = [8, 14], strides = [1, 1]} : vector<8x16xbf16> to vector<8x14xbf16>
    %22 = tpu.concatenate %20, %21 in 1 : vector<8x2xbf16>, vector<8x14xbf16> -> vector<8x16xbf16>
    %23 = vector.extract_strided_slice %1 {offsets = [1, 0], sizes = [1, 16], strides = [1, 1]} : vector<9x16xbf16> to vector<1x16xbf16>
    %24 = vector.broadcast %23 : vector<1x16xbf16> to vector<8x16xbf16>
    %25 = arith.mulf %22, %24 : vector<8x16xbf16>
    %26 = vector.extract_strided_slice %13 {offsets = [0, 15], sizes = [8, 1], strides = [1, 1]} : vector<8x16xbf16> to vector<8x1xbf16>
    %27 = vector.extract_strided_slice %13 {offsets = [0, 0], sizes = [8, 15], strides = [1, 1]} : vector<8x16xbf16> to vector<8x15xbf16>
    %28 = tpu.concatenate %26, %27 in 1 : vector<8x1xbf16>, vector<8x15xbf16> -> vector<8x16xbf16>
    %29 = vector.extract_strided_slice %1 {offsets = [2, 0], sizes = [1, 16], strides = [1, 1]} : vector<9x16xbf16> to vector<1x16xbf16>
    %30 = vector.broadcast %29 : vector<1x16xbf16> to vector<8x16xbf16>
    %31 = arith.mulf %28, %30 : vector<8x16xbf16>
    %32 = vector.extract_strided_slice %13 {offsets = [0, 15], sizes = [8, 1], strides = [1, 1]} : vector<8x16xbf16> to vector<8x1xbf16>
    %33 = vector.extract_strided_slice %13 {offsets = [0, 0], sizes = [8, 15], strides = [1, 1]} : vector<8x16xbf16> to vector<8x15xbf16>
    %34 = tpu.concatenate %32, %33 in 1 : vector<8x1xbf16>, vector<8x15xbf16> -> vector<8x16xbf16>
    %35 = vector.extract_strided_slice %1 {offsets = [3, 0], sizes = [1, 16], strides = [1, 1]} : vector<9x16xbf16> to vector<1x16xbf16>
    %36 = vector.broadcast %35 : vector<1x16xbf16> to vector<8x16xbf16>
    %37 = arith.mulf %34, %36 : vector<8x16xbf16>
    %38 = vector.extract_strided_slice %1 {offsets = [4, 0], sizes = [1, 16], strides = [1, 1]} : vector<9x16xbf16> to vector<1x16xbf16>
    %39 = vector.broadcast %38 : vector<1x16xbf16> to vector<8x16xbf16>
    %40 = arith.mulf %13, %39 : vector<8x16xbf16>
    %41 = vector.extract_strided_slice %13 {offsets = [0, 1], sizes = [8, 15], strides = [1, 1]} : vector<8x16xbf16> to vector<8x15xbf16>
    %42 = vector.extract_strided_slice %13 {offsets = [0, 0], sizes = [8, 1], strides = [1, 1]} : vector<8x16xbf16> to vector<8x1xbf16>
    %43 = tpu.concatenate %41, %42 in 1 : vector<8x15xbf16>, vector<8x1xbf16> -> vector<8x16xbf16>
    %44 = vector.extract_strided_slice %1 {offsets = [5, 0], sizes = [1, 16], strides = [1, 1]} : vector<9x16xbf16> to vector<1x16xbf16>
    %45 = vector.broadcast %44 : vector<1x16xbf16> to vector<8x16xbf16>
    %46 = arith.mulf %43, %45 : vector<8x16xbf16>
    %47 = vector.extract_strided_slice %13 {offsets = [0, 1], sizes = [8, 15], strides = [1, 1]} : vector<8x16xbf16> to vector<8x15xbf16>
    %48 = vector.extract_strided_slice %13 {offsets = [0, 0], sizes = [8, 1], strides = [1, 1]} : vector<8x16xbf16> to vector<8x1xbf16>
    %49 = tpu.concatenate %47, %48 in 1 : vector<8x15xbf16>, vector<8x1xbf16> -> vector<8x16xbf16>
    %50 = vector.extract_strided_slice %1 {offsets = [6, 0], sizes = [1, 16], strides = [1, 1]} : vector<9x16xbf16> to vector<1x16xbf16>
    %51 = vector.broadcast %50 : vector<1x16xbf16> to vector<8x16xbf16>
    %52 = arith.mulf %49, %51 : vector<8x16xbf16>
    %53 = vector.extract_strided_slice %13 {offsets = [0, 2], sizes = [8, 14], strides = [1, 1]} : vector<8x16xbf16> to vector<8x14xbf16>
    %54 = vector.extract_strided_slice %13 {offsets = [0, 0], sizes = [8, 2], strides = [1, 1]} : vector<8x16xbf16> to vector<8x2xbf16>
    %55 = tpu.concatenate %53, %54 in 1 : vector<8x14xbf16>, vector<8x2xbf16> -> vector<8x16xbf16>
    %56 = vector.extract_strided_slice %1 {offsets = [7, 0], sizes = [1, 16], strides = [1, 1]} : vector<9x16xbf16> to vector<1x16xbf16>
    %57 = vector.broadcast %56 : vector<1x16xbf16> to vector<8x16xbf16>
    %58 = arith.mulf %55, %57 : vector<8x16xbf16>
    %59 = vector.extract_strided_slice %13 {offsets = [0, 3], sizes = [8, 13], strides = [1, 1]} : vector<8x16xbf16> to vector<8x13xbf16>
    %60 = vector.extract_strided_slice %13 {offsets = [0, 0], sizes = [8, 3], strides = [1, 1]} : vector<8x16xbf16> to vector<8x3xbf16>
    %61 = tpu.concatenate %59, %60 in 1 : vector<8x13xbf16>, vector<8x3xbf16> -> vector<8x16xbf16>
    %62 = vector.extract_strided_slice %1 {offsets = [8, 0], sizes = [1, 16], strides = [1, 1]} : vector<9x16xbf16> to vector<1x16xbf16>
    %63 = vector.broadcast %62 : vector<1x16xbf16> to vector<8x16xbf16>
    %64 = arith.mulf %61, %63 : vector<8x16xbf16>
    %65 = tpu.concatenate %19, %25, %31, %37, %40, %46, %52, %58, %64 in 0 : vector<8x16xbf16>, vector<8x16xbf16>, vector<8x16xbf16>, vector<8x16xbf16>, vector<8x16xbf16>, vector<8x16xbf16>, vector<8x16xbf16>, vector<8x16xbf16>, vector<8x16xbf16> -> vector<72x16xbf16>
    %c0_12 = arith.constant 0 : index
    %c0_13 = arith.constant 0 : index
    %66 = vector.load %arg2[%c0_12, %c0_13] : memref<8x72xbf16, #tpu.memory_space<vmem>>, vector<8x72xbf16>
    %cst_14 = arith.constant dense<0.000000e+00> : vector<8x16xf32>
    %67 = tpu.matmul %66, %65, %cst_14 {dimension_numbers = #tpu.dot_dimension_numbers<[1], [0], [0], [1], [0, 0, 1, 1], [], []>} : vector<8x72xbf16>, vector<72x16xbf16>, vector<8x16xf32> -> vector<8x16xf32>
    %c0_15 = arith.constant 0 : index
    %c0_16 = arith.constant 0 : index
    %68 = vector.load %arg9[%c0_15, %c0_16] : memref<8x1xf32, #tpu.memory_space<vmem>>, vector<8x1xf32>
    %69 = vector.broadcast %68 : vector<8x1xf32> to vector<8x16xf32>
    %70 = arith.mulf %67, %69 : vector<8x16xf32>
    %c0_17 = arith.constant 0 : index
    %c0_18 = arith.constant 0 : index
    %71 = vector.load %arg10[%c0_17, %c0_18] : memref<8x1xf32, #tpu.memory_space<vmem>>, vector<8x1xf32>
    %72 = vector.broadcast %71 : vector<8x1xf32> to vector<8x16xf32>
    %73 = arith.addf %70, %72 : vector<8x16xf32>
    %cst_19 = arith.constant 0.000000e+00 : f32
    %74 = vector.broadcast %cst_19 : f32 to vector<8x16xf32>
    %75 = arith.maximumf %73, %74 : vector<8x16xf32>
    %76 = vector.extract_strided_slice %13 {offsets = [0, 12], sizes = [8, 4], strides = [1, 1]} : vector<8x16xbf16> to vector<8x4xbf16>
    %77 = vector.extract_strided_slice %13 {offsets = [0, 0], sizes = [8, 12], strides = [1, 1]} : vector<8x16xbf16> to vector<8x12xbf16>
    %78 = tpu.concatenate %76, %77 in 1 : vector<8x4xbf16>, vector<8x12xbf16> -> vector<8x16xbf16>
    %79 = vector.extract_strided_slice %2 {offsets = [0, 0], sizes = [1, 16], strides = [1, 1]} : vector<3x16xbf16> to vector<1x16xbf16>
    %80 = vector.broadcast %79 : vector<1x16xbf16> to vector<8x16xbf16>
    %81 = arith.mulf %78, %80 : vector<8x16xbf16>
    %82 = vector.extract_strided_slice %2 {offsets = [1, 0], sizes = [1, 16], strides = [1, 1]} : vector<3x16xbf16> to vector<1x16xbf16>
    %83 = vector.broadcast %82 : vector<1x16xbf16> to vector<8x16xbf16>
    %84 = arith.mulf %13, %83 : vector<8x16xbf16>
    %85 = vector.extract_strided_slice %13 {offsets = [0, 4], sizes = [8, 12], strides = [1, 1]} : vector<8x16xbf16> to vector<8x12xbf16>
    %86 = vector.extract_strided_slice %13 {offsets = [0, 0], sizes = [8, 4], strides = [1, 1]} : vector<8x16xbf16> to vector<8x4xbf16>
    %87 = tpu.concatenate %85, %86 in 1 : vector<8x12xbf16>, vector<8x4xbf16> -> vector<8x16xbf16>
    %88 = vector.extract_strided_slice %2 {offsets = [2, 0], sizes = [1, 16], strides = [1, 1]} : vector<3x16xbf16> to vector<1x16xbf16>
    %89 = vector.broadcast %88 : vector<1x16xbf16> to vector<8x16xbf16>
    %90 = arith.mulf %87, %89 : vector<8x16xbf16>
    %91 = tpu.concatenate %81, %84, %90 in 0 : vector<8x16xbf16>, vector<8x16xbf16>, vector<8x16xbf16> -> vector<24x16xbf16>
    %c0_20 = arith.constant 0 : index
    %c0_21 = arith.constant 0 : index
    %92 = vector.load %arg3[%c0_20, %c0_21] : memref<8x24xbf16, #tpu.memory_space<vmem>>, vector<8x24xbf16>
    %cst_22 = arith.constant dense<0.000000e+00> : vector<8x16xf32>
    %93 = tpu.matmul %92, %91, %cst_22 {dimension_numbers = #tpu.dot_dimension_numbers<[1], [0], [0], [1], [0, 0, 1, 1], [], []>} : vector<8x24xbf16>, vector<24x16xbf16>, vector<8x16xf32> -> vector<8x16xf32>
    %c0_23 = arith.constant 0 : index
    %c0_24 = arith.constant 0 : index
    %94 = vector.load %arg11[%c0_23, %c0_24] : memref<8x1xf32, #tpu.memory_space<vmem>>, vector<8x1xf32>
    %95 = vector.broadcast %94 : vector<8x1xf32> to vector<8x16xf32>
    %96 = arith.mulf %93, %95 : vector<8x16xf32>
    %c0_25 = arith.constant 0 : index
    %c0_26 = arith.constant 0 : index
    %97 = vector.load %arg12[%c0_25, %c0_26] : memref<8x1xf32, #tpu.memory_space<vmem>>, vector<8x1xf32>
    %98 = vector.broadcast %97 : vector<8x1xf32> to vector<8x16xf32>
    %99 = arith.addf %96, %98 : vector<8x16xf32>
    %cst_27 = arith.constant 0.000000e+00 : f32
    %100 = vector.broadcast %cst_27 : f32 to vector<8x16xf32>
    %101 = arith.maximumf %99, %100 : vector<8x16xf32>
    %102 = arith.addf %101, %75 : vector<8x16xf32>
    %c0_28 = arith.constant 0 : index
    %c0_29 = arith.constant 0 : index
    %103 = vector.load %arg4[%c0_28, %c0_29] : memref<32x8xbf16, #tpu.memory_space<vmem>>, vector<32x8xbf16>
    %104 = arith.truncf %102 : vector<8x16xf32> to vector<8x16xbf16>
    %cst_30 = arith.constant dense<0.000000e+00> : vector<32x16xf32>
    %105 = tpu.matmul %103, %104, %cst_30 {dimension_numbers = #tpu.dot_dimension_numbers<[1], [0], [0], [1], [0, 0, 1, 1], [], []>} : vector<32x8xbf16>, vector<8x16xbf16>, vector<32x16xf32> -> vector<32x16xf32>
    %c0_31 = arith.constant 0 : index
    %c0_32 = arith.constant 0 : index
    %106 = vector.load %arg13[%c0_31, %c0_32] : memref<32x1xf32, #tpu.memory_space<vmem>>, vector<32x1xf32>
    %107 = vector.broadcast %106 : vector<32x1xf32> to vector<32x16xf32>
    %108 = arith.mulf %105, %107 : vector<32x16xf32>
    %c0_33 = arith.constant 0 : index
    %c0_34 = arith.constant 0 : index
    %109 = vector.load %arg14[%c0_33, %c0_34] : memref<32x1xf32, #tpu.memory_space<vmem>>, vector<32x1xf32>
    %110 = vector.broadcast %109 : vector<32x1xf32> to vector<32x16xf32>
    %111 = arith.addf %108, %110 : vector<32x16xf32>
    %112 = arith.extf %0 : vector<32x16xbf16> to vector<32x16xf32>
    %113 = arith.addf %111, %112 : vector<32x16xf32>
    %cst_35 = arith.constant 0.000000e+00 : f32
    %114 = vector.broadcast %cst_35 : f32 to vector<32x16xf32>
    %115 = arith.maximumf %113, %114 : vector<32x16xf32>
    %116 = arith.truncf %115 : vector<32x16xf32> to vector<32x16xbf16>
    %c0_36 = arith.constant 0 : index
    %c0_37 = arith.constant 0 : index
    %117 = vector.load %arg15[%c0_36, %c0_37] : memref<32x16xbf16, #tpu.memory_space<vmem>>, vector<32x16xbf16>
    tpu.vector_store %arg15[%c0_36, %c0_37], %116 {strides = array<i32>} : memref<32x16xbf16, #tpu.memory_space<vmem>>, vector<32x16xbf16>,
    return
  }
}

module attributes {stable_mosaic.version = 11 : i64} {
  func.func @kernel(%arg0: memref<32x2xbf16, #tpu.memory_space<vmem>>, %arg1: memref<16x32xbf16, #tpu.memory_space<vmem>>, %arg2: memref<16x144xbf16, #tpu.memory_space<vmem>>, %arg3: memref<16x48xbf16, #tpu.memory_space<vmem>>, %arg4: memref<64x16xbf16, #tpu.memory_space<vmem>>, %arg5: memref<64x32xbf16, #tpu.memory_space<vmem>>, %arg6: memref<9x2xbf16, #tpu.memory_space<vmem>>, %arg7: memref<3x2xbf16, #tpu.memory_space<vmem>>, %arg8: memref<16x1xf32, #tpu.memory_space<vmem>>, %arg9: memref<16x1xf32, #tpu.memory_space<vmem>>, %arg10: memref<16x1xf32, #tpu.memory_space<vmem>>, %arg11: memref<16x1xf32, #tpu.memory_space<vmem>>, %arg12: memref<16x1xf32, #tpu.memory_space<vmem>>, %arg13: memref<16x1xf32, #tpu.memory_space<vmem>>, %arg14: memref<64x1xf32, #tpu.memory_space<vmem>>, %arg15: memref<64x1xf32, #tpu.memory_space<vmem>>, %arg16: memref<64x1xf32, #tpu.memory_space<vmem>>, %arg17: memref<64x1xf32, #tpu.memory_space<vmem>>, %arg18: memref<64x2xbf16, #tpu.memory_space<vmem>>) attributes {dimension_semantics = [], scalar_prefetch = 0 : i64, scratch_operands = 0 : i64, tpu.core_type = #tpu.core_type<tc>} {
    %c0 = arith.constant 0 : index
    %c0_0 = arith.constant 0 : index
    %0 = vector.load %arg0[%c0, %c0_0] : memref<32x2xbf16, #tpu.memory_space<vmem>>, vector<32x2xbf16>
    %c0_1 = arith.constant 0 : index
    %c0_2 = arith.constant 0 : index
    %1 = vector.load %arg6[%c0_1, %c0_2] : memref<9x2xbf16, #tpu.memory_space<vmem>>, vector<9x2xbf16>
    %c0_3 = arith.constant 0 : index
    %c0_4 = arith.constant 0 : index
    %2 = vector.load %arg7[%c0_3, %c0_4] : memref<3x2xbf16, #tpu.memory_space<vmem>>, vector<3x2xbf16>
    %c0_5 = arith.constant 0 : index
    %c0_6 = arith.constant 0 : index
    %3 = vector.load %arg1[%c0_5, %c0_6] : memref<16x32xbf16, #tpu.memory_space<vmem>>, vector<16x32xbf16>
    %cst = arith.constant dense<0.000000e+00> : vector<16x2xf32>
    %4 = tpu.matmul %3, %0, %cst {dimension_numbers = #tpu.dot_dimension_numbers<[1], [0], [0], [1], [0, 0, 1, 1], [], []>} : vector<16x32xbf16>, vector<32x2xbf16>, vector<16x2xf32> -> vector<16x2xf32>
    %c0_7 = arith.constant 0 : index
    %c0_8 = arith.constant 0 : index
    %5 = vector.load %arg8[%c0_7, %c0_8] : memref<16x1xf32, #tpu.memory_space<vmem>>, vector<16x1xf32>
    %6 = vector.broadcast %5 : vector<16x1xf32> to vector<16x2xf32>
    %7 = arith.mulf %4, %6 : vector<16x2xf32>
    %c0_9 = arith.constant 0 : index
    %c0_10 = arith.constant 0 : index
    %8 = vector.load %arg9[%c0_9, %c0_10] : memref<16x1xf32, #tpu.memory_space<vmem>>, vector<16x1xf32>
    %9 = vector.broadcast %8 : vector<16x1xf32> to vector<16x2xf32>
    %10 = arith.addf %7, %9 : vector<16x2xf32>
    %cst_11 = arith.constant 0.000000e+00 : f32
    %11 = vector.broadcast %cst_11 : f32 to vector<16x2xf32>
    %12 = arith.maximumf %10, %11 : vector<16x2xf32>
    %13 = arith.truncf %12 : vector<16x2xf32> to vector<16x2xbf16>
    %14 = vector.extract_strided_slice %1 {offsets = [0, 0], sizes = [1, 2], strides = [1, 1]} : vector<9x2xbf16> to vector<1x2xbf16>
    %15 = vector.broadcast %14 : vector<1x2xbf16> to vector<16x2xbf16>
    %16 = arith.mulf %13, %15 : vector<16x2xbf16>
    %17 = vector.extract_strided_slice %13 {offsets = [0, 1], sizes = [16, 1], strides = [1, 1]} : vector<16x2xbf16> to vector<16x1xbf16>
    %18 = vector.extract_strided_slice %13 {offsets = [0, 0], sizes = [16, 1], strides = [1, 1]} : vector<16x2xbf16> to vector<16x1xbf16>
    %19 = tpu.concatenate %17, %18 in 1 : vector<16x1xbf16>, vector<16x1xbf16> -> vector<16x2xbf16>
    %20 = vector.extract_strided_slice %1 {offsets = [1, 0], sizes = [1, 2], strides = [1, 1]} : vector<9x2xbf16> to vector<1x2xbf16>
    %21 = vector.broadcast %20 : vector<1x2xbf16> to vector<16x2xbf16>
    %22 = arith.mulf %19, %21 : vector<16x2xbf16>
    %23 = vector.extract_strided_slice %1 {offsets = [2, 0], sizes = [1, 2], strides = [1, 1]} : vector<9x2xbf16> to vector<1x2xbf16>
    %24 = vector.broadcast %23 : vector<1x2xbf16> to vector<16x2xbf16>
    %25 = arith.mulf %13, %24 : vector<16x2xbf16>
    %26 = vector.extract_strided_slice %13 {offsets = [0, 1], sizes = [16, 1], strides = [1, 1]} : vector<16x2xbf16> to vector<16x1xbf16>
    %27 = vector.extract_strided_slice %13 {offsets = [0, 0], sizes = [16, 1], strides = [1, 1]} : vector<16x2xbf16> to vector<16x1xbf16>
    %28 = tpu.concatenate %26, %27 in 1 : vector<16x1xbf16>, vector<16x1xbf16> -> vector<16x2xbf16>
    %29 = vector.extract_strided_slice %1 {offsets = [3, 0], sizes = [1, 2], strides = [1, 1]} : vector<9x2xbf16> to vector<1x2xbf16>
    %30 = vector.broadcast %29 : vector<1x2xbf16> to vector<16x2xbf16>
    %31 = arith.mulf %28, %30 : vector<16x2xbf16>
    %32 = vector.extract_strided_slice %1 {offsets = [4, 0], sizes = [1, 2], strides = [1, 1]} : vector<9x2xbf16> to vector<1x2xbf16>
    %33 = vector.broadcast %32 : vector<1x2xbf16> to vector<16x2xbf16>
    %34 = arith.mulf %13, %33 : vector<16x2xbf16>
    %35 = vector.extract_strided_slice %13 {offsets = [0, 1], sizes = [16, 1], strides = [1, 1]} : vector<16x2xbf16> to vector<16x1xbf16>
    %36 = vector.extract_strided_slice %13 {offsets = [0, 0], sizes = [16, 1], strides = [1, 1]} : vector<16x2xbf16> to vector<16x1xbf16>
    %37 = tpu.concatenate %35, %36 in 1 : vector<16x1xbf16>, vector<16x1xbf16> -> vector<16x2xbf16>
    %38 = vector.extract_strided_slice %1 {offsets = [5, 0], sizes = [1, 2], strides = [1, 1]} : vector<9x2xbf16> to vector<1x2xbf16>
    %39 = vector.broadcast %38 : vector<1x2xbf16> to vector<16x2xbf16>
    %40 = arith.mulf %37, %39 : vector<16x2xbf16>
    %41 = vector.extract_strided_slice %1 {offsets = [6, 0], sizes = [1, 2], strides = [1, 1]} : vector<9x2xbf16> to vector<1x2xbf16>
    %42 = vector.broadcast %41 : vector<1x2xbf16> to vector<16x2xbf16>
    %43 = arith.mulf %13, %42 : vector<16x2xbf16>
    %44 = vector.extract_strided_slice %13 {offsets = [0, 1], sizes = [16, 1], strides = [1, 1]} : vector<16x2xbf16> to vector<16x1xbf16>
    %45 = vector.extract_strided_slice %13 {offsets = [0, 0], sizes = [16, 1], strides = [1, 1]} : vector<16x2xbf16> to vector<16x1xbf16>
    %46 = tpu.concatenate %44, %45 in 1 : vector<16x1xbf16>, vector<16x1xbf16> -> vector<16x2xbf16>
    %47 = vector.extract_strided_slice %1 {offsets = [7, 0], sizes = [1, 2], strides = [1, 1]} : vector<9x2xbf16> to vector<1x2xbf16>
    %48 = vector.broadcast %47 : vector<1x2xbf16> to vector<16x2xbf16>
    %49 = arith.mulf %46, %48 : vector<16x2xbf16>
    %50 = vector.extract_strided_slice %1 {offsets = [8, 0], sizes = [1, 2], strides = [1, 1]} : vector<9x2xbf16> to vector<1x2xbf16>
    %51 = vector.broadcast %50 : vector<1x2xbf16> to vector<16x2xbf16>
    %52 = arith.mulf %13, %51 : vector<16x2xbf16>
    %53 = tpu.concatenate %16, %22, %25, %31, %34, %40, %43, %49, %52 in 0 : vector<16x2xbf16>, vector<16x2xbf16>, vector<16x2xbf16>, vector<16x2xbf16>, vector<16x2xbf16>, vector<16x2xbf16>, vector<16x2xbf16>, vector<16x2xbf16>, vector<16x2xbf16> -> vector<144x2xbf16>
    %c0_12 = arith.constant 0 : index
    %c0_13 = arith.constant 0 : index
    %54 = vector.load %arg2[%c0_12, %c0_13] : memref<16x144xbf16, #tpu.memory_space<vmem>>, vector<16x144xbf16>
    %cst_14 = arith.constant dense<0.000000e+00> : vector<16x2xf32>
    %55 = tpu.matmul %54, %53, %cst_14 {dimension_numbers = #tpu.dot_dimension_numbers<[1], [0], [0], [1], [0, 0, 1, 1], [], []>} : vector<16x144xbf16>, vector<144x2xbf16>, vector<16x2xf32> -> vector<16x2xf32>
    %c0_15 = arith.constant 0 : index
    %c0_16 = arith.constant 0 : index
    %56 = vector.load %arg10[%c0_15, %c0_16] : memref<16x1xf32, #tpu.memory_space<vmem>>, vector<16x1xf32>
    %57 = vector.broadcast %56 : vector<16x1xf32> to vector<16x2xf32>
    %58 = arith.mulf %55, %57 : vector<16x2xf32>
    %c0_17 = arith.constant 0 : index
    %c0_18 = arith.constant 0 : index
    %59 = vector.load %arg11[%c0_17, %c0_18] : memref<16x1xf32, #tpu.memory_space<vmem>>, vector<16x1xf32>
    %60 = vector.broadcast %59 : vector<16x1xf32> to vector<16x2xf32>
    %61 = arith.addf %58, %60 : vector<16x2xf32>
    %cst_19 = arith.constant 0.000000e+00 : f32
    %62 = vector.broadcast %cst_19 : f32 to vector<16x2xf32>
    %63 = arith.maximumf %61, %62 : vector<16x2xf32>
    %64 = arith.truncf %63 : vector<16x2xf32> to vector<16x2xbf16>
    %65 = vector.extract_strided_slice %64 {offsets = [0, 1], sizes = [16, 1], strides = [1, 1]} : vector<16x2xbf16> to vector<16x1xbf16>
    %66 = vector.extract_strided_slice %64 {offsets = [0, 0], sizes = [16, 1], strides = [1, 1]} : vector<16x2xbf16> to vector<16x1xbf16>
    %67 = tpu.concatenate %65, %66 in 1 : vector<16x1xbf16>, vector<16x1xbf16> -> vector<16x2xbf16>
    %68 = vector.extract_strided_slice %2 {offsets = [0, 0], sizes = [1, 2], strides = [1, 1]} : vector<3x2xbf16> to vector<1x2xbf16>
    %69 = vector.broadcast %68 : vector<1x2xbf16> to vector<16x2xbf16>
    %70 = arith.mulf %67, %69 : vector<16x2xbf16>
    %71 = vector.extract_strided_slice %2 {offsets = [1, 0], sizes = [1, 2], strides = [1, 1]} : vector<3x2xbf16> to vector<1x2xbf16>
    %72 = vector.broadcast %71 : vector<1x2xbf16> to vector<16x2xbf16>
    %73 = arith.mulf %64, %72 : vector<16x2xbf16>
    %74 = vector.extract_strided_slice %64 {offsets = [0, 1], sizes = [16, 1], strides = [1, 1]} : vector<16x2xbf16> to vector<16x1xbf16>
    %75 = vector.extract_strided_slice %64 {offsets = [0, 0], sizes = [16, 1], strides = [1, 1]} : vector<16x2xbf16> to vector<16x1xbf16>
    %76 = tpu.concatenate %74, %75 in 1 : vector<16x1xbf16>, vector<16x1xbf16> -> vector<16x2xbf16>
    %77 = vector.extract_strided_slice %2 {offsets = [2, 0], sizes = [1, 2], strides = [1, 1]} : vector<3x2xbf16> to vector<1x2xbf16>
    %78 = vector.broadcast %77 : vector<1x2xbf16> to vector<16x2xbf16>
    %79 = arith.mulf %76, %78 : vector<16x2xbf16>
    %80 = tpu.concatenate %70, %73, %79 in 0 : vector<16x2xbf16>, vector<16x2xbf16>, vector<16x2xbf16> -> vector<48x2xbf16>
    %c0_20 = arith.constant 0 : index
    %c0_21 = arith.constant 0 : index
    %81 = vector.load %arg3[%c0_20, %c0_21] : memref<16x48xbf16, #tpu.memory_space<vmem>>, vector<16x48xbf16>
    %cst_22 = arith.constant dense<0.000000e+00> : vector<16x2xf32>
    %82 = tpu.matmul %81, %80, %cst_22 {dimension_numbers = #tpu.dot_dimension_numbers<[1], [0], [0], [1], [0, 0, 1, 1], [], []>} : vector<16x48xbf16>, vector<48x2xbf16>, vector<16x2xf32> -> vector<16x2xf32>
    %c0_23 = arith.constant 0 : index
    %c0_24 = arith.constant 0 : index
    %83 = vector.load %arg12[%c0_23, %c0_24] : memref<16x1xf32, #tpu.memory_space<vmem>>, vector<16x1xf32>
    %84 = vector.broadcast %83 : vector<16x1xf32> to vector<16x2xf32>
    %85 = arith.mulf %82, %84 : vector<16x2xf32>
    %c0_25 = arith.constant 0 : index
    %c0_26 = arith.constant 0 : index
    %86 = vector.load %arg13[%c0_25, %c0_26] : memref<16x1xf32, #tpu.memory_space<vmem>>, vector<16x1xf32>
    %87 = vector.broadcast %86 : vector<16x1xf32> to vector<16x2xf32>
    %88 = arith.addf %85, %87 : vector<16x2xf32>
    %cst_27 = arith.constant 0.000000e+00 : f32
    %89 = vector.broadcast %cst_27 : f32 to vector<16x2xf32>
    %90 = arith.maximumf %88, %89 : vector<16x2xf32>
    %c0_28 = arith.constant 0 : index
    %c0_29 = arith.constant 0 : index
    %91 = vector.load %arg4[%c0_28, %c0_29] : memref<64x16xbf16, #tpu.memory_space<vmem>>, vector<64x16xbf16>
    %92 = arith.truncf %90 : vector<16x2xf32> to vector<16x2xbf16>
    %cst_30 = arith.constant dense<0.000000e+00> : vector<64x2xf32>
    %93 = tpu.matmul %91, %92, %cst_30 {dimension_numbers = #tpu.dot_dimension_numbers<[1], [0], [0], [1], [0, 0, 1, 1], [], []>} : vector<64x16xbf16>, vector<16x2xbf16>, vector<64x2xf32> -> vector<64x2xf32>
    %c0_31 = arith.constant 0 : index
    %c0_32 = arith.constant 0 : index
    %94 = vector.load %arg14[%c0_31, %c0_32] : memref<64x1xf32, #tpu.memory_space<vmem>>, vector<64x1xf32>
    %95 = vector.broadcast %94 : vector<64x1xf32> to vector<64x2xf32>
    %96 = arith.mulf %93, %95 : vector<64x2xf32>
    %c0_33 = arith.constant 0 : index
    %c0_34 = arith.constant 0 : index
    %97 = vector.load %arg15[%c0_33, %c0_34] : memref<64x1xf32, #tpu.memory_space<vmem>>, vector<64x1xf32>
    %98 = vector.broadcast %97 : vector<64x1xf32> to vector<64x2xf32>
    %99 = arith.addf %96, %98 : vector<64x2xf32>
    %c0_35 = arith.constant 0 : index
    %c0_36 = arith.constant 0 : index
    %100 = vector.load %arg5[%c0_35, %c0_36] : memref<64x32xbf16, #tpu.memory_space<vmem>>, vector<64x32xbf16>
    %cst_37 = arith.constant dense<0.000000e+00> : vector<64x2xf32>
    %101 = tpu.matmul %100, %0, %cst_37 {dimension_numbers = #tpu.dot_dimension_numbers<[1], [0], [0], [1], [0, 0, 1, 1], [], []>} : vector<64x32xbf16>, vector<32x2xbf16>, vector<64x2xf32> -> vector<64x2xf32>
    %c0_38 = arith.constant 0 : index
    %c0_39 = arith.constant 0 : index
    %102 = vector.load %arg16[%c0_38, %c0_39] : memref<64x1xf32, #tpu.memory_space<vmem>>, vector<64x1xf32>
    %103 = vector.broadcast %102 : vector<64x1xf32> to vector<64x2xf32>
    %104 = arith.mulf %101, %103 : vector<64x2xf32>
    %c0_40 = arith.constant 0 : index
    %c0_41 = arith.constant 0 : index
    %105 = vector.load %arg17[%c0_40, %c0_41] : memref<64x1xf32, #tpu.memory_space<vmem>>, vector<64x1xf32>
    %106 = vector.broadcast %105 : vector<64x1xf32> to vector<64x2xf32>
    %107 = arith.addf %104, %106 : vector<64x2xf32>
    %108 = arith.addf %99, %107 : vector<64x2xf32>
    %cst_42 = arith.constant 0.000000e+00 : f32
    %109 = vector.broadcast %cst_42 : f32 to vector<64x2xf32>
    %110 = arith.maximumf %108, %109 : vector<64x2xf32>
    %111 = arith.truncf %110 : vector<64x2xf32> to vector<64x2xbf16>
    %c0_43 = arith.constant 0 : index
    %c0_44 = arith.constant 0 : index
    %112 = vector.load %arg18[%c0_43, %c0_44] : memref<64x2xbf16, #tpu.memory_space<vmem>>, vector<64x2xbf16>
    tpu.vector_store %arg18[%c0_43, %c0_44], %111 {strides = array<i32>} : memref<64x2xbf16, #tpu.memory_space<vmem>>, vector<64x2xbf16>,
    return
  }
}

module attributes {stable_mosaic.version = 11 : i64} {
  func.func @kernel(%arg0: memref<64x2xbf16, #tpu.memory_space<vmem>>, %arg1: memref<16x64xbf16, #tpu.memory_space<vmem>>, %arg2: memref<16x144xbf16, #tpu.memory_space<vmem>>, %arg3: memref<16x48xbf16, #tpu.memory_space<vmem>>, %arg4: memref<64x16xbf16, #tpu.memory_space<vmem>>, %arg5: memref<9x2xbf16, #tpu.memory_space<vmem>>, %arg6: memref<3x2xbf16, #tpu.memory_space<vmem>>, %arg7: memref<16x1xf32, #tpu.memory_space<vmem>>, %arg8: memref<16x1xf32, #tpu.memory_space<vmem>>, %arg9: memref<16x1xf32, #tpu.memory_space<vmem>>, %arg10: memref<16x1xf32, #tpu.memory_space<vmem>>, %arg11: memref<16x1xf32, #tpu.memory_space<vmem>>, %arg12: memref<16x1xf32, #tpu.memory_space<vmem>>, %arg13: memref<64x1xf32, #tpu.memory_space<vmem>>, %arg14: memref<64x1xf32, #tpu.memory_space<vmem>>, %arg15: memref<64x2xbf16, #tpu.memory_space<vmem>>) attributes {dimension_semantics = [], scalar_prefetch = 0 : i64, scratch_operands = 0 : i64, tpu.core_type = #tpu.core_type<tc>} {
    %c0 = arith.constant 0 : index
    %c0_0 = arith.constant 0 : index
    %0 = vector.load %arg0[%c0, %c0_0] : memref<64x2xbf16, #tpu.memory_space<vmem>>, vector<64x2xbf16>
    %c0_1 = arith.constant 0 : index
    %c0_2 = arith.constant 0 : index
    %1 = vector.load %arg5[%c0_1, %c0_2] : memref<9x2xbf16, #tpu.memory_space<vmem>>, vector<9x2xbf16>
    %c0_3 = arith.constant 0 : index
    %c0_4 = arith.constant 0 : index
    %2 = vector.load %arg6[%c0_3, %c0_4] : memref<3x2xbf16, #tpu.memory_space<vmem>>, vector<3x2xbf16>
    %c0_5 = arith.constant 0 : index
    %c0_6 = arith.constant 0 : index
    %3 = vector.load %arg1[%c0_5, %c0_6] : memref<16x64xbf16, #tpu.memory_space<vmem>>, vector<16x64xbf16>
    %cst = arith.constant dense<0.000000e+00> : vector<16x2xf32>
    %4 = tpu.matmul %3, %0, %cst {dimension_numbers = #tpu.dot_dimension_numbers<[1], [0], [0], [1], [0, 0, 1, 1], [], []>} : vector<16x64xbf16>, vector<64x2xbf16>, vector<16x2xf32> -> vector<16x2xf32>
    %c0_7 = arith.constant 0 : index
    %c0_8 = arith.constant 0 : index
    %5 = vector.load %arg7[%c0_7, %c0_8] : memref<16x1xf32, #tpu.memory_space<vmem>>, vector<16x1xf32>
    %6 = vector.broadcast %5 : vector<16x1xf32> to vector<16x2xf32>
    %7 = arith.mulf %4, %6 : vector<16x2xf32>
    %c0_9 = arith.constant 0 : index
    %c0_10 = arith.constant 0 : index
    %8 = vector.load %arg8[%c0_9, %c0_10] : memref<16x1xf32, #tpu.memory_space<vmem>>, vector<16x1xf32>
    %9 = vector.broadcast %8 : vector<16x1xf32> to vector<16x2xf32>
    %10 = arith.addf %7, %9 : vector<16x2xf32>
    %cst_11 = arith.constant 0.000000e+00 : f32
    %11 = vector.broadcast %cst_11 : f32 to vector<16x2xf32>
    %12 = arith.maximumf %10, %11 : vector<16x2xf32>
    %13 = arith.truncf %12 : vector<16x2xf32> to vector<16x2xbf16>
    %14 = vector.extract_strided_slice %1 {offsets = [0, 0], sizes = [1, 2], strides = [1, 1]} : vector<9x2xbf16> to vector<1x2xbf16>
    %15 = vector.broadcast %14 : vector<1x2xbf16> to vector<16x2xbf16>
    %16 = arith.mulf %13, %15 : vector<16x2xbf16>
    %17 = vector.extract_strided_slice %13 {offsets = [0, 1], sizes = [16, 1], strides = [1, 1]} : vector<16x2xbf16> to vector<16x1xbf16>
    %18 = vector.extract_strided_slice %13 {offsets = [0, 0], sizes = [16, 1], strides = [1, 1]} : vector<16x2xbf16> to vector<16x1xbf16>
    %19 = tpu.concatenate %17, %18 in 1 : vector<16x1xbf16>, vector<16x1xbf16> -> vector<16x2xbf16>
    %20 = vector.extract_strided_slice %1 {offsets = [1, 0], sizes = [1, 2], strides = [1, 1]} : vector<9x2xbf16> to vector<1x2xbf16>
    %21 = vector.broadcast %20 : vector<1x2xbf16> to vector<16x2xbf16>
    %22 = arith.mulf %19, %21 : vector<16x2xbf16>
    %23 = vector.extract_strided_slice %1 {offsets = [2, 0], sizes = [1, 2], strides = [1, 1]} : vector<9x2xbf16> to vector<1x2xbf16>
    %24 = vector.broadcast %23 : vector<1x2xbf16> to vector<16x2xbf16>
    %25 = arith.mulf %13, %24 : vector<16x2xbf16>
    %26 = vector.extract_strided_slice %13 {offsets = [0, 1], sizes = [16, 1], strides = [1, 1]} : vector<16x2xbf16> to vector<16x1xbf16>
    %27 = vector.extract_strided_slice %13 {offsets = [0, 0], sizes = [16, 1], strides = [1, 1]} : vector<16x2xbf16> to vector<16x1xbf16>
    %28 = tpu.concatenate %26, %27 in 1 : vector<16x1xbf16>, vector<16x1xbf16> -> vector<16x2xbf16>
    %29 = vector.extract_strided_slice %1 {offsets = [3, 0], sizes = [1, 2], strides = [1, 1]} : vector<9x2xbf16> to vector<1x2xbf16>
    %30 = vector.broadcast %29 : vector<1x2xbf16> to vector<16x2xbf16>
    %31 = arith.mulf %28, %30 : vector<16x2xbf16>
    %32 = vector.extract_strided_slice %1 {offsets = [4, 0], sizes = [1, 2], strides = [1, 1]} : vector<9x2xbf16> to vector<1x2xbf16>
    %33 = vector.broadcast %32 : vector<1x2xbf16> to vector<16x2xbf16>
    %34 = arith.mulf %13, %33 : vector<16x2xbf16>
    %35 = vector.extract_strided_slice %13 {offsets = [0, 1], sizes = [16, 1], strides = [1, 1]} : vector<16x2xbf16> to vector<16x1xbf16>
    %36 = vector.extract_strided_slice %13 {offsets = [0, 0], sizes = [16, 1], strides = [1, 1]} : vector<16x2xbf16> to vector<16x1xbf16>
    %37 = tpu.concatenate %35, %36 in 1 : vector<16x1xbf16>, vector<16x1xbf16> -> vector<16x2xbf16>
    %38 = vector.extract_strided_slice %1 {offsets = [5, 0], sizes = [1, 2], strides = [1, 1]} : vector<9x2xbf16> to vector<1x2xbf16>
    %39 = vector.broadcast %38 : vector<1x2xbf16> to vector<16x2xbf16>
    %40 = arith.mulf %37, %39 : vector<16x2xbf16>
    %41 = vector.extract_strided_slice %1 {offsets = [6, 0], sizes = [1, 2], strides = [1, 1]} : vector<9x2xbf16> to vector<1x2xbf16>
    %42 = vector.broadcast %41 : vector<1x2xbf16> to vector<16x2xbf16>
    %43 = arith.mulf %13, %42 : vector<16x2xbf16>
    %44 = vector.extract_strided_slice %13 {offsets = [0, 1], sizes = [16, 1], strides = [1, 1]} : vector<16x2xbf16> to vector<16x1xbf16>
    %45 = vector.extract_strided_slice %13 {offsets = [0, 0], sizes = [16, 1], strides = [1, 1]} : vector<16x2xbf16> to vector<16x1xbf16>
    %46 = tpu.concatenate %44, %45 in 1 : vector<16x1xbf16>, vector<16x1xbf16> -> vector<16x2xbf16>
    %47 = vector.extract_strided_slice %1 {offsets = [7, 0], sizes = [1, 2], strides = [1, 1]} : vector<9x2xbf16> to vector<1x2xbf16>
    %48 = vector.broadcast %47 : vector<1x2xbf16> to vector<16x2xbf16>
    %49 = arith.mulf %46, %48 : vector<16x2xbf16>
    %50 = vector.extract_strided_slice %1 {offsets = [8, 0], sizes = [1, 2], strides = [1, 1]} : vector<9x2xbf16> to vector<1x2xbf16>
    %51 = vector.broadcast %50 : vector<1x2xbf16> to vector<16x2xbf16>
    %52 = arith.mulf %13, %51 : vector<16x2xbf16>
    %53 = tpu.concatenate %16, %22, %25, %31, %34, %40, %43, %49, %52 in 0 : vector<16x2xbf16>, vector<16x2xbf16>, vector<16x2xbf16>, vector<16x2xbf16>, vector<16x2xbf16>, vector<16x2xbf16>, vector<16x2xbf16>, vector<16x2xbf16>, vector<16x2xbf16> -> vector<144x2xbf16>
    %c0_12 = arith.constant 0 : index
    %c0_13 = arith.constant 0 : index
    %54 = vector.load %arg2[%c0_12, %c0_13] : memref<16x144xbf16, #tpu.memory_space<vmem>>, vector<16x144xbf16>
    %cst_14 = arith.constant dense<0.000000e+00> : vector<16x2xf32>
    %55 = tpu.matmul %54, %53, %cst_14 {dimension_numbers = #tpu.dot_dimension_numbers<[1], [0], [0], [1], [0, 0, 1, 1], [], []>} : vector<16x144xbf16>, vector<144x2xbf16>, vector<16x2xf32> -> vector<16x2xf32>
    %c0_15 = arith.constant 0 : index
    %c0_16 = arith.constant 0 : index
    %56 = vector.load %arg9[%c0_15, %c0_16] : memref<16x1xf32, #tpu.memory_space<vmem>>, vector<16x1xf32>
    %57 = vector.broadcast %56 : vector<16x1xf32> to vector<16x2xf32>
    %58 = arith.mulf %55, %57 : vector<16x2xf32>
    %c0_17 = arith.constant 0 : index
    %c0_18 = arith.constant 0 : index
    %59 = vector.load %arg10[%c0_17, %c0_18] : memref<16x1xf32, #tpu.memory_space<vmem>>, vector<16x1xf32>
    %60 = vector.broadcast %59 : vector<16x1xf32> to vector<16x2xf32>
    %61 = arith.addf %58, %60 : vector<16x2xf32>
    %cst_19 = arith.constant 0.000000e+00 : f32
    %62 = vector.broadcast %cst_19 : f32 to vector<16x2xf32>
    %63 = arith.maximumf %61, %62 : vector<16x2xf32>
    %64 = vector.extract_strided_slice %13 {offsets = [0, 1], sizes = [16, 1], strides = [1, 1]} : vector<16x2xbf16> to vector<16x1xbf16>
    %65 = vector.extract_strided_slice %13 {offsets = [0, 0], sizes = [16, 1], strides = [1, 1]} : vector<16x2xbf16> to vector<16x1xbf16>
    %66 = tpu.concatenate %64, %65 in 1 : vector<16x1xbf16>, vector<16x1xbf16> -> vector<16x2xbf16>
    %67 = vector.extract_strided_slice %2 {offsets = [0, 0], sizes = [1, 2], strides = [1, 1]} : vector<3x2xbf16> to vector<1x2xbf16>
    %68 = vector.broadcast %67 : vector<1x2xbf16> to vector<16x2xbf16>
    %69 = arith.mulf %66, %68 : vector<16x2xbf16>
    %70 = vector.extract_strided_slice %2 {offsets = [1, 0], sizes = [1, 2], strides = [1, 1]} : vector<3x2xbf16> to vector<1x2xbf16>
    %71 = vector.broadcast %70 : vector<1x2xbf16> to vector<16x2xbf16>
    %72 = arith.mulf %13, %71 : vector<16x2xbf16>
    %73 = vector.extract_strided_slice %13 {offsets = [0, 1], sizes = [16, 1], strides = [1, 1]} : vector<16x2xbf16> to vector<16x1xbf16>
    %74 = vector.extract_strided_slice %13 {offsets = [0, 0], sizes = [16, 1], strides = [1, 1]} : vector<16x2xbf16> to vector<16x1xbf16>
    %75 = tpu.concatenate %73, %74 in 1 : vector<16x1xbf16>, vector<16x1xbf16> -> vector<16x2xbf16>
    %76 = vector.extract_strided_slice %2 {offsets = [2, 0], sizes = [1, 2], strides = [1, 1]} : vector<3x2xbf16> to vector<1x2xbf16>
    %77 = vector.broadcast %76 : vector<1x2xbf16> to vector<16x2xbf16>
    %78 = arith.mulf %75, %77 : vector<16x2xbf16>
    %79 = tpu.concatenate %69, %72, %78 in 0 : vector<16x2xbf16>, vector<16x2xbf16>, vector<16x2xbf16> -> vector<48x2xbf16>
    %c0_20 = arith.constant 0 : index
    %c0_21 = arith.constant 0 : index
    %80 = vector.load %arg3[%c0_20, %c0_21] : memref<16x48xbf16, #tpu.memory_space<vmem>>, vector<16x48xbf16>
    %cst_22 = arith.constant dense<0.000000e+00> : vector<16x2xf32>
    %81 = tpu.matmul %80, %79, %cst_22 {dimension_numbers = #tpu.dot_dimension_numbers<[1], [0], [0], [1], [0, 0, 1, 1], [], []>} : vector<16x48xbf16>, vector<48x2xbf16>, vector<16x2xf32> -> vector<16x2xf32>
    %c0_23 = arith.constant 0 : index
    %c0_24 = arith.constant 0 : index
    %82 = vector.load %arg11[%c0_23, %c0_24] : memref<16x1xf32, #tpu.memory_space<vmem>>, vector<16x1xf32>
    %83 = vector.broadcast %82 : vector<16x1xf32> to vector<16x2xf32>
    %84 = arith.mulf %81, %83 : vector<16x2xf32>
    %c0_25 = arith.constant 0 : index
    %c0_26 = arith.constant 0 : index
    %85 = vector.load %arg12[%c0_25, %c0_26] : memref<16x1xf32, #tpu.memory_space<vmem>>, vector<16x1xf32>
    %86 = vector.broadcast %85 : vector<16x1xf32> to vector<16x2xf32>
    %87 = arith.addf %84, %86 : vector<16x2xf32>
    %cst_27 = arith.constant 0.000000e+00 : f32
    %88 = vector.broadcast %cst_27 : f32 to vector<16x2xf32>
    %89 = arith.maximumf %87, %88 : vector<16x2xf32>
    %90 = arith.addf %89, %63 : vector<16x2xf32>
    %c0_28 = arith.constant 0 : index
    %c0_29 = arith.constant 0 : index
    %91 = vector.load %arg4[%c0_28, %c0_29] : memref<64x16xbf16, #tpu.memory_space<vmem>>, vector<64x16xbf16>
    %92 = arith.truncf %90 : vector<16x2xf32> to vector<16x2xbf16>
    %cst_30 = arith.constant dense<0.000000e+00> : vector<64x2xf32>
    %93 = tpu.matmul %91, %92, %cst_30 {dimension_numbers = #tpu.dot_dimension_numbers<[1], [0], [0], [1], [0, 0, 1, 1], [], []>} : vector<64x16xbf16>, vector<16x2xbf16>, vector<64x2xf32> -> vector<64x2xf32>
    %c0_31 = arith.constant 0 : index
    %c0_32 = arith.constant 0 : index
    %94 = vector.load %arg13[%c0_31, %c0_32] : memref<64x1xf32, #tpu.memory_space<vmem>>, vector<64x1xf32>
    %95 = vector.broadcast %94 : vector<64x1xf32> to vector<64x2xf32>
    %96 = arith.mulf %93, %95 : vector<64x2xf32>
    %c0_33 = arith.constant 0 : index
    %c0_34 = arith.constant 0 : index
    %97 = vector.load %arg14[%c0_33, %c0_34] : memref<64x1xf32, #tpu.memory_space<vmem>>, vector<64x1xf32>
    %98 = vector.broadcast %97 : vector<64x1xf32> to vector<64x2xf32>
    %99 = arith.addf %96, %98 : vector<64x2xf32>
    %100 = arith.extf %0 : vector<64x2xbf16> to vector<64x2xf32>
    %101 = arith.addf %99, %100 : vector<64x2xf32>
    %cst_35 = arith.constant 0.000000e+00 : f32
    %102 = vector.broadcast %cst_35 : f32 to vector<64x2xf32>
    %103 = arith.maximumf %101, %102 : vector<64x2xf32>
    %104 = arith.truncf %103 : vector<64x2xf32> to vector<64x2xbf16>
    %c0_36 = arith.constant 0 : index
    %c0_37 = arith.constant 0 : index
    %105 = vector.load %arg15[%c0_36, %c0_37] : memref<64x2xbf16, #tpu.memory_space<vmem>>, vector<64x2xbf16>
    tpu.vector_store %arg15[%c0_36, %c0_37], %104 {strides = array<i32>} : memref<64x2xbf16, #tpu.memory_space<vmem>>, vector<64x2xbf16>,
    return
  }
}

</mosaic_0001>

<llo_original>
// kernel: _lambda_.5
$region0: #{_lambda_.5}
  #allocation0 [shape = 'u32[]', space=smem, size = 0x4, offset = 0x4, fixed_abs, tag = 'smem constant byte address 0x4 - core index']
  #allocation1 [shape = 'u32[144,128]{1,0:T(1,128)}', space=vmem, size = 0x12000, scoped, tag = 'internal scratch']
  #allocation2 [shape = 'f32[8,16]{1,0:T(8,128)}', space=vmem, size = 0x1000, scoped, tag = 'scratch operand']
  %s0 = inlined_call_operand.vmem [shape: bf16[8,80], index: 0, kind: input, shape index: {}]
  %s1 = inlined_call_operand.vmem [shape: bf16[8,80,16], index: 1, kind: input, shape index: {}]
  %s2 = inlined_call_operand.vmem [shape: f32[8,1], index: 2, kind: input, shape index: {}]
  %s3 = inlined_call_operand.vmem [shape: f32[8,1], index: 3, kind: input, shape index: {}]
  %s4 = inlined_call_operand.vmem [shape: bf16[8,16], index: 4, kind: output, shape index: {}]
  %s5 = sld [smem:[#allocation0]]
  $region57: #{_lambda_.5} parent=0
    _
  %s7 = ssub.s32 1, %s5
  %s8 = scalar_select 0, %s7, %s5
  loop: start=0, step=1, limit=10
  $region2: #{_lambda_.5} parent=0 // loop_pre_header
    _
  $region3: #{_lambda_.5} parent=0 // loop_header
    %s10 = sphi 0, %s14
    %p11 = scmp.ge.s32.totalorder %s10, 10
    %s17 = sphi 0, %s29
    %s18 = sphi 0, %s25
    %s19 = sphi 0, %s17
    %s20 = sphi 0, %s18
    %s21 = sphi 0, %s19
    %s22 = sphi 0, %s20
    %s30 = sphi 0, %s30
    %s32 = sphi 0, %s30
    %s33 = sphi 0, %s32
    %s47 = sphi 0, %s33
    %s55 = sphi 0, %s57
    %s58 = sphi 0, %s55
    %s59 = sphi 0, %s58
    %s75 = sphi 0, %s59
    %s79 = sphi 0, %s79
    %s81 = sphi 0, %s79
    %s82 = sphi 0, %s81
    %s96 = sphi 0, %s82
    %s100 = sphi 0, %s100
    %s102 = sphi 0, %s100
    %s103 = sphi 0, %s102
    %s117 = sphi 0, %s103
    %s123 = sphi 0, %s125
    %s126 = sphi 0, %s123
    %s127 = sphi 0, %s126
    %s143 = sphi 0, %s127
  $region4: #{_lambda_.5} parent=0 // loop_header_branch
    %13 = sbr.rel (%p11) target = $region8
  $region5: #{_lambda_.5} parent=0 // loop_body
    %s15 = ssub.s32 %s10, 1
    %s16 = ssub.s32 %s10, 2
    %s23 = sadd.s32 1, %s18
    %p24 = scmp.ge.s32.totalorder %s23, 8
    %s25 = scalar_select %p24, 0, %s23
    %s26 = sadd.s32 1, %s17
    %s27 = scalar_select %p24, %s26, %s17
    %p28 = scmp.ge.s32.totalorder %s27, 1
    %s29 = scalar_select %p28, 0, %s27
    %s31 = sadd.s32 %s30, 1
    %p34 = scmp.eq.s32.totalorder %s10, 7
    %p35 = scmp.ne.s32.totalorder %s30, %s32
    %p36 = scmp.eq.s32.totalorder %s10, 0
    %p37 = por %p35, %p36
    %p38 = scmp.ne.s32.totalorder %s30, %s32
    %p39 = scmp.eq.s32.totalorder %s15, 7
    %p40 = por %p38, %p39
    %p41 = scmp.ne.s32.totalorder %s32, %s33
    %p42 = scmp.eq.s32.totalorder %s15, 0
    %p43 = por %p41, %p42
    %p44 = scmp.ne.s32.totalorder %s32, %s33
    %p45 = scmp.eq.s32.totalorder %s16, 7
    %p46 = por %p44, %p45
    %p48 = scmp.ne.s32.totalorder %s33, %s47
    %p49 = scmp.eq.s32.totalorder %s16, 0
    %p50 = por %p48, %p49
    %s51 = ssub.s32 %s18, %s25
    %s52 = ssub.s32 %s17, %s29
    %s53 = sor.u32 %s51, %s52
    %p54 = scmp.eq.s32.totalorder %s53, 0
    %s56 = sadd.s32 %s55, 1
    %s57 = scalar_select %p54, %s55, %s56
    %p60 = pneg %p54
    %p61 = scmp.eq.s32.totalorder %s10, 7
    %p62 = por %p60, %p61
    %p63 = scmp.ne.s32.totalorder %s55, %s58
    %p64 = scmp.eq.s32.totalorder %s10, 0
    %p65 = por %p63, %p64
    %p66 = scmp.ne.s32.totalorder %s55, %s58
    %p67 = scmp.eq.s32.totalorder %s15, 7
    %p68 = por %p66, %p67
    %p69 = scmp.ne.s32.totalorder %s58, %s59
    %p70 = scmp.eq.s32.totalorder %s15, 0
    %p71 = por %p69, %p70
    %p72 = scmp.ne.s32.totalorder %s58, %s59
    %p73 = scmp.eq.s32.totalorder %s16, 7
    %p74 = por %p72, %p73
    %p76 = scmp.ne.s32.totalorder %s59, %s75
    %p77 = scmp.eq.s32.totalorder %s16, 0
    %p78 = por %p76, %p77
    %s80 = sadd.s32 %s79, 1
    %p83 = scmp.eq.s32.totalorder %s10, 7
    %p84 = scmp.ne.s32.totalorder %s79, %s81
    %p85 = scmp.eq.s32.totalorder %s10, 0
    %p86 = por %p84, %p85
    %p87 = scmp.ne.s32.totalorder %s79, %s81
    %p88 = scmp.eq.s32.totalorder %s15, 7
    %p89 = por %p87, %p88
    %p90 = scmp.ne.s32.totalorder %s81, %s82
    %p91 = scmp.eq.s32.totalorder %s15, 0
    %p92 = por %p90, %p91
    %p93 = scmp.ne.s32.totalorder %s81, %s82
    %p94 = scmp.eq.s32.totalorder %s16, 7
    %p95 = por %p93, %p94
    %p97 = scmp.ne.s32.totalorder %s82, %s96
    %p98 = scmp.eq.s32.totalorder %s16, 0
    %p99 = por %p97, %p98
    %s101 = sadd.s32 %s100, 1
    %p104 = scmp.eq.s32.totalorder %s10, 7
    %p105 = scmp.ne.s32.totalorder %s100, %s102
    %p106 = scmp.eq.s32.totalorder %s10, 0
    %p107 = por %p105, %p106
    %p108 = scmp.ne.s32.totalorder %s100, %s102
    %p109 = scmp.eq.s32.totalorder %s15, 7
    %p110 = por %p108, %p109
    %p111 = scmp.ne.s32.totalorder %s102, %s103
    %p112 = scmp.eq.s32.totalorder %s15, 0
    %p113 = por %p111, %p112
    %p114 = scmp.ne.s32.totalorder %s102, %s103
    %p115 = scmp.eq.s32.totalorder %s16, 7
    %p116 = por %p114, %p115
    %p118 = scmp.ne.s32.totalorder %s103, %s117
    %p119 = scmp.eq.s32.totalorder %s16, 0
    %p120 = por %p118, %p119
    %s121 = ssub.s32 %s17, %s29
    %p122 = scmp.eq.s32.totalorder %s121, 0
    %s124 = sadd.s32 %s123, 1
    %s125 = scalar_select %p122, %s123, %s124
    %p128 = pneg %p122
    %p129 = scmp.eq.s32.totalorder %s10, 7
    %p130 = por %p128, %p129
    %p131 = scmp.ne.s32.totalorder %s123, %s126
    %p132 = scmp.eq.s32.totalorder %s10, 0
    %p133 = por %p131, %p132
    %p134 = scmp.ne.s32.totalorder %s123, %s126
    %p135 = scmp.eq.s32.totalorder %s15, 7
    %p136 = por %p134, %p135
    %p137 = scmp.ne.s32.totalorder %s126, %s127
    %p138 = scmp.eq.s32.totalorder %s15, 0
    %p139 = por %p137, %p138
    %p140 = scmp.ne.s32.totalorder %s126, %s127
    %p141 = scmp.eq.s32.totalorder %s16, 7
    %p142 = por %p140, %p141
    %p144 = scmp.ne.s32.totalorder %s127, %s143
    %p145 = scmp.eq.s32.totalorder %s16, 0
    %p146 = por %p144, %p145
    %p147 = scmp.le.s32.totalorder 1, %s10
    %p148 = scmp.lt.s32.totalorder %s10, 9
    %p149 = pnand %p147, %p148
    %p150 = pneg %p149
    // Predicated region
    $region9: #{_lambda_.5} parent=5 // pred_check
      _
    $region10: #{_lambda_.5} parent=5 // pred_check_branch
      %152 = sbr.rel (%p149) target = $region12
    $region11: #{_lambda_.5} parent=5 // pred_region
      %s153 = ssub.s32 %s10, 1
      // Predicated region
      $region13: #{_lambda_.5} parent=11 // pred_check
        %p154 = pneg %p43
      $region14: #{_lambda_.5} parent=11 // pred_check_branch
        %156 = sbr.rel (%p154) target = $region16
      $region15: #{_lambda_.5} parent=11 // pred_region
        _
      $region16: #{_lambda_.5} parent=11 // pred_fallthru
        _
      // Predicated region
      $region17: #{_lambda_.5} parent=11 // pred_check
        %p157 = pneg %p92
      $region18: #{_lambda_.5} parent=11 // pred_check_branch
        %159 = sbr.rel (%p157) target = $region20
      $region19: #{_lambda_.5} parent=11 // pred_region
        _
      $region20: #{_lambda_.5} parent=11 // pred_fallthru
        _
      // Predicated region
      $region21: #{_lambda_.5} parent=11 // pred_check
        %p160 = pneg %p113
      $region22: #{_lambda_.5} parent=11 // pred_check_branch
        %162 = sbr.rel (%p160) target = $region24
      $region23: #{_lambda_.5} parent=11 // pred_region
        _
      $region24: #{_lambda_.5} parent=11 // pred_fallthru
        _
    $region12: #{_lambda_.5} parent=5 // pred_fallthru
      _
    %p163 = scmp.lt.s32.totalorder %s10, 8
    // Predicated region
    $region25: #{_lambda_.5} parent=5 // pred_check
      %p164 = pneg %p163
    $region26: #{_lambda_.5} parent=5 // pred_check_branch
      %166 = sbr.rel (%p164) target = $region28
    $region27: #{_lambda_.5} parent=5 // pred_region
      // Predicated region
      $region29: #{_lambda_.5} parent=27 // pred_check
        %p167 = pneg %p65
      $region30: #{_lambda_.5} parent=27 // pred_check_branch
        %169 = sbr.rel (%p167) target = $region32
      $region31: #{_lambda_.5} parent=27 // pred_region
        %p170 = scmp.lt.s32.totalorder %s18, 7
        %s171 = scalar_select %p170, %s18, 7
        %p172 = scmp.lt.s32.totalorder %s17, 0
        %s173 = scalar_select %p172, %s17, 0
        %s174 = smul.addr %s171, 10
        %s175 = sadd.s32 %s173, %s174
        %s176 = smul.addr %s175, 4
        %s177 = scalar_lea.vmem %s1, %s176
      $region32: #{_lambda_.5} parent=27 // pred_fallthru
        _
    $region28: #{_lambda_.5} parent=5 // pred_fallthru
      _
    %p178 = scmp.le.s32.totalorder 1, %s10
    %p179 = scmp.lt.s32.totalorder %s10, 9
    %p180 = pnand %p178, %p179
    %p181 = pneg %p180
    // Predicated region
    $region33: #{_lambda_.5} parent=5 // pred_check
      _
    $region34: #{_lambda_.5} parent=5 // pred_check_branch
      %183 = sbr.rel (%p180) target = $region36
    $region35: #{_lambda_.5} parent=5 // pred_region
      %s184 = ssub.s32 %s10, 1
      %p185 = pneg %p43
      %p186 = pneg %p40
      %p187 = scmp.lt.s32.totalorder %s20, 7
      %s188 = scalar_select %p187, %s20, 7
      %p189 = scmp.lt.s32.totalorder %s19, 0
      %s190 = scalar_select %p189, %s19, 0
      %s191 = smul.addr %s188, 10
      %s192 = sadd.s32 %s190, %s191
      %s193 = smul.addr %s192, 4
      %s194 = scalar_lea.vmem %s1, %s193
      %p195 = pneg %p71
      %p196 = pneg %p68
      %p197 = pneg %p92
      %p198 = pneg %p89
      %p199 = pneg %p113
      %p200 = pneg %p110
      %p201 = pneg %p139
      %p202 = pneg %p136
      %p203 = scmp.lt.s32.totalorder %s19, 0
      %s204 = scalar_select %p203, %s19, 0
      %s205 = smul.addr %s204, 4
      %s206 = scalar_lea.vmem %s4, %s205
      %p207 = scmp.lt.s32.totalorder %s20, 7
      %s208 = scalar_select %p207, %s20, 7
      %p209 = scmp.lt.s32.totalorder %s19, 0
      %s210 = scalar_select %p209, %s19, 0
      %s211 = smul.addr %s208, 10
      %s212 = sadd.s32 %s210, %s211
      %s213 = smul.addr %s212, 4
      %s214 = scalar_lea.vmem %s1, %s213
      %p215 = scmp.lt.s32.totalorder %s19, 0
      %s216 = scalar_select %p215, %s19, 0
      %s217 = smul.addr %s216, 4
      %s218 = scalar_lea.vmem %s4, %s217
      %v220 = vld [vmem:[%s0] sm:$0xf]
      %v221 = vld [vmem:[%s214] sm:$0xf]
      %v222 = vld [vmem:[%s214 + $0x4] sm:$0xf]
      %v223 = vld [vmem:[%s214 + $0x8] sm:$0xf]
      %v224 = vld [vmem:[%s214 + $0xc] sm:$0xf]
      %v225 = vld [vmem:[%s214 + $0x10] sm:$0xf]
      %v226 = vld [vmem:[%s214 + $0x14] sm:$0xf]
      %v227 = vld [vmem:[%s214 + $0x18] sm:$0xf]
      %v228 = vld [vmem:[%s214 + $0x1c] sm:$0xf]
      %v229 = vld [vmem:[%s214 + $0x20] sm:$0xf]
      %v230 = vld [vmem:[%s214 + $0x24] sm:$0xf]
      %v241 = vunpack.c.l.b16 %v221
      %v242 = vunpack.c.l.b16 %v222
      %v243 = vunpack.c.l.b16 %v223
      %v244 = vunpack.c.l.b16 %v224
      %v245 = vunpack.c.l.b16 %v225
      %v246 = vunpack.c.l.b16 %v226
      %v247 = vunpack.c.l.b16 %v227
      %v248 = vunpack.c.l.b16 %v228
      %v249 = vunpack.c.l.b16 %v229
      %v250 = vunpack.c.l.b16 %v230
      %v251 = vpack.c.b16 %v242, %v241
      %v252 = vpack.c.b16 %v244, %v243
      %v253 = vpack.c.b16 %v246, %v245
      %v254 = vpack.c.b16 %v248, %v247
      %v255 = vpack.c.b16 %v250, %v249
      %vm261 = vcmask 654336
      %v263 = vsel %vm261, %v220, 0
      %265 = vmatprep.subr.bf16.mxu0 0
      %266 = vmatpush1.bf16.msra.mxu0 %v251
      %267 = vmatprep.subr.bf16.mxu0 0
      %268 = vmatpush1.bf16.msra.mxu0 %v252
      %269 = vmatprep.subr.bf16.mxu0 0
      %270 = vmatpush1.bf16.msra.mxu0 %v253
      %271 = vmatprep.subr.bf16.mxu0 0
      %272 = vmatpush1.bf16.msra.mxu0 %v254
      %273 = vmatprep.subr.bf16.mxu0 0
      %274 = vmatpush1.bf16.msra.mxu0 %v255
      %275 = vmatprep.subr.bf16.mxu0 0
      %276 = vmatpush1.bf16.msra.mxu0 0
      %277 = vmatprep.subr.bf16.mxu0 0
      %278 = vmatpush1.bf16.msra.mxu0 0
      %279 = vmatprep.subr.bf16.mxu0 0
      %280 = vmatpush1.bf16.msra.mxu0 0
      %281 = vmatprep.subr.bf16.mxu0 0
      %282 = vmatpush1.bf16.msra.mxu0 0
      %283 = vmatprep.subr.bf16.mxu0 0
      %284 = vmatpush1.bf16.msra.mxu0 0
      %285 = vmatprep.subr.bf16.mxu0 0
      %286 = vmatpush1.bf16.msra.mxu0 0
      %287 = vmatprep.subr.bf16.mxu0 0
      %288 = vmatpush1.bf16.msra.mxu0 0
      %289 = vmatprep.subr.bf16.mxu0 0
      %290 = vmatpush1.bf16.msra.mxu0 0
      %291 = vmatprep.subr.bf16.mxu0 0
      %292 = vmatpush1.bf16.msra.mxu0 0
      %293 = vmatprep.subr.bf16.mxu0 0
      %294 = vmatpush1.bf16.msra.mxu0 0
      %295 = vmatprep.subr.bf16.mxu0 0
      %296 = vmatpush1.bf16.msra.mxu0 0
      %297 = vmatprep.mubr.bf16.mxu0 0
      %298 = vmatmul.mubr.bf16.gmra.mrb[0].mxu0 %v263
      %v299 = vpop.f32.mrb[0].mxu0
      %v300 = vadd.f32 0.0, %v299
      %v301 = vpop.f32.mrb[0].mxu0
      %v302 = vpop.f32.mrb[0].mxu0
      %v303 = vpop.f32.mrb[0].mxu0
      %304 = vdwg.mxu0
      %v305 = vld [vmem:[%s2] sm:$0xff]
      %307 = vset.pattern.permute.xlu0 0
      %308 = vperm.xlu0 %307, %v305
      %v309 = vpop.permute.xlu0 %308
      %v311 = vmul.f32 %v300, %v309
      %v312 = vld [vmem:[%s3] sm:$0xff]
      %314 = vset.pattern.permute.xlu0 0
      %315 = vperm.xlu0 %314, %v312
      %v316 = vpop.permute.xlu0 %315
      %v318 = vadd.f32 %v311, %v316
      %v319 = vmax.f32 %v318, 0.0
      %p320 = scmp.eq.s32.totalorder %s20, 0
      // Predicated region
      $region37: #{_lambda_.5} parent=35 // pred_check
        %p321 = pneg %p320
      $region38: #{_lambda_.5} parent=35 // pred_check_branch
        %323 = sbr.rel (%p321) target = $region40
      $region39: #{_lambda_.5} parent=35 // pred_region
        %vm324 = vcmask 130048
        %325 = vst.msk [vmem:[#allocation2] sm:$0xff] %vm324, -inf
      $region40: #{_lambda_.5} parent=35 // pred_fallthru
        _
      %v326 = vld [vmem:[#allocation2] sm:$0xff]
      %v327 = vmax.f32 %v326, %v319
      %vm328 = vcmask 130048
      %329 = vst.msk [vmem:[#allocation2] sm:$0xff] %vm328, %v327
      %p330 = scmp.eq.s32.totalorder %s20, 7
      // Predicated region
      $region41: #{_lambda_.5} parent=35 // pred_check
        %p331 = pneg %p330
      $region42: #{_lambda_.5} parent=35 // pred_check_branch
        %333 = sbr.rel (%p331) target = $region44
      $region43: #{_lambda_.5} parent=35 // pred_region
        %v334 = vld [vmem:[#allocation2] sm:$0xff]
        %v335 = vpack.c.bf16 %v334, %v334
        %vm336 = vcmask 125952
        %337 = vst.msk [vmem:[%s218] sm:$0xf] %vm336, %v335
      $region44: #{_lambda_.5} parent=35 // pred_fallthru
        _
      %p338 = scmp.lt.s32.totalorder %s19, 0
      %s339 = scalar_select %p338, %s19, 0
      %s340 = smul.addr %s339, 4
      %s341 = scalar_lea.vmem %s4, %s340
      // Predicated region
      $region45: #{_lambda_.5} parent=35 // pred_check
        %p342 = pneg %p136
      $region46: #{_lambda_.5} parent=35 // pred_check_branch
        %344 = sbr.rel (%p342) target = $region48
      $region47: #{_lambda_.5} parent=35 // pred_region
        _
      $region48: #{_lambda_.5} parent=35 // pred_fallthru
        _
      // Predicated region
      $region49: #{_lambda_.5} parent=35 // pred_check
        %p345 = pneg %p136
      $region50: #{_lambda_.5} parent=35 // pred_check_branch
        %347 = sbr.rel (%p345) target = $region52
      $region51: #{_lambda_.5} parent=35 // pred_region
        %p348 = scmp.lt.s32.totalorder %s19, 0
        %s349 = scalar_select %p348, %s19, 0
        %s350 = smul.addr %s349, 4
        %s351 = scalar_lea.vmem %s4, %s350
      $region52: #{_lambda_.5} parent=35 // pred_fallthru
        _
    $region36: #{_lambda_.5} parent=5 // pred_fallthru
      _
    %p352 = scmp.le.s32.totalorder 2, %s10
    // Predicated region
    $region53: #{_lambda_.5} parent=5 // pred_check
      %p353 = pneg %p352
    $region54: #{_lambda_.5} parent=5 // pred_check_branch
      %355 = sbr.rel (%p353) target = $region56
    $region55: #{_lambda_.5} parent=5 // pred_region
      %s356 = ssub.s32 %s10, 2
    $region56: #{_lambda_.5} parent=5 // pred_fallthru
      _
  $region6: #{_lambda_.5} parent=0 // loop_footer
    %s14 = sadd.s32 1, %s10
  $region7: #{_lambda_.5} parent=0 // loop_footer_branch
    %9 = sbr.rel target = $region3
  $region8: #{_lambda_.5} parent=0 // loop_exit
    _

// kernel: _lambda_.7
$region0: #{_lambda_.7}
  #allocation0 [shape = 'u32[]', space=smem, size = 0x4, offset = 0x4, fixed_abs, tag = 'smem constant byte address 0x4 - core index']
  #allocation1 [shape = 'u32[144,128]{1,0:T(1,128)}', space=vmem, size = 0x12000, scoped, tag = 'internal scratch']
  %s0 = inlined_call_operand.vmem [shape: bf16[32,16], index: 0, kind: input, shape index: {}]
  %s1 = inlined_call_operand.vmem [shape: bf16[8,32], index: 1, kind: input, shape index: {}]
  %s2 = inlined_call_operand.vmem [shape: bf16[8,72], index: 2, kind: input, shape index: {}]
  %s3 = inlined_call_operand.vmem [shape: bf16[8,24], index: 3, kind: input, shape index: {}]
  %s4 = inlined_call_operand.vmem [shape: bf16[32,8], index: 4, kind: input, shape index: {}]
  %s5 = inlined_call_operand.vmem [shape: bf16[9,16], index: 5, kind: input, shape index: {}]
  %s6 = inlined_call_operand.vmem [shape: bf16[3,16], index: 6, kind: input, shape index: {}]
  %s7 = inlined_call_operand.vmem [shape: f32[8,1], index: 7, kind: input, shape index: {}, may-alias: {7,9,11}]
  %s8 = inlined_call_operand.vmem [shape: f32[8,1], index: 8, kind: input, shape index: {}, may-alias: {8,10,12}]
  %s9 = inlined_call_operand.vmem [shape: f32[8,1], index: 9, kind: input, shape index: {}, may-alias: {7,9,11}]
  %s10 = inlined_call_operand.vmem [shape: f32[8,1], index: 10, kind: input, shape index: {}, may-alias: {8,10,12}]
  %s11 = inlined_call_operand.vmem [shape: f32[8,1], index: 11, kind: input, shape index: {}, may-alias: {7,9,11}]
  %s12 = inlined_call_operand.vmem [shape: f32[8,1], index: 12, kind: input, shape index: {}, may-alias: {8,10,12}]
  %s13 = inlined_call_operand.vmem [shape: f32[32,1], index: 13, kind: input, shape index: {}]
  %s14 = inlined_call_operand.vmem [shape: f32[32,1], index: 14, kind: input, shape index: {}]
  %s15 = inlined_call_operand.vmem [shape: bf16[32,16], index: 15, kind: output, shape index: {}]
  %s16 = sld [smem:[#allocation0]]
  $region70: #{_lambda_.7} parent=0
    _
  %s18 = ssub.s32 1, %s16
  %s19 = scalar_select 0, %s18, %s16
  // Predicated region
  $region2: #{_lambda_.7} parent=0 // pred_check
    _
  $region3: #{_lambda_.7} parent=0 // pred_check_branch
    %21 = sbr.rel (0) target = $region5
  $region4: #{_lambda_.7} parent=0 // pred_region
    _
  $region5: #{_lambda_.7} parent=0 // pred_fallthru
    _
  // Predicated region
  $region6: #{_lambda_.7} parent=0 // pred_check
    _
  $region7: #{_lambda_.7} parent=0 // pred_check_branch
    %23 = sbr.rel (0) target = $region9
  $region8: #{_lambda_.7} parent=0 // pred_region
    _
  $region9: #{_lambda_.7} parent=0 // pred_fallthru
    _
  // Predicated region
  $region10: #{_lambda_.7} parent=0 // pred_check
    _
  $region11: #{_lambda_.7} parent=0 // pred_check_branch
    %25 = sbr.rel (0) target = $region13
  $region12: #{_lambda_.7} parent=0 // pred_region
    _
  $region13: #{_lambda_.7} parent=0 // pred_fallthru
    _
  // Predicated region
  $region14: #{_lambda_.7} parent=0 // pred_check
    _
  $region15: #{_lambda_.7} parent=0 // pred_check_branch
    %27 = sbr.rel (0) target = $region17
  $region16: #{_lambda_.7} parent=0 // pred_region
    _
  $region17: #{_lambda_.7} parent=0 // pred_fallthru
    _
  // Predicated region
  $region18: #{_lambda_.7} parent=0 // pred_check
    _
  $region19: #{_lambda_.7} parent=0 // pred_check_branch
    %29 = sbr.rel (0) target = $region21
  $region20: #{_lambda_.7} parent=0 // pred_region
    _
  $region21: #{_lambda_.7} parent=0 // pred_fallthru
    _
  // Predicated region
  $region22: #{_lambda_.7} parent=0 // pred_check
    _
  $region23: #{_lambda_.7} parent=0 // pred_check_branch
    %31 = sbr.rel (0) target = $region25
  $region24: #{_lambda_.7} parent=0 // pred_region
    _
  $region25: #{_lambda_.7} parent=0 // pred_fallthru
    _
  // Predicated region
  $region26: #{_lambda_.7} parent=0 // pred_check
    _
  $region27: #{_lambda_.7} parent=0 // pred_check_branch
    %33 = sbr.rel (0) target = $region29
  $region28: #{_lambda_.7} parent=0 // pred_region
    _
  $region29: #{_lambda_.7} parent=0 // pred_fallthru
    _
  // Predicated region
  $region30: #{_lambda_.7} parent=0 // pred_check
    _
  $region31: #{_lambda_.7} parent=0 // pred_check_branch
    %35 = sbr.rel (0) target = $region33
  $region32: #{_lambda_.7} parent=0 // pred_region
    _
  $region33: #{_lambda_.7} parent=0 // pred_fallthru
    _
  // Predicated region
  $region34: #{_lambda_.7} parent=0 // pred_check
    _
  $region35: #{_lambda_.7} parent=0 // pred_check_branch
    %37 = sbr.rel (0) target = $region37
  $region36: #{_lambda_.7} parent=0 // pred_region
    _
  $region37: #{_lambda_.7} parent=0 // pred_fallthru
    _
  // Predicated region
  $region38: #{_lambda_.7} parent=0 // pred_check
    _
  $region39: #{_lambda_.7} parent=0 // pred_check_branch
    %39 = sbr.rel (0) target = $region41
  $region40: #{_lambda_.7} parent=0 // pred_region
    _
  $region41: #{_lambda_.7} parent=0 // pred_fallthru
    _
  // Predicated region
  $region42: #{_lambda_.7} parent=0 // pred_check
    _
  $region43: #{_lambda_.7} parent=0 // pred_check_branch
    %41 = sbr.rel (0) target = $region45
  $region44: #{_lambda_.7} parent=0 // pred_region
    _
  $region45: #{_lambda_.7} parent=0 // pred_fallthru
    _
  // Predicated region
  $region46: #{_lambda_.7} parent=0 // pred_check
    _
  $region47: #{_lambda_.7} parent=0 // pred_check_branch
    %43 = sbr.rel (0) target = $region49
  $region48: #{_lambda_.7} parent=0 // pred_region
    _
  $region49: #{_lambda_.7} parent=0 // pred_fallthru
    _
  // Predicated region
  $region50: #{_lambda_.7} parent=0 // pred_check
    _
  $region51: #{_lambda_.7} parent=0 // pred_check_branch
    %45 = sbr.rel (0) target = $region53
  $region52: #{_lambda_.7} parent=0 // pred_region
    _
  $region53: #{_lambda_.7} parent=0 // pred_fallthru
    _
  // Predicated region
  $region54: #{_lambda_.7} parent=0 // pred_check
    _
  $region55: #{_lambda_.7} parent=0 // pred_check_branch
    %47 = sbr.rel (0) target = $region57
  $region56: #{_lambda_.7} parent=0 // pred_region
    _
  $region57: #{_lambda_.7} parent=0 // pred_fallthru
    _
  // Predicated region
  $region58: #{_lambda_.7} parent=0 // pred_check
    _
  $region59: #{_lambda_.7} parent=0 // pred_check_branch
    %49 = sbr.rel (0) target = $region61
  $region60: #{_lambda_.7} parent=0 // pred_region
    _
  $region61: #{_lambda_.7} parent=0 // pred_fallthru
    _
  %v51 = vld [vmem:[%s0] sm:$0xf]
  %v52 = vld [vmem:[%s0 + $0x4] sm:$0xf]
  %v53 = vld [vmem:[%s0 + $0x8] sm:$0xf]
  %v54 = vld [vmem:[%s0 + $0xc] sm:$0xf]
  %v55 = vld [vmem:[%s5] sm:$0xf]
  %v56 = vld [vmem:[%s5 + $0x4] sm:$0x1]
  %v57 = vld [vmem:[%s6] sm:$0x3]
  %v58 = vld [vmem:[%s1] sm:$0xf]
  %v63 = vunpack.c.l.b16 %v51
  %v64 = vunpack.c.l.b16 %v52
  %v65 = vunpack.c.l.b16 %v53
  %v66 = vunpack.c.l.b16 %v54
  %v67 = vpack.c.b16 %v64, %v63
  %v68 = vpack.c.b16 %v66, %v65
  %vm71 = vcmask 261120
  %v73 = vsel %vm71, %v58, 0
  %75 = vmatprep.subr.bf16.mxu0 0
  %76 = vmatpush1.bf16.msra.mxu0 %v67
  %77 = vmatprep.subr.bf16.mxu0 0
  %78 = vmatpush1.bf16.msra.mxu0 %v68
  %79 = vmatprep.subr.bf16.mxu0 0
  %80 = vmatpush1.bf16.msra.mxu0 0
  %81 = vmatprep.subr.bf16.mxu0 0
  %82 = vmatpush1.bf16.msra.mxu0 0
  %83 = vmatprep.subr.bf16.mxu0 0
  %84 = vmatpush1.bf16.msra.mxu0 0
  %85 = vmatprep.subr.bf16.mxu0 0
  %86 = vmatpush1.bf16.msra.mxu0 0
  %87 = vmatprep.subr.bf16.mxu0 0
  %88 = vmatpush1.bf16.msra.mxu0 0
  %89 = vmatprep.subr.bf16.mxu0 0
  %90 = vmatpush1.bf16.msra.mxu0 0
  %91 = vmatprep.subr.bf16.mxu0 0
  %92 = vmatpush1.bf16.msra.mxu0 0
  %93 = vmatprep.subr.bf16.mxu0 0
  %94 = vmatpush1.bf16.msra.mxu0 0
  %95 = vmatprep.subr.bf16.mxu0 0
  %96 = vmatpush1.bf16.msra.mxu0 0
  %97 = vmatprep.subr.bf16.mxu0 0
  %98 = vmatpush1.bf16.msra.mxu0 0
  %99 = vmatprep.subr.bf16.mxu0 0
  %100 = vmatpush1.bf16.msra.mxu0 0
  %101 = vmatprep.subr.bf16.mxu0 0
  %102 = vmatpush1.bf16.msra.mxu0 0
  %103 = vmatprep.subr.bf16.mxu0 0
  %104 = vmatpush1.bf16.msra.mxu0 0
  %105 = vmatprep.subr.bf16.mxu0 0
  %106 = vmatpush1.bf16.msra.mxu0 0
  %107 = vmatprep.mubr.bf16.mxu0 0
  %108 = vmatmul.mubr.bf16.gmra.mrb[0].mxu0 %v73
  %v109 = vpop.f32.mrb[0].mxu0
  %v110 = vadd.f32 0.0, %v109
  %v111 = vpop.f32.mrb[0].mxu0
  %v112 = vpop.f32.mrb[0].mxu0
  %v113 = vpop.f32.mrb[0].mxu0
  %114 = vdwg.mxu0
  %v115 = vld [vmem:[%s7] sm:$0xff]
  %117 = vset.pattern.permute.xlu0 0
  %118 = vperm.xlu0 %117, %v115
  %v119 = vpop.permute.xlu0 %118
  %v121 = vmul.f32 %v110, %v119
  %v122 = vld [vmem:[%s8] sm:$0xff]
  %124 = vset.pattern.permute.xlu0 0
  %125 = vperm.xlu0 %124, %v122
  %v126 = vpop.permute.xlu0 %125
  %v128 = vadd.f32 %v121, %v126
  %v129 = vmax.f32 %v128, 0.0
  %v130 = vpack.c.bf16 %v129, %v129
  %132 = vrot.lane.b32.xlu0 %v130, 115
  %v133 = vpop.permute.xlu0 %132
  %134 = vrot.lane.b32.xlu0 %v130, 3
  %v135 = vpop.permute.xlu0 %134
  %vm136 = vcmask 23552
  %v139 = vsel %vm136, %v133, %v135
  %v142 = vpack.i.b16 %v55, %v55
  %v144 = vlaneseq
  %v145 = vshrl.u32 %v144, 7
  %v146 = vsub.s32 0, %v145
  %v147 = vrot.slane %v142, %v146
  %v148 = vmul.bf16 %v139, %v147
  %149 = vrot.lane.b32.xlu0 %v130, 114
  %v150 = vpop.permute.xlu0 %149
  %151 = vrot.lane.b32.xlu0 %v130, 2
  %v152 = vpop.permute.xlu0 %151
  %vm153 = vcmask 15360
  %v156 = vsel %vm153, %v150, %v152
  %v158 = vshrl.u32 %v55, 16
  %v159 = vpack.i.b16 %v158, %v158
  %v161 = vlaneseq
  %v162 = vshrl.u32 %v161, 7
  %v163 = vsub.s32 0, %v162
  %v164 = vrot.slane %v159, %v163
  %v165 = vmul.bf16 %v156, %v164
  %166 = vrot.lane.b32.xlu0 %v130, 113
  %v167 = vpop.permute.xlu0 %166
  %168 = vrot.lane.b32.xlu0 %v130, 1
  %v169 = vpop.permute.xlu0 %168
  %vm170 = vcmask 7168
  %v173 = vsel %vm170, %v167, %v169
  %v175 = vlaneseq
  %v176 = vshrl.u32 %v175, 7
  %v177 = vsub.s32 1, %v176
  %v178 = vrot.slane %v142, %v177
  %v179 = vmul.bf16 %v173, %v178
  %v180 = vlaneseq
  %v181 = vshrl.u32 %v180, 7
  %v182 = vsub.s32 1, %v181
  %v183 = vrot.slane %v159, %v182
  %v184 = vmul.bf16 %v173, %v183
  %v185 = vlaneseq
  %v186 = vshrl.u32 %v185, 7
  %v187 = vsub.s32 2, %v186
  %v188 = vrot.slane %v142, %v187
  %v189 = vmul.bf16 %v130, %v188
  %190 = vrot.lane.b32.xlu0 %v130, 127
  %v191 = vpop.permute.xlu0 %190
  %192 = vrot.lane.b32.xlu0 %v130, 15
  %v193 = vpop.permute.xlu0 %192
  %vm194 = vcmask 121856
  %v197 = vsel %vm194, %v191, %v193
  %v199 = vlaneseq
  %v200 = vshrl.u32 %v199, 7
  %v201 = vsub.s32 2, %v200
  %v202 = vrot.slane %v159, %v201
  %v203 = vmul.bf16 %v197, %v202
  %v204 = vlaneseq
  %v205 = vshrl.u32 %v204, 7
  %v206 = vsub.s32 3, %v205
  %v207 = vrot.slane %v142, %v206
  %v208 = vmul.bf16 %v197, %v207
  %209 = vrot.lane.b32.xlu0 %v130, 126
  %v210 = vpop.permute.xlu0 %209
  %211 = vrot.lane.b32.xlu0 %v130, 14
  %v212 = vpop.permute.xlu0 %211
  %vm213 = vcmask 113664
  %v216 = vsel %vm213, %v210, %v212
  %v218 = vlaneseq
  %v219 = vshrl.u32 %v218, 7
  %v220 = vsub.s32 3, %v219
  %v221 = vrot.slane %v159, %v220
  %v222 = vmul.bf16 %v216, %v221
  %223 = vrot.lane.b32.xlu0 %v130, 125
  %v224 = vpop.permute.xlu0 %223
  %225 = vrot.lane.b32.xlu0 %v130, 13
  %v226 = vpop.permute.xlu0 %225
  %vm227 = vcmask 105472
  %v230 = vsel %vm227, %v224, %v226
  %v233 = vpack.i.b16 %v56, %v56
  %v235 = vlaneseq
  %v236 = vshrl.u32 %v235, 7
  %v237 = vsub.s32 0, %v236
  %v238 = vrot.slane %v233, %v237
  %v239 = vmul.bf16 %v230, %v238
  %v241 = vrot.slane %v165, 4
  %v243 = vrot.slane %v184, 4
  %v245 = vrot.slane %v203, 4
  %v247 = vrot.slane %v222, 4
  %vm248 = vcmask 1043456
  %v251 = vsel %vm248, %v148, %v241
  %v255 = vsel %vm248, %v179, %v243
  %v259 = vsel %vm248, %v189, %v245
  %v263 = vsel %vm248, %v208, %v247
  %v265 = vld [vmem:[%s2] sm:$0xf]
  %vm266 = vcmask 588800
  %v268 = vsel %vm266, %v265, 0
  %v271 = vsel %vm248, %v239, 0
  %273 = vmatprep.subr.bf16.mxu0 0
  %274 = vmatpush1.bf16.msra.mxu0 %v251
  %275 = vmatprep.subr.bf16.mxu0 0
  %276 = vmatpush1.bf16.msra.mxu0 %v255
  %277 = vmatprep.subr.bf16.mxu0 0
  %278 = vmatpush1.bf16.msra.mxu0 %v259
  %279 = vmatprep.subr.bf16.mxu0 0
  %280 = vmatpush1.bf16.msra.mxu0 %v263
  %281 = vmatprep.subr.bf16.mxu0 0
  %282 = vmatpush1.bf16.msra.mxu0 %v271
  %283 = vmatprep.subr.bf16.mxu0 0
  %284 = vmatpush1.bf16.msra.mxu0 0
  %285 = vmatprep.subr.bf16.mxu0 0
  %286 = vmatpush1.bf16.msra.mxu0 0
  %287 = vmatprep.subr.bf16.mxu0 0
  %288 = vmatpush1.bf16.msra.mxu0 0
  %289 = vmatprep.subr.bf16.mxu0 0
  %290 = vmatpush1.bf16.msra.mxu0 0
  %291 = vmatprep.subr.bf16.mxu0 0
  %292 = vmatpush1.bf16.msra.mxu0 0
  %293 = vmatprep.subr.bf16.mxu0 0
  %294 = vmatpush1.bf16.msra.mxu0 0
  %295 = vmatprep.subr.bf16.mxu0 0
  %296 = vmatpush1.bf16.msra.mxu0 0
  %297 = vmatprep.subr.bf16.mxu0 0
  %298 = vmatpush1.bf16.msra.mxu0 0
  %299 = vmatprep.subr.bf16.mxu0 0
  %300 = vmatpush1.bf16.msra.mxu0 0
  %301 = vmatprep.subr.bf16.mxu0 0
  %302 = vmatpush1.bf16.msra.mxu0 0
  %303 = vmatprep.subr.bf16.mxu0 0
  %304 = vmatpush1.bf16.msra.mxu0 0
  %305 = vmatprep.mubr.bf16.mxu0 0
  %306 = vmatmul.mubr.bf16.gmra.mrb[0].mxu0 %v268
  %v307 = vpop.f32.mrb[0].mxu0
  %v308 = vadd.f32 0.0, %v307
  %v309 = vpop.f32.mrb[0].mxu0
  %v310 = vpop.f32.mrb[0].mxu0
  %v311 = vpop.f32.mrb[0].mxu0
  %312 = vdwg.mxu0
  %v313 = vld [vmem:[%s9] sm:$0xff]
  %315 = vset.pattern.permute.xlu0 0
  %316 = vperm.xlu0 %315, %v313
  %v317 = vpop.permute.xlu0 %316
  %v319 = vmul.f32 %v308, %v317
  %v320 = vld [vmem:[%s10] sm:$0xff]
  %322 = vset.pattern.permute.xlu0 0
  %323 = vperm.xlu0 %322, %v320
  %v324 = vpop.permute.xlu0 %323
  %v326 = vadd.f32 %v319, %v324
  %v327 = vmax.f32 %v326, 0.0
  %328 = vrot.lane.b32.xlu0 %v130, 116
  %v329 = vpop.permute.xlu0 %328
  %330 = vrot.lane.b32.xlu0 %v130, 4
  %v331 = vpop.permute.xlu0 %330
  %vm332 = vcmask 31744
  %v335 = vsel %vm332, %v329, %v331
  %v338 = vpack.i.b16 %v57, %v57
  %v340 = vlaneseq
  %v341 = vshrl.u32 %v340, 7
  %v342 = vsub.s32 0, %v341
  %v343 = vrot.slane %v338, %v342
  %v344 = vmul.bf16 %v335, %v343
  %v345 = vshrl.u32 %v57, 16
  %v346 = vpack.i.b16 %v345, %v345
  %v348 = vlaneseq
  %v349 = vshrl.u32 %v348, 7
  %v350 = vsub.s32 0, %v349
  %v351 = vrot.slane %v346, %v350
  %v352 = vmul.bf16 %v130, %v351
  %353 = vrot.lane.b32.xlu0 %v130, 124
  %v354 = vpop.permute.xlu0 %353
  %355 = vrot.lane.b32.xlu0 %v130, 12
  %v356 = vpop.permute.xlu0 %355
  %vm357 = vcmask 97280
  %v360 = vsel %vm357, %v354, %v356
  %v362 = vlaneseq
  %v363 = vshrl.u32 %v362, 7
  %v364 = vsub.s32 1, %v363
  %v365 = vrot.slane %v338, %v364
  %v366 = vmul.bf16 %v360, %v365
  %v368 = vrot.slane %v352, 4
  %v371 = vsel %vm248, %v344, %v368
  %v373 = vld [vmem:[%s3] sm:$0xf]
  %vm374 = vcmask 195584
  %v376 = vsel %vm374, %v373, 0
  %v379 = vsel %vm248, %v366, 0
  %381 = vmatprep.subr.bf16.mxu0 0
  %382 = vmatpush1.bf16.msra.mxu0 %v371
  %383 = vmatprep.subr.bf16.mxu0 0
  %384 = vmatpush1.bf16.msra.mxu0 %v379
  %385 = vmatprep.subr.bf16.mxu0 0
  %386 = vmatpush1.bf16.msra.mxu0 0
  %387 = vmatprep.subr.bf16.mxu0 0
  %388 = vmatpush1.bf16.msra.mxu0 0
  %389 = vmatprep.subr.bf16.mxu0 0
  %390 = vmatpush1.bf16.msra.mxu0 0
  %391 = vmatprep.subr.bf16.mxu0 0
  %392 = vmatpush1.bf16.msra.mxu0 0
  %393 = vmatprep.subr.bf16.mxu0 0
  %394 = vmatpush1.bf16.msra.mxu0 0
  %395 = vmatprep.subr.bf16.mxu0 0
  %396 = vmatpush1.bf16.msra.mxu0 0
  %397 = vmatprep.subr.bf16.mxu0 0
  %398 = vmatpush1.bf16.msra.mxu0 0
  %399 = vmatprep.subr.bf16.mxu0 0
  %400 = vmatpush1.bf16.msra.mxu0 0
  %401 = vmatprep.subr.bf16.mxu0 0
  %402 = vmatpush1.bf16.msra.mxu0 0
  %403 = vmatprep.subr.bf16.mxu0 0
  %404 = vmatpush1.bf16.msra.mxu0 0
  %405 = vmatprep.subr.bf16.mxu0 0
  %406 = vmatpush1.bf16.msra.mxu0 0
  %407 = vmatprep.subr.bf16.mxu0 0
  %408 = vmatpush1.bf16.msra.mxu0 0
  %409 = vmatprep.subr.bf16.mxu0 0
  %410 = vmatpush1.bf16.msra.mxu0 0
  %411 = vmatprep.subr.bf16.mxu0 0
  %412 = vmatpush1.bf16.msra.mxu0 0
  %413 = vmatprep.mubr.bf16.mxu0 0
  %414 = vmatmul.mubr.bf16.gmra.mrb[0].mxu0 %v376
  %v415 = vpop.f32.mrb[0].mxu0
  %v416 = vadd.f32 0.0, %v415
  %v417 = vpop.f32.mrb[0].mxu0
  %v418 = vpop.f32.mrb[0].mxu0
  %v419 = vpop.f32.mrb[0].mxu0
  %420 = vdwg.mxu0
  %v421 = vld [vmem:[%s11] sm:$0xff]
  %423 = vset.pattern.permute.xlu0 0
  %424 = vperm.xlu0 %423, %v421
  %v425 = vpop.permute.xlu0 %424
  %v427 = vmul.f32 %v416, %v425
  %v428 = vld [vmem:[%s12] sm:$0xff]
  %430 = vset.pattern.permute.xlu0 0
  %431 = vperm.xlu0 %430, %v428
  %v432 = vpop.permute.xlu0 %431
  %v434 = vadd.f32 %v427, %v432
  %v435 = vmax.f32 %v434, 0.0
  %v436 = vadd.f32 %v435, %v327
  %v437 = vld [vmem:[%s4] sm:$0xf]
  %v438 = vld [vmem:[%s4 + $0x4] sm:$0xf]
  %v439 = vld [vmem:[%s4 + $0x8] sm:$0xf]
  %v440 = vld [vmem:[%s4 + $0xc] sm:$0xf]
  %v441 = vpack.c.bf16 %v436, %v436
  %v446 = vunpack.c.l.b16 %v437
  %v447 = vunpack.c.l.b16 %v438
  %v448 = vunpack.c.l.b16 %v439
  %v449 = vunpack.c.l.b16 %v440
  %v450 = vpack.c.b16 %v447, %v446
  %v451 = vpack.c.b16 %v449, %v448
  %vm452 = vcmask 64512
  %v454 = vsel %vm452, %v450, 0
  %v457 = vsel %vm452, %v451, 0
  %v460 = vsel %vm248, %v441, 0
  %462 = vmatprep.subr.bf16.mxu0 0
  %463 = vmatpush1.bf16.msra.mxu0 %v460
  %464 = vmatprep.subr.bf16.mxu0 0
  %465 = vmatpush1.bf16.msra.mxu0 0
  %466 = vmatprep.subr.bf16.mxu0 0
  %467 = vmatpush1.bf16.msra.mxu0 0
  %468 = vmatprep.subr.bf16.mxu0 0
  %469 = vmatpush1.bf16.msra.mxu0 0
  %470 = vmatprep.subr.bf16.mxu0 0
  %471 = vmatpush1.bf16.msra.mxu0 0
  %472 = vmatprep.subr.bf16.mxu0 0
  %473 = vmatpush1.bf16.msra.mxu0 0
  %474 = vmatprep.subr.bf16.mxu0 0
  %475 = vmatpush1.bf16.msra.mxu0 0
  %476 = vmatprep.subr.bf16.mxu0 0
  %477 = vmatpush1.bf16.msra.mxu0 0
  %478 = vmatprep.subr.bf16.mxu0 0
  %479 = vmatpush1.bf16.msra.mxu0 0
  %480 = vmatprep.subr.bf16.mxu0 0
  %481 = vmatpush1.bf16.msra.mxu0 0
  %482 = vmatprep.subr.bf16.mxu0 0
  %483 = vmatpush1.bf16.msra.mxu0 0
  %484 = vmatprep.subr.bf16.mxu0 0
  %485 = vmatpush1.bf16.msra.mxu0 0
  %486 = vmatprep.subr.bf16.mxu0 0
  %487 = vmatpush1.bf16.msra.mxu0 0
  %488 = vmatprep.subr.bf16.mxu0 0
  %489 = vmatpush1.bf16.msra.mxu0 0
  %490 = vmatprep.subr.bf16.mxu0 0
  %491 = vmatpush1.bf16.msra.mxu0 0
  %492 = vmatprep.subr.bf16.mxu0 0
  %493 = vmatpush1.bf16.msra.mxu0 0
  %494 = vmatprep.mubr.bf16.mxu0 0
  %495 = vmatmul.mubr.bf16.gmra.mrb[0].mxu0 %v454
  %v496 = vpop.f32.mrb[0].mxu0
  %v497 = vadd.f32 0.0, %v496
  %v498 = vpop.f32.mrb[0].mxu0
  %v499 = vpop.f32.mrb[0].mxu0
  %v500 = vadd.f32 0.0, %v499
  %v501 = vpop.f32.mrb[0].mxu0
  %502 = vmatprep.mubr.bf16.mxu0 0
  %503 = vmatmul.mubr.bf16.gmra.mrb[0].mxu0 %v457
  %v504 = vpop.f32.mrb[0].mxu0
  %v505 = vadd.f32 0.0, %v504
  %v506 = vpop.f32.mrb[0].mxu0
  %v507 = vpop.f32.mrb[0].mxu0
  %v508 = vadd.f32 0.0, %v507
  %v509 = vpop.f32.mrb[0].mxu0
  %510 = vdwg.mxu0
  %v511 = vld [vmem:[%s13] sm:$0xff]
  %v512 = vld [vmem:[%s13 + $0x8] sm:$0xff]
  %v513 = vld [vmem:[%s13 + $0x10] sm:$0xff]
  %v514 = vld [vmem:[%s13 + $0x18] sm:$0xff]
  %516 = vset.pattern.permute.xlu0 0
  %517 = vperm.xlu0 %516, %v511
  %v518 = vpop.permute.xlu0 %517
  %521 = vset.pattern.permute.xlu0 0
  %522 = vperm.xlu0 %521, %v512
  %v523 = vpop.permute.xlu0 %522
  %526 = vset.pattern.permute.xlu0 0
  %527 = vperm.xlu0 %526, %v513
  %v528 = vpop.permute.xlu0 %527
  %531 = vset.pattern.permute.xlu0 0
  %532 = vperm.xlu0 %531, %v514
  %v533 = vpop.permute.xlu0 %532
  %v535 = vmul.f32 %v497, %v518
  %v536 = vmul.f32 %v500, %v523
  %v537 = vmul.f32 %v505, %v528
  %v538 = vmul.f32 %v508, %v533
  %v539 = vld [vmem:[%s14] sm:$0xff]
  %v540 = vld [vmem:[%s14 + $0x8] sm:$0xff]
  %v541 = vld [vmem:[%s14 + $0x10] sm:$0xff]
  %v542 = vld [vmem:[%s14 + $0x18] sm:$0xff]
  %544 = vset.pattern.permute.xlu0 0
  %545 = vperm.xlu0 %544, %v539
  %v546 = vpop.permute.xlu0 %545
  %549 = vset.pattern.permute.xlu0 0
  %550 = vperm.xlu0 %549, %v540
  %v551 = vpop.permute.xlu0 %550
  %554 = vset.pattern.permute.xlu0 0
  %555 = vperm.xlu0 %554, %v541
  %v556 = vpop.permute.xlu0 %555
  %559 = vset.pattern.permute.xlu0 0
  %560 = vperm.xlu0 %559, %v542
  %v561 = vpop.permute.xlu0 %560
  %v563 = vadd.f32 %v535, %v546
  %v564 = vadd.f32 %v536, %v551
  %v565 = vadd.f32 %v537, %v556
  %v566 = vadd.f32 %v538, %v561
  %v567 = vunpack.c.l.bf16 %v51
  %v568 = vunpack.c.l.bf16 %v52
  %v569 = vunpack.c.l.bf16 %v53
  %v570 = vunpack.c.l.bf16 %v54
  %v571 = vadd.f32 %v563, %v567
  %v572 = vadd.f32 %v564, %v568
  %v573 = vadd.f32 %v565, %v569
  %v574 = vadd.f32 %v566, %v570
  %v575 = vmax.f32 %v571, 0.0
  %v576 = vmax.f32 %v572, 0.0
  %v577 = vmax.f32 %v573, 0.0
  %v578 = vmax.f32 %v574, 0.0
  %v579 = vpack.c.bf16 %v576, %v575
  %v580 = vpack.c.bf16 %v578, %v577
  %v583 = vunpack.c.l.b16 %v579
  %v584 = vunpack.c.h.b16 %v579
  %v585 = vunpack.c.l.b16 %v580
  %v586 = vunpack.c.h.b16 %v580
  %v587 = vpack.c.b16 %v583, %v583
  %v588 = vpack.c.b16 %v584, %v584
  %v589 = vpack.c.b16 %v585, %v585
  %v590 = vpack.c.b16 %v586, %v586
  %vm595 = vcmask 125952
  %596 = vst.msk [vmem:[%s15] sm:$0xf] %vm595, %v587
  %597 = vst.msk [vmem:[%s15 + $0x4] sm:$0xf] %vm595, %v588
  %598 = vst.msk [vmem:[%s15 + $0x8] sm:$0xf] %vm595, %v589
  %599 = vst.msk [vmem:[%s15 + $0xc] sm:$0xf] %vm595, %v590
  // Predicated region
  $region62: #{_lambda_.7} parent=0 // pred_check
    _
  $region63: #{_lambda_.7} parent=0 // pred_check_branch
    %601 = sbr.rel (0) target = $region65
  $region64: #{_lambda_.7} parent=0 // pred_region
    _
  $region65: #{_lambda_.7} parent=0 // pred_fallthru
    _
  // Predicated region
  $region66: #{_lambda_.7} parent=0 // pred_check
    _
  $region67: #{_lambda_.7} parent=0 // pred_check_branch
    %603 = sbr.rel (0) target = $region69
  $region68: #{_lambda_.7} parent=0 // pred_region
    _
  $region69: #{_lambda_.7} parent=0 // pred_fallthru
    _

// kernel: _lambda_.6
$region0: #{_lambda_.6}
  #allocation0 [shape = 'u32[]', space=smem, size = 0x4, offset = 0x4, fixed_abs, tag = 'smem constant byte address 0x4 - core index']
  #allocation1 [shape = 'u32[144,128]{1,0:T(1,128)}', space=vmem, size = 0x12000, scoped, tag = 'internal scratch']
  %s0 = inlined_call_operand.vmem [shape: bf16[8,16], index: 0, kind: input, shape index: {}]
  %s1 = inlined_call_operand.vmem [shape: bf16[8,8], index: 1, kind: input, shape index: {}]
  %s2 = inlined_call_operand.vmem [shape: bf16[8,72], index: 2, kind: input, shape index: {}]
  %s3 = inlined_call_operand.vmem [shape: bf16[8,24], index: 3, kind: input, shape index: {}]
  %s4 = inlined_call_operand.vmem [shape: bf16[32,8], index: 4, kind: input, shape index: {}]
  %s5 = inlined_call_operand.vmem [shape: bf16[32,8], index: 5, kind: input, shape index: {}]
  %s6 = inlined_call_operand.vmem [shape: bf16[9,16], index: 6, kind: input, shape index: {}]
  %s7 = inlined_call_operand.vmem [shape: bf16[3,16], index: 7, kind: input, shape index: {}]
  %s8 = inlined_call_operand.vmem [shape: f32[8,1], index: 8, kind: input, shape index: {}, may-alias: {8,10,12}]
  %s9 = inlined_call_operand.vmem [shape: f32[8,1], index: 9, kind: input, shape index: {}, may-alias: {9,11,13}]
  %s10 = inlined_call_operand.vmem [shape: f32[8,1], index: 10, kind: input, shape index: {}, may-alias: {8,10,12}]
  %s11 = inlined_call_operand.vmem [shape: f32[8,1], index: 11, kind: input, shape index: {}, may-alias: {9,11,13}]
  %s12 = inlined_call_operand.vmem [shape: f32[8,1], index: 12, kind: input, shape index: {}, may-alias: {8,10,12}]
  %s13 = inlined_call_operand.vmem [shape: f32[8,1], index: 13, kind: input, shape index: {}, may-alias: {9,11,13}]
  %s14 = inlined_call_operand.vmem [shape: f32[32,1], index: 14, kind: input, shape index: {}, may-alias: {14,16}]
  %s15 = inlined_call_operand.vmem [shape: f32[32,1], index: 15, kind: input, shape index: {}, may-alias: {15,17}]
  %s16 = inlined_call_operand.vmem [shape: f32[32,1], index: 16, kind: input, shape index: {}, may-alias: {14,16}]
  %s17 = inlined_call_operand.vmem [shape: f32[32,1], index: 17, kind: input, shape index: {}, may-alias: {15,17}]
  %s18 = inlined_call_operand.vmem [shape: bf16[32,16], index: 18, kind: output, shape index: {}]
  %s19 = sld [smem:[#allocation0]]
  $region82: #{_lambda_.6} parent=0
    _
  %s21 = ssub.s32 1, %s19
  %s22 = scalar_select 0, %s21, %s19
  // Predicated region
  $region2: #{_lambda_.6} parent=0 // pred_check
    _
  $region3: #{_lambda_.6} parent=0 // pred_check_branch
    %24 = sbr.rel (0) target = $region5
  $region4: #{_lambda_.6} parent=0 // pred_region
    _
  $region5: #{_lambda_.6} parent=0 // pred_fallthru
    _
  // Predicated region
  $region6: #{_lambda_.6} parent=0 // pred_check
    _
  $region7: #{_lambda_.6} parent=0 // pred_check_branch
    %26 = sbr.rel (0) target = $region9
  $region8: #{_lambda_.6} parent=0 // pred_region
    _
  $region9: #{_lambda_.6} parent=0 // pred_fallthru
    _
  // Predicated region
  $region10: #{_lambda_.6} parent=0 // pred_check
    _
  $region11: #{_lambda_.6} parent=0 // pred_check_branch
    %28 = sbr.rel (0) target = $region13
  $region12: #{_lambda_.6} parent=0 // pred_region
    _
  $region13: #{_lambda_.6} parent=0 // pred_fallthru
    _
  // Predicated region
  $region14: #{_lambda_.6} parent=0 // pred_check
    _
  $region15: #{_lambda_.6} parent=0 // pred_check_branch
    %30 = sbr.rel (0) target = $region17
  $region16: #{_lambda_.6} parent=0 // pred_region
    _
  $region17: #{_lambda_.6} parent=0 // pred_fallthru
    _
  // Predicated region
  $region18: #{_lambda_.6} parent=0 // pred_check
    _
  $region19: #{_lambda_.6} parent=0 // pred_check_branch
    %32 = sbr.rel (0) target = $region21
  $region20: #{_lambda_.6} parent=0 // pred_region
    _
  $region21: #{_lambda_.6} parent=0 // pred_fallthru
    _
  // Predicated region
  $region22: #{_lambda_.6} parent=0 // pred_check
    _
  $region23: #{_lambda_.6} parent=0 // pred_check_branch
    %34 = sbr.rel (0) target = $region25
  $region24: #{_lambda_.6} parent=0 // pred_region
    _
  $region25: #{_lambda_.6} parent=0 // pred_fallthru
    _
  // Predicated region
  $region26: #{_lambda_.6} parent=0 // pred_check
    _
  $region27: #{_lambda_.6} parent=0 // pred_check_branch
    %36 = sbr.rel (0) target = $region29
  $region28: #{_lambda_.6} parent=0 // pred_region
    _
  $region29: #{_lambda_.6} parent=0 // pred_fallthru
    _
  // Predicated region
  $region30: #{_lambda_.6} parent=0 // pred_check
    _
  $region31: #{_lambda_.6} parent=0 // pred_check_branch
    %38 = sbr.rel (0) target = $region33
  $region32: #{_lambda_.6} parent=0 // pred_region
    _
  $region33: #{_lambda_.6} parent=0 // pred_fallthru
    _
  // Predicated region
  $region34: #{_lambda_.6} parent=0 // pred_check
    _
  $region35: #{_lambda_.6} parent=0 // pred_check_branch
    %40 = sbr.rel (0) target = $region37
  $region36: #{_lambda_.6} parent=0 // pred_region
    _
  $region37: #{_lambda_.6} parent=0 // pred_fallthru
    _
  // Predicated region
  $region38: #{_lambda_.6} parent=0 // pred_check
    _
  $region39: #{_lambda_.6} parent=0 // pred_check_branch
    %42 = sbr.rel (0) target = $region41
  $region40: #{_lambda_.6} parent=0 // pred_region
    _
  $region41: #{_lambda_.6} parent=0 // pred_fallthru
    _
  // Predicated region
  $region42: #{_lambda_.6} parent=0 // pred_check
    _
  $region43: #{_lambda_.6} parent=0 // pred_check_branch
    %44 = sbr.rel (0) target = $region45
  $region44: #{_lambda_.6} parent=0 // pred_region
    _
  $region45: #{_lambda_.6} parent=0 // pred_fallthru
    _
  // Predicated region
  $region46: #{_lambda_.6} parent=0 // pred_check
    _
  $region47: #{_lambda_.6} parent=0 // pred_check_branch
    %46 = sbr.rel (0) target = $region49
  $region48: #{_lambda_.6} parent=0 // pred_region
    _
  $region49: #{_lambda_.6} parent=0 // pred_fallthru
    _
  // Predicated region
  $region50: #{_lambda_.6} parent=0 // pred_check
    _
  $region51: #{_lambda_.6} parent=0 // pred_check_branch
    %48 = sbr.rel (0) target = $region53
  $region52: #{_lambda_.6} parent=0 // pred_region
    _
  $region53: #{_lambda_.6} parent=0 // pred_fallthru
    _
  // Predicated region
  $region54: #{_lambda_.6} parent=0 // pred_check
    _
  $region55: #{_lambda_.6} parent=0 // pred_check_branch
    %50 = sbr.rel (0) target = $region57
  $region56: #{_lambda_.6} parent=0 // pred_region
    _
  $region57: #{_lambda_.6} parent=0 // pred_fallthru
    _
  // Predicated region
  $region58: #{_lambda_.6} parent=0 // pred_check
    _
  $region59: #{_lambda_.6} parent=0 // pred_check_branch
    %52 = sbr.rel (0) target = $region61
  $region60: #{_lambda_.6} parent=0 // pred_region
    _
  $region61: #{_lambda_.6} parent=0 // pred_fallthru
    _
  // Predicated region
  $region62: #{_lambda_.6} parent=0 // pred_check
    _
  $region63: #{_lambda_.6} parent=0 // pred_check_branch
    %54 = sbr.rel (0) target = $region65
  $region64: #{_lambda_.6} parent=0 // pred_region
    _
  $region65: #{_lambda_.6} parent=0 // pred_fallthru
    _
  // Predicated region
  $region66: #{_lambda_.6} parent=0 // pred_check
    _
  $region67: #{_lambda_.6} parent=0 // pred_check_branch
    %56 = sbr.rel (0) target = $region69
  $region68: #{_lambda_.6} parent=0 // pred_region
    _
  $region69: #{_lambda_.6} parent=0 // pred_fallthru
    _
  // Predicated region
  $region70: #{_lambda_.6} parent=0 // pred_check
    _
  $region71: #{_lambda_.6} parent=0 // pred_check_branch
    %58 = sbr.rel (0) target = $region73
  $region72: #{_lambda_.6} parent=0 // pred_region
    _
  $region73: #{_lambda_.6} parent=0 // pred_fallthru
    _
  %v60 = vld [vmem:[%s0] sm:$0xf]
  %v61 = vld [vmem:[%s6] sm:$0xf]
  %v62 = vld [vmem:[%s6 + $0x4] sm:$0x1]
  %v63 = vld [vmem:[%s7] sm:$0x3]
  %v64 = vld [vmem:[%s1] sm:$0xf]
  %vm65 = vcmask 64512
  %v67 = vsel %vm65, %v64, 0
  %vm69 = vcmask 1043456
  %v71 = vsel %vm69, %v60, 0
  %73 = vmatprep.subr.bf16.mxu0 0
  %74 = vmatpush1.bf16.msra.mxu0 %v71
  %75 = vmatprep.subr.bf16.mxu0 0
  %76 = vmatpush1.bf16.msra.mxu0 0
  %77 = vmatprep.subr.bf16.mxu0 0
  %78 = vmatpush1.bf16.msra.mxu0 0
  %79 = vmatprep.subr.bf16.mxu0 0
  %80 = vmatpush1.bf16.msra.mxu0 0
  %81 = vmatprep.subr.bf16.mxu0 0
  %82 = vmatpush1.bf16.msra.mxu0 0
  %83 = vmatprep.subr.bf16.mxu0 0
  %84 = vmatpush1.bf16.msra.mxu0 0
  %85 = vmatprep.subr.bf16.mxu0 0
  %86 = vmatpush1.bf16.msra.mxu0 0
  %87 = vmatprep.subr.bf16.mxu0 0
  %88 = vmatpush1.bf16.msra.mxu0 0
  %89 = vmatprep.subr.bf16.mxu0 0
  %90 = vmatpush1.bf16.msra.mxu0 0
  %91 = vmatprep.subr.bf16.mxu0 0
  %92 = vmatpush1.bf16.msra.mxu0 0
  %93 = vmatprep.subr.bf16.mxu0 0
  %94 = vmatpush1.bf16.msra.mxu0 0
  %95 = vmatprep.subr.bf16.mxu0 0
  %96 = vmatpush1.bf16.msra.mxu0 0
  %97 = vmatprep.subr.bf16.mxu0 0
  %98 = vmatpush1.bf16.msra.mxu0 0
  %99 = vmatprep.subr.bf16.mxu0 0
  %100 = vmatpush1.bf16.msra.mxu0 0
  %101 = vmatprep.subr.bf16.mxu0 0
  %102 = vmatpush1.bf16.msra.mxu0 0
  %103 = vmatprep.subr.bf16.mxu0 0
  %104 = vmatpush1.bf16.msra.mxu0 0
  %105 = vmatprep.mubr.bf16.mxu0 0
  %106 = vmatmul.mubr.bf16.gmra.mrb[0].mxu0 %v67
  %v107 = vpop.f32.mrb[0].mxu0
  %v108 = vadd.f32 0.0, %v107
  %v109 = vpop.f32.mrb[0].mxu0
  %v110 = vpop.f32.mrb[0].mxu0
  %v111 = vpop.f32.mrb[0].mxu0
  %112 = vdwg.mxu0
  %v113 = vld [vmem:[%s8] sm:$0xff]
  %115 = vset.pattern.permute.xlu0 0
  %116 = vperm.xlu0 %115, %v113
  %v117 = vpop.permute.xlu0 %116
  %v119 = vmul.f32 %v108, %v117
  %v120 = vld [vmem:[%s9] sm:$0xff]
  %122 = vset.pattern.permute.xlu0 0
  %123 = vperm.xlu0 %122, %v120
  %v124 = vpop.permute.xlu0 %123
  %v126 = vadd.f32 %v119, %v124
  %v127 = vmax.f32 %v126, 0.0
  %v128 = vpack.c.bf16 %v127, %v127
  %130 = vrot.lane.b32.xlu0 %v128, 115
  %v131 = vpop.permute.xlu0 %130
  %132 = vrot.lane.b32.xlu0 %v128, 3
  %v133 = vpop.permute.xlu0 %132
  %vm134 = vcmask 23552
  %v137 = vsel %vm134, %v131, %v133
  %v140 = vpack.i.b16 %v61, %v61
  %v142 = vlaneseq
  %v143 = vshrl.u32 %v142, 7
  %v144 = vsub.s32 0, %v143
  %v145 = vrot.slane %v140, %v144
  %v146 = vmul.bf16 %v137, %v145
  %147 = vrot.lane.b32.xlu0 %v128, 114
  %v148 = vpop.permute.xlu0 %147
  %149 = vrot.lane.b32.xlu0 %v128, 2
  %v150 = vpop.permute.xlu0 %149
  %vm151 = vcmask 15360
  %v154 = vsel %vm151, %v148, %v150
  %v156 = vshrl.u32 %v61, 16
  %v157 = vpack.i.b16 %v156, %v156
  %v159 = vlaneseq
  %v160 = vshrl.u32 %v159, 7
  %v161 = vsub.s32 0, %v160
  %v162 = vrot.slane %v157, %v161
  %v163 = vmul.bf16 %v154, %v162
  %164 = vrot.lane.b32.xlu0 %v128, 113
  %v165 = vpop.permute.xlu0 %164
  %166 = vrot.lane.b32.xlu0 %v128, 1
  %v167 = vpop.permute.xlu0 %166
  %vm168 = vcmask 7168
  %v171 = vsel %vm168, %v165, %v167
  %v173 = vlaneseq
  %v174 = vshrl.u32 %v173, 7
  %v175 = vsub.s32 1, %v174
  %v176 = vrot.slane %v140, %v175
  %v177 = vmul.bf16 %v171, %v176
  %v178 = vlaneseq
  %v179 = vshrl.u32 %v178, 7
  %v180 = vsub.s32 1, %v179
  %v181 = vrot.slane %v157, %v180
  %v182 = vmul.bf16 %v171, %v181
  %v183 = vlaneseq
  %v184 = vshrl.u32 %v183, 7
  %v185 = vsub.s32 2, %v184
  %v186 = vrot.slane %v140, %v185
  %v187 = vmul.bf16 %v128, %v186
  %188 = vrot.lane.b32.xlu0 %v128, 127
  %v189 = vpop.permute.xlu0 %188
  %190 = vrot.lane.b32.xlu0 %v128, 15
  %v191 = vpop.permute.xlu0 %190
  %vm192 = vcmask 121856
  %v195 = vsel %vm192, %v189, %v191
  %v197 = vlaneseq
  %v198 = vshrl.u32 %v197, 7
  %v199 = vsub.s32 2, %v198
  %v200 = vrot.slane %v157, %v199
  %v201 = vmul.bf16 %v195, %v200
  %v202 = vlaneseq
  %v203 = vshrl.u32 %v202, 7
  %v204 = vsub.s32 3, %v203
  %v205 = vrot.slane %v140, %v204
  %v206 = vmul.bf16 %v195, %v205
  %207 = vrot.lane.b32.xlu0 %v128, 126
  %v208 = vpop.permute.xlu0 %207
  %209 = vrot.lane.b32.xlu0 %v128, 14
  %v210 = vpop.permute.xlu0 %209
  %vm211 = vcmask 113664
  %v214 = vsel %vm211, %v208, %v210
  %v216 = vlaneseq
  %v217 = vshrl.u32 %v216, 7
  %v218 = vsub.s32 3, %v217
  %v219 = vrot.slane %v157, %v218
  %v220 = vmul.bf16 %v214, %v219
  %221 = vrot.lane.b32.xlu0 %v128, 125
  %v222 = vpop.permute.xlu0 %221
  %223 = vrot.lane.b32.xlu0 %v128, 13
  %v224 = vpop.permute.xlu0 %223
  %vm225 = vcmask 105472
  %v228 = vsel %vm225, %v222, %v224
  %v231 = vpack.i.b16 %v62, %v62
  %v233 = vlaneseq
  %v234 = vshrl.u32 %v233, 7
  %v235 = vsub.s32 0, %v234
  %v236 = vrot.slane %v231, %v235
  %v237 = vmul.bf16 %v228, %v236
  %v239 = vrot.slane %v163, 4
  %v241 = vrot.slane %v182, 4
  %v243 = vrot.slane %v201, 4
  %v245 = vrot.slane %v220, 4
  %v248 = vsel %vm69, %v146, %v239
  %v252 = vsel %vm69, %v177, %v241
  %v256 = vsel %vm69, %v187, %v243
  %v260 = vsel %vm69, %v206, %v245
  %v262 = vld [vmem:[%s2] sm:$0xf]
  %vm263 = vcmask 588800
  %v265 = vsel %vm263, %v262, 0
  %v268 = vsel %vm69, %v237, 0
  %270 = vmatprep.subr.bf16.mxu0 0
  %271 = vmatpush1.bf16.msra.mxu0 %v248
  %272 = vmatprep.subr.bf16.mxu0 0
  %273 = vmatpush1.bf16.msra.mxu0 %v252
  %274 = vmatprep.subr.bf16.mxu0 0
  %275 = vmatpush1.bf16.msra.mxu0 %v256
  %276 = vmatprep.subr.bf16.mxu0 0
  %277 = vmatpush1.bf16.msra.mxu0 %v260
  %278 = vmatprep.subr.bf16.mxu0 0
  %279 = vmatpush1.bf16.msra.mxu0 %v268
  %280 = vmatprep.subr.bf16.mxu0 0
  %281 = vmatpush1.bf16.msra.mxu0 0
  %282 = vmatprep.subr.bf16.mxu0 0
  %283 = vmatpush1.bf16.msra.mxu0 0
  %284 = vmatprep.subr.bf16.mxu0 0
  %285 = vmatpush1.bf16.msra.mxu0 0
  %286 = vmatprep.subr.bf16.mxu0 0
  %287 = vmatpush1.bf16.msra.mxu0 0
  %288 = vmatprep.subr.bf16.mxu0 0
  %289 = vmatpush1.bf16.msra.mxu0 0
  %290 = vmatprep.subr.bf16.mxu0 0
  %291 = vmatpush1.bf16.msra.mxu0 0
  %292 = vmatprep.subr.bf16.mxu0 0
  %293 = vmatpush1.bf16.msra.mxu0 0
  %294 = vmatprep.subr.bf16.mxu0 0
  %295 = vmatpush1.bf16.msra.mxu0 0
  %296 = vmatprep.subr.bf16.mxu0 0
  %297 = vmatpush1.bf16.msra.mxu0 0
  %298 = vmatprep.subr.bf16.mxu0 0
  %299 = vmatpush1.bf16.msra.mxu0 0
  %300 = vmatprep.subr.bf16.mxu0 0
  %301 = vmatpush1.bf16.msra.mxu0 0
  %302 = vmatprep.mubr.bf16.mxu0 0
  %303 = vmatmul.mubr.bf16.gmra.mrb[0].mxu0 %v265
  %v304 = vpop.f32.mrb[0].mxu0
  %v305 = vadd.f32 0.0, %v304
  %v306 = vpop.f32.mrb[0].mxu0
  %v307 = vpop.f32.mrb[0].mxu0
  %v308 = vpop.f32.mrb[0].mxu0
  %309 = vdwg.mxu0
  %v310 = vld [vmem:[%s10] sm:$0xff]
  %312 = vset.pattern.permute.xlu0 0
  %313 = vperm.xlu0 %312, %v310
  %v314 = vpop.permute.xlu0 %313
  %v316 = vmul.f32 %v305, %v314
  %v317 = vld [vmem:[%s11] sm:$0xff]
  %319 = vset.pattern.permute.xlu0 0
  %320 = vperm.xlu0 %319, %v317
  %v321 = vpop.permute.xlu0 %320
  %v323 = vadd.f32 %v316, %v321
  %v324 = vmax.f32 %v323, 0.0
  %v325 = vpack.c.bf16 %v324, %v324
  %327 = vrot.lane.b32.xlu0 %v325, 116
  %v328 = vpop.permute.xlu0 %327
  %329 = vrot.lane.b32.xlu0 %v325, 4
  %v330 = vpop.permute.xlu0 %329
  %vm331 = vcmask 31744
  %v334 = vsel %vm331, %v328, %v330
  %v337 = vpack.i.b16 %v63, %v63
  %v339 = vlaneseq
  %v340 = vshrl.u32 %v339, 7
  %v341 = vsub.s32 0, %v340
  %v342 = vrot.slane %v337, %v341
  %v343 = vmul.bf16 %v334, %v342
  %v344 = vshrl.u32 %v63, 16
  %v345 = vpack.i.b16 %v344, %v344
  %v347 = vlaneseq
  %v348 = vshrl.u32 %v347, 7
  %v349 = vsub.s32 0, %v348
  %v350 = vrot.slane %v345, %v349
  %v351 = vmul.bf16 %v325, %v350
  %352 = vrot.lane.b32.xlu0 %v325, 124
  %v353 = vpop.permute.xlu0 %352
  %354 = vrot.lane.b32.xlu0 %v325, 12
  %v355 = vpop.permute.xlu0 %354
  %vm356 = vcmask 97280
  %v359 = vsel %vm356, %v353, %v355
  %v361 = vlaneseq
  %v362 = vshrl.u32 %v361, 7
  %v363 = vsub.s32 1, %v362
  %v364 = vrot.slane %v337, %v363
  %v365 = vmul.bf16 %v359, %v364
  %v367 = vrot.slane %v351, 4
  %v370 = vsel %vm69, %v343, %v367
  %v372 = vld [vmem:[%s3] sm:$0xf]
  %vm373 = vcmask 195584
  %v375 = vsel %vm373, %v372, 0
  %v378 = vsel %vm69, %v365, 0
  %380 = vmatprep.subr.bf16.mxu0 0
  %381 = vmatpush1.bf16.msra.mxu0 %v370
  %382 = vmatprep.subr.bf16.mxu0 0
  %383 = vmatpush1.bf16.msra.mxu0 %v378
  %384 = vmatprep.subr.bf16.mxu0 0
  %385 = vmatpush1.bf16.msra.mxu0 0
  %386 = vmatprep.subr.bf16.mxu0 0
  %387 = vmatpush1.bf16.msra.mxu0 0
  %388 = vmatprep.subr.bf16.mxu0 0
  %389 = vmatpush1.bf16.msra.mxu0 0
  %390 = vmatprep.subr.bf16.mxu0 0
  %391 = vmatpush1.bf16.msra.mxu0 0
  %392 = vmatprep.subr.bf16.mxu0 0
  %393 = vmatpush1.bf16.msra.mxu0 0
  %394 = vmatprep.subr.bf16.mxu0 0
  %395 = vmatpush1.bf16.msra.mxu0 0
  %396 = vmatprep.subr.bf16.mxu0 0
  %397 = vmatpush1.bf16.msra.mxu0 0
  %398 = vmatprep.subr.bf16.mxu0 0
  %399 = vmatpush1.bf16.msra.mxu0 0
  %400 = vmatprep.subr.bf16.mxu0 0
  %401 = vmatpush1.bf16.msra.mxu0 0
  %402 = vmatprep.subr.bf16.mxu0 0
  %403 = vmatpush1.bf16.msra.mxu0 0
  %404 = vmatprep.subr.bf16.mxu0 0
  %405 = vmatpush1.bf16.msra.mxu0 0
  %406 = vmatprep.subr.bf16.mxu0 0
  %407 = vmatpush1.bf16.msra.mxu0 0
  %408 = vmatprep.subr.bf16.mxu0 0
  %409 = vmatpush1.bf16.msra.mxu0 0
  %410 = vmatprep.subr.bf16.mxu0 0
  %411 = vmatpush1.bf16.msra.mxu0 0
  %412 = vmatprep.mubr.bf16.mxu0 0
  %413 = vmatmul.mubr.bf16.gmra.mrb[0].mxu0 %v375
  %v414 = vpop.f32.mrb[0].mxu0
  %v415 = vadd.f32 0.0, %v414
  %v416 = vpop.f32.mrb[0].mxu0
  %v417 = vpop.f32.mrb[0].mxu0
  %v418 = vpop.f32.mrb[0].mxu0
  %419 = vdwg.mxu0
  %v420 = vld [vmem:[%s12] sm:$0xff]
  %422 = vset.pattern.permute.xlu0 0
  %423 = vperm.xlu0 %422, %v420
  %v424 = vpop.permute.xlu0 %423
  %v426 = vmul.f32 %v415, %v424
  %v427 = vld [vmem:[%s13] sm:$0xff]
  %429 = vset.pattern.permute.xlu0 0
  %430 = vperm.xlu0 %429, %v427
  %v431 = vpop.permute.xlu0 %430
  %v433 = vadd.f32 %v426, %v431
  %v434 = vmax.f32 %v433, 0.0
  %v435 = vld [vmem:[%s4] sm:$0xf]
  %v436 = vld [vmem:[%s4 + $0x4] sm:$0xf]
  %v437 = vld [vmem:[%s4 + $0x8] sm:$0xf]
  %v438 = vld [vmem:[%s4 + $0xc] sm:$0xf]
  %v439 = vpack.c.bf16 %v434, %v434
  %v444 = vunpack.c.l.b16 %v435
  %v445 = vunpack.c.l.b16 %v436
  %v446 = vunpack.c.l.b16 %v437
  %v447 = vunpack.c.l.b16 %v438
  %v448 = vpack.c.b16 %v445, %v444
  %v449 = vpack.c.b16 %v447, %v446
  %v451 = vsel %vm65, %v448, 0
  %v454 = vsel %vm65, %v449, 0
  %v457 = vsel %vm69, %v439, 0
  %459 = vmatprep.subr.bf16.mxu0 0
  %460 = vmatpush1.bf16.msra.mxu0 %v457
  %461 = vmatprep.subr.bf16.mxu0 0
  %462 = vmatpush1.bf16.msra.mxu0 0
  %463 = vmatprep.subr.bf16.mxu0 0
  %464 = vmatpush1.bf16.msra.mxu0 0
  %465 = vmatprep.subr.bf16.mxu0 0
  %466 = vmatpush1.bf16.msra.mxu0 0
  %467 = vmatprep.subr.bf16.mxu0 0
  %468 = vmatpush1.bf16.msra.mxu0 0
  %469 = vmatprep.subr.bf16.mxu0 0
  %470 = vmatpush1.bf16.msra.mxu0 0
  %471 = vmatprep.subr.bf16.mxu0 0
  %472 = vmatpush1.bf16.msra.mxu0 0
  %473 = vmatprep.subr.bf16.mxu0 0
  %474 = vmatpush1.bf16.msra.mxu0 0
  %475 = vmatprep.subr.bf16.mxu0 0
  %476 = vmatpush1.bf16.msra.mxu0 0
  %477 = vmatprep.subr.bf16.mxu0 0
  %478 = vmatpush1.bf16.msra.mxu0 0
  %479 = vmatprep.subr.bf16.mxu0 0
  %480 = vmatpush1.bf16.msra.mxu0 0
  %481 = vmatprep.subr.bf16.mxu0 0
  %482 = vmatpush1.bf16.msra.mxu0 0
  %483 = vmatprep.subr.bf16.mxu0 0
  %484 = vmatpush1.bf16.msra.mxu0 0
  %485 = vmatprep.subr.bf16.mxu0 0
  %486 = vmatpush1.bf16.msra.mxu0 0
  %487 = vmatprep.subr.bf16.mxu0 0
  %488 = vmatpush1.bf16.msra.mxu0 0
  %489 = vmatprep.subr.bf16.mxu0 0
  %490 = vmatpush1.bf16.msra.mxu0 0
  %491 = vmatprep.mubr.bf16.mxu0 0
  %492 = vmatmul.mubr.bf16.gmra.mrb[0].mxu0 %v451
  %v493 = vpop.f32.mrb[0].mxu0
  %v494 = vadd.f32 0.0, %v493
  %v495 = vpop.f32.mrb[0].mxu0
  %v496 = vpop.f32.mrb[0].mxu0
  %v497 = vadd.f32 0.0, %v496
  %v498 = vpop.f32.mrb[0].mxu0
  %499 = vmatprep.mubr.bf16.mxu0 0
  %500 = vmatmul.mubr.bf16.gmra.mrb[0].mxu0 %v454
  %v501 = vpop.f32.mrb[0].mxu0
  %v502 = vadd.f32 0.0, %v501
  %v503 = vpop.f32.mrb[0].mxu0
  %v504 = vpop.f32.mrb[0].mxu0
  %v505 = vadd.f32 0.0, %v504
  %v506 = vpop.f32.mrb[0].mxu0
  %507 = vdwg.mxu0
  %v508 = vld [vmem:[%s14] sm:$0xff]
  %v509 = vld [vmem:[%s14 + $0x8] sm:$0xff]
  %v510 = vld [vmem:[%s14 + $0x10] sm:$0xff]
  %v511 = vld [vmem:[%s14 + $0x18] sm:$0xff]
  %513 = vset.pattern.permute.xlu0 0
  %514 = vperm.xlu0 %513, %v508
  %v515 = vpop.permute.xlu0 %514
  %518 = vset.pattern.permute.xlu0 0
  %519 = vperm.xlu0 %518, %v509
  %v520 = vpop.permute.xlu0 %519
  %523 = vset.pattern.permute.xlu0 0
  %524 = vperm.xlu0 %523, %v510
  %v525 = vpop.permute.xlu0 %524
  %528 = vset.pattern.permute.xlu0 0
  %529 = vperm.xlu0 %528, %v511
  %v530 = vpop.permute.xlu0 %529
  %v532 = vmul.f32 %v494, %v515
  %v533 = vmul.f32 %v497, %v520
  %v534 = vmul.f32 %v502, %v525
  %v535 = vmul.f32 %v505, %v530
  %v536 = vld [vmem:[%s15] sm:$0xff]
  %v537 = vld [vmem:[%s15 + $0x8] sm:$0xff]
  %v538 = vld [vmem:[%s15 + $0x10] sm:$0xff]
  %v539 = vld [vmem:[%s15 + $0x18] sm:$0xff]
  %541 = vset.pattern.permute.xlu0 0
  %542 = vperm.xlu0 %541, %v536
  %v543 = vpop.permute.xlu0 %542
  %546 = vset.pattern.permute.xlu0 0
  %547 = vperm.xlu0 %546, %v537
  %v548 = vpop.permute.xlu0 %547
  %551 = vset.pattern.permute.xlu0 0
  %552 = vperm.xlu0 %551, %v538
  %v553 = vpop.permute.xlu0 %552
  %556 = vset.pattern.permute.xlu0 0
  %557 = vperm.xlu0 %556, %v539
  %v558 = vpop.permute.xlu0 %557
  %v560 = vadd.f32 %v532, %v543
  %v561 = vadd.f32 %v533, %v548
  %v562 = vadd.f32 %v534, %v553
  %v563 = vadd.f32 %v535, %v558
  %v564 = vld [vmem:[%s5] sm:$0xf]
  %v565 = vld [vmem:[%s5 + $0x4] sm:$0xf]
  %v566 = vld [vmem:[%s5 + $0x8] sm:$0xf]
  %v567 = vld [vmem:[%s5 + $0xc] sm:$0xf]
  %v572 = vunpack.c.l.b16 %v564
  %v573 = vunpack.c.l.b16 %v565
  %v574 = vunpack.c.l.b16 %v566
  %v575 = vunpack.c.l.b16 %v567
  %v576 = vpack.c.b16 %v573, %v572
  %v577 = vpack.c.b16 %v575, %v574
  %v579 = vsel %vm65, %v576, 0
  %v582 = vsel %vm65, %v577, 0
  %584 = vmatprep.subr.bf16.mxu0 0
  %585 = vmatpush1.bf16.msra.mxu0 %v71
  %586 = vmatprep.subr.bf16.mxu0 0
  %587 = vmatpush1.bf16.msra.mxu0 0
  %588 = vmatprep.subr.bf16.mxu0 0
  %589 = vmatpush1.bf16.msra.mxu0 0
  %590 = vmatprep.subr.bf16.mxu0 0
  %591 = vmatpush1.bf16.msra.mxu0 0
  %592 = vmatprep.subr.bf16.mxu0 0
  %593 = vmatpush1.bf16.msra.mxu0 0
  %594 = vmatprep.subr.bf16.mxu0 0
  %595 = vmatpush1.bf16.msra.mxu0 0
  %596 = vmatprep.subr.bf16.mxu0 0
  %597 = vmatpush1.bf16.msra.mxu0 0
  %598 = vmatprep.subr.bf16.mxu0 0
  %599 = vmatpush1.bf16.msra.mxu0 0
  %600 = vmatprep.subr.bf16.mxu0 0
  %601 = vmatpush1.bf16.msra.mxu0 0
  %602 = vmatprep.subr.bf16.mxu0 0
  %603 = vmatpush1.bf16.msra.mxu0 0
  %604 = vmatprep.subr.bf16.mxu0 0
  %605 = vmatpush1.bf16.msra.mxu0 0
  %606 = vmatprep.subr.bf16.mxu0 0
  %607 = vmatpush1.bf16.msra.mxu0 0
  %608 = vmatprep.subr.bf16.mxu0 0
  %609 = vmatpush1.bf16.msra.mxu0 0
  %610 = vmatprep.subr.bf16.mxu0 0
  %611 = vmatpush1.bf16.msra.mxu0 0
  %612 = vmatprep.subr.bf16.mxu0 0
  %613 = vmatpush1.bf16.msra.mxu0 0
  %614 = vmatprep.subr.bf16.mxu0 0
  %615 = vmatpush1.bf16.msra.mxu0 0
  %616 = vmatprep.mubr.bf16.mxu0 0
  %617 = vmatmul.mubr.bf16.gmra.mrb[0].mxu0 %v579
  %v618 = vpop.f32.mrb[0].mxu0
  %v619 = vadd.f32 0.0, %v618
  %v620 = vpop.f32.mrb[0].mxu0
  %v621 = vpop.f32.mrb[0].mxu0
  %v622 = vadd.f32 0.0, %v621
  %v623 = vpop.f32.mrb[0].mxu0
  %624 = vmatprep.mubr.bf16.mxu0 0
  %625 = vmatmul.mubr.bf16.gmra.mrb[0].mxu0 %v582
  %v626 = vpop.f32.mrb[0].mxu0
  %v627 = vadd.f32 0.0, %v626
  %v628 = vpop.f32.mrb[0].mxu0
  %v629 = vpop.f32.mrb[0].mxu0
  %v630 = vadd.f32 0.0, %v629
  %v631 = vpop.f32.mrb[0].mxu0
  %632 = vdwg.mxu0
  %v633 = vld [vmem:[%s16] sm:$0xff]
  %v634 = vld [vmem:[%s16 + $0x8] sm:$0xff]
  %v635 = vld [vmem:[%s16 + $0x10] sm:$0xff]
  %v636 = vld [vmem:[%s16 + $0x18] sm:$0xff]
  %638 = vset.pattern.permute.xlu0 0
  %639 = vperm.xlu0 %638, %v633
  %v640 = vpop.permute.xlu0 %639
  %643 = vset.pattern.permute.xlu0 0
  %644 = vperm.xlu0 %643, %v634
  %v645 = vpop.permute.xlu0 %644
  %648 = vset.pattern.permute.xlu0 0
  %649 = vperm.xlu0 %648, %v635
  %v650 = vpop.permute.xlu0 %649
  %653 = vset.pattern.permute.xlu0 0
  %654 = vperm.xlu0 %653, %v636
  %v655 = vpop.permute.xlu0 %654
  %v657 = vmul.f32 %v619, %v640
  %v658 = vmul.f32 %v622, %v645
  %v659 = vmul.f32 %v627, %v650
  %v660 = vmul.f32 %v630, %v655
  %v661 = vld [vmem:[%s17] sm:$0xff]
  %v662 = vld [vmem:[%s17 + $0x8] sm:$0xff]
  %v663 = vld [vmem:[%s17 + $0x10] sm:$0xff]
  %v664 = vld [vmem:[%s17 + $0x18] sm:$0xff]
  %666 = vset.pattern.permute.xlu0 0
  %667 = vperm.xlu0 %666, %v661
  %v668 = vpop.permute.xlu0 %667
  %671 = vset.pattern.permute.xlu0 0
  %672 = vperm.xlu0 %671, %v662
  %v673 = vpop.permute.xlu0 %672
  %676 = vset.pattern.permute.xlu0 0
  %677 = vperm.xlu0 %676, %v663
  %v678 = vpop.permute.xlu0 %677
  %681 = vset.pattern.permute.xlu0 0
  %682 = vperm.xlu0 %681, %v664
  %v683 = vpop.permute.xlu0 %682
  %v685 = vadd.f32 %v657, %v668
  %v686 = vadd.f32 %v658, %v673
  %v687 = vadd.f32 %v659, %v678
  %v688 = vadd.f32 %v660, %v683
  %v689 = vadd.f32 %v560, %v685
  %v690 = vadd.f32 %v561, %v686
  %v691 = vadd.f32 %v562, %v687
  %v692 = vadd.f32 %v563, %v688
  %v693 = vmax.f32 %v689, 0.0
  %v694 = vmax.f32 %v690, 0.0
  %v695 = vmax.f32 %v691, 0.0
  %v696 = vmax.f32 %v692, 0.0
  %v697 = vpack.c.bf16 %v694, %v693
  %v698 = vpack.c.bf16 %v696, %v695
  %v701 = vunpack.c.l.b16 %v697
  %v702 = vunpack.c.h.b16 %v697
  %v703 = vunpack.c.l.b16 %v698
  %v704 = vunpack.c.h.b16 %v698
  %v705 = vpack.c.b16 %v701, %v701
  %v706 = vpack.c.b16 %v702, %v702
  %v707 = vpack.c.b16 %v703, %v703
  %v708 = vpack.c.b16 %v704, %v704
  %vm713 = vcmask 125952
  %714 = vst.msk [vmem:[%s18] sm:$0xf] %vm713, %v705
  %715 = vst.msk [vmem:[%s18 + $0x4] sm:$0xf] %vm713, %v706
  %716 = vst.msk [vmem:[%s18 + $0x8] sm:$0xf] %vm713, %v707
  %717 = vst.msk [vmem:[%s18 + $0xc] sm:$0xf] %vm713, %v708
  // Predicated region
  $region74: #{_lambda_.6} parent=0 // pred_check
    _
  $region75: #{_lambda_.6} parent=0 // pred_check_branch
    %719 = sbr.rel (0) target = $region77
  $region76: #{_lambda_.6} parent=0 // pred_region
    _
  $region77: #{_lambda_.6} parent=0 // pred_fallthru
    _
  // Predicated region
  $region78: #{_lambda_.6} parent=0 // pred_check
    _
  $region79: #{_lambda_.6} parent=0 // pred_check_branch
    %721 = sbr.rel (0) target = $region81
  $region80: #{_lambda_.6} parent=0 // pred_region
    _
  $region81: #{_lambda_.6} parent=0 // pred_fallthru
    _

// kernel: _lambda_.8
$region0: #{_lambda_.8}
  #allocation0 [shape = 'u32[]', space=smem, size = 0x4, offset = 0x4, fixed_abs, tag = 'smem constant byte address 0x4 - core index']
  #allocation1 [shape = 'u32[144,128]{1,0:T(1,128)}', space=vmem, size = 0x12000, scoped, tag = 'internal scratch']
  %s0 = inlined_call_operand.vmem [shape: bf16[32,2], index: 0, kind: input, shape index: {}]
  %s1 = inlined_call_operand.vmem [shape: bf16[16,32], index: 1, kind: input, shape index: {}]
  %s2 = inlined_call_operand.vmem [shape: bf16[16,144], index: 2, kind: input, shape index: {}]
  %s3 = inlined_call_operand.vmem [shape: bf16[16,48], index: 3, kind: input, shape index: {}]
  %s4 = inlined_call_operand.vmem [shape: bf16[64,16], index: 4, kind: input, shape index: {}]
  %s5 = inlined_call_operand.vmem [shape: bf16[64,32], index: 5, kind: input, shape index: {}]
  %s6 = inlined_call_operand.vmem [shape: bf16[9,2], index: 6, kind: input, shape index: {}]
  %s7 = inlined_call_operand.vmem [shape: bf16[3,2], index: 7, kind: input, shape index: {}]
  %s8 = inlined_call_operand.vmem [shape: f32[16,1], index: 8, kind: input, shape index: {}, may-alias: {8,10,12}]
  %s9 = inlined_call_operand.vmem [shape: f32[16,1], index: 9, kind: input, shape index: {}, may-alias: {9,11,13}]
  %s10 = inlined_call_operand.vmem [shape: f32[16,1], index: 10, kind: input, shape index: {}, may-alias: {8,10,12}]
  %s11 = inlined_call_operand.vmem [shape: f32[16,1], index: 11, kind: input, shape index: {}, may-alias: {9,11,13}]
  %s12 = inlined_call_operand.vmem [shape: f32[16,1], index: 12, kind: input, shape index: {}, may-alias: {8,10,12}]
  %s13 = inlined_call_operand.vmem [shape: f32[16,1], index: 13, kind: input, shape index: {}, may-alias: {9,11,13}]
  %s14 = inlined_call_operand.vmem [shape: f32[64,1], index: 14, kind: input, shape index: {}, may-alias: {14,16}]
  %s15 = inlined_call_operand.vmem [shape: f32[64,1], index: 15, kind: input, shape index: {}, may-alias: {15,17}]
  %s16 = inlined_call_operand.vmem [shape: f32[64,1], index: 16, kind: input, shape index: {}, may-alias: {14,16}]
  %s17 = inlined_call_operand.vmem [shape: f32[64,1], index: 17, kind: input, shape index: {}, may-alias: {15,17}]
  %s18 = inlined_call_operand.vmem [shape: bf16[64,2], index: 18, kind: output, shape index: {}]
  %s19 = sld [smem:[#allocation0]]
  $region82: #{_lambda_.8} parent=0
    _
  %s21 = ssub.s32 1, %s19
  %s22 = scalar_select 0, %s21, %s19
  // Predicated region
  $region2: #{_lambda_.8} parent=0 // pred_check
    _
  $region3: #{_lambda_.8} parent=0 // pred_check_branch
    %24 = sbr.rel (0) target = $region5
  $region4: #{_lambda_.8} parent=0 // pred_region
    _
  $region5: #{_lambda_.8} parent=0 // pred_fallthru
    _
  // Predicated region
  $region6: #{_lambda_.8} parent=0 // pred_check
    _
  $region7: #{_lambda_.8} parent=0 // pred_check_branch
    %26 = sbr.rel (0) target = $region9
  $region8: #{_lambda_.8} parent=0 // pred_region
    _
  $region9: #{_lambda_.8} parent=0 // pred_fallthru
    _
  // Predicated region
  $region10: #{_lambda_.8} parent=0 // pred_check
    _
  $region11: #{_lambda_.8} parent=0 // pred_check_branch
    %28 = sbr.rel (0) target = $region13
  $region12: #{_lambda_.8} parent=0 // pred_region
    _
  $region13: #{_lambda_.8} parent=0 // pred_fallthru
    _
  // Predicated region
  $region14: #{_lambda_.8} parent=0 // pred_check
    _
  $region15: #{_lambda_.8} parent=0 // pred_check_branch
    %30 = sbr.rel (0) target = $region17
  $region16: #{_lambda_.8} parent=0 // pred_region
    _
  $region17: #{_lambda_.8} parent=0 // pred_fallthru
    _
  // Predicated region
  $region18: #{_lambda_.8} parent=0 // pred_check
    _
  $region19: #{_lambda_.8} parent=0 // pred_check_branch
    %32 = sbr.rel (0) target = $region21
  $region20: #{_lambda_.8} parent=0 // pred_region
    _
  $region21: #{_lambda_.8} parent=0 // pred_fallthru
    _
  // Predicated region
  $region22: #{_lambda_.8} parent=0 // pred_check
    _
  $region23: #{_lambda_.8} parent=0 // pred_check_branch
    %34 = sbr.rel (0) target = $region25
  $region24: #{_lambda_.8} parent=0 // pred_region
    _
  $region25: #{_lambda_.8} parent=0 // pred_fallthru
    _
  // Predicated region
  $region26: #{_lambda_.8} parent=0 // pred_check
    _
  $region27: #{_lambda_.8} parent=0 // pred_check_branch
    %36 = sbr.rel (0) target = $region29
  $region28: #{_lambda_.8} parent=0 // pred_region
    _
  $region29: #{_lambda_.8} parent=0 // pred_fallthru
    _
  // Predicated region
  $region30: #{_lambda_.8} parent=0 // pred_check
    _
  $region31: #{_lambda_.8} parent=0 // pred_check_branch
    %38 = sbr.rel (0) target = $region33
  $region32: #{_lambda_.8} parent=0 // pred_region
    _
  $region33: #{_lambda_.8} parent=0 // pred_fallthru
    _
  // Predicated region
  $region34: #{_lambda_.8} parent=0 // pred_check
    _
  $region35: #{_lambda_.8} parent=0 // pred_check_branch
    %40 = sbr.rel (0) target = $region37
  $region36: #{_lambda_.8} parent=0 // pred_region
    _
  $region37: #{_lambda_.8} parent=0 // pred_fallthru
    _
  // Predicated region
  $region38: #{_lambda_.8} parent=0 // pred_check
    _
  $region39: #{_lambda_.8} parent=0 // pred_check_branch
    %42 = sbr.rel (0) target = $region41
  $region40: #{_lambda_.8} parent=0 // pred_region
    _
  $region41: #{_lambda_.8} parent=0 // pred_fallthru
    _
  // Predicated region
  $region42: #{_lambda_.8} parent=0 // pred_check
    _
  $region43: #{_lambda_.8} parent=0 // pred_check_branch
    %44 = sbr.rel (0) target = $region45
  $region44: #{_lambda_.8} parent=0 // pred_region
    _
  $region45: #{_lambda_.8} parent=0 // pred_fallthru
    _
  // Predicated region
  $region46: #{_lambda_.8} parent=0 // pred_check
    _
  $region47: #{_lambda_.8} parent=0 // pred_check_branch
    %46 = sbr.rel (0) target = $region49
  $region48: #{_lambda_.8} parent=0 // pred_region
    _
  $region49: #{_lambda_.8} parent=0 // pred_fallthru
    _
  // Predicated region
  $region50: #{_lambda_.8} parent=0 // pred_check
    _
  $region51: #{_lambda_.8} parent=0 // pred_check_branch
    %48 = sbr.rel (0) target = $region53
  $region52: #{_lambda_.8} parent=0 // pred_region
    _
  $region53: #{_lambda_.8} parent=0 // pred_fallthru
    _
  // Predicated region
  $region54: #{_lambda_.8} parent=0 // pred_check
    _
  $region55: #{_lambda_.8} parent=0 // pred_check_branch
    %50 = sbr.rel (0) target = $region57
  $region56: #{_lambda_.8} parent=0 // pred_region
    _
  $region57: #{_lambda_.8} parent=0 // pred_fallthru
    _
  // Predicated region
  $region58: #{_lambda_.8} parent=0 // pred_check
    _
  $region59: #{_lambda_.8} parent=0 // pred_check_branch
    %52 = sbr.rel (0) target = $region61
  $region60: #{_lambda_.8} parent=0 // pred_region
    _
  $region61: #{_lambda_.8} parent=0 // pred_fallthru
    _
  // Predicated region
  $region62: #{_lambda_.8} parent=0 // pred_check
    _
  $region63: #{_lambda_.8} parent=0 // pred_check_branch
    %54 = sbr.rel (0) target = $region65
  $region64: #{_lambda_.8} parent=0 // pred_region
    _
  $region65: #{_lambda_.8} parent=0 // pred_fallthru
    _
  // Predicated region
  $region66: #{_lambda_.8} parent=0 // pred_check
    _
  $region67: #{_lambda_.8} parent=0 // pred_check_branch
    %56 = sbr.rel (0) target = $region69
  $region68: #{_lambda_.8} parent=0 // pred_region
    _
  $region69: #{_lambda_.8} parent=0 // pred_fallthru
    _
  // Predicated region
  $region70: #{_lambda_.8} parent=0 // pred_check
    _
  $region71: #{_lambda_.8} parent=0 // pred_check_branch
    %58 = sbr.rel (0) target = $region73
  $region72: #{_lambda_.8} parent=0 // pred_region
    _
  $region73: #{_lambda_.8} parent=0 // pred_fallthru
    _
  %v60 = vld [vmem:[%s0] sm:$0xf]
  %v61 = vld [vmem:[%s0 + $0x4] sm:$0xf]
  %v62 = vld [vmem:[%s0 + $0x8] sm:$0xf]
  %v63 = vld [vmem:[%s0 + $0xc] sm:$0xf]
  %v64 = vld [vmem:[%s6] sm:$0xf]
  %v65 = vld [vmem:[%s6 + $0x4] sm:$0x1]
  %v66 = vld [vmem:[%s7] sm:$0x3]
  %v67 = vld [vmem:[%s1] sm:$0xf]
  %v68 = vld [vmem:[%s1 + $0x4] sm:$0xf]
  %v71 = vunpack.c.l.b16 %v67
  %v72 = vunpack.c.l.b16 %v68
  %v73 = vpack.c.b16 %v72, %v71
  %v78 = vunpack.c.l.b16 %v60
  %v79 = vunpack.c.l.b16 %v61
  %v80 = vunpack.c.l.b16 %v62
  %v81 = vunpack.c.l.b16 %v63
  %v82 = vpack.c.b16 %v79, %v78
  %v83 = vpack.c.b16 %v81, %v80
  %vm86 = vcmask 261120
  %v88 = vsel %vm86, %v73, 0
  %90 = vmatprep.subr.bf16.mxu0 0
  %91 = vmatpush1.bf16.msra.mxu0 %v82
  %92 = vmatprep.subr.bf16.mxu0 0
  %93 = vmatpush1.bf16.msra.mxu0 %v83
  %94 = vmatprep.subr.bf16.mxu0 0
  %95 = vmatpush1.bf16.msra.mxu0 0
  %96 = vmatprep.subr.bf16.mxu0 0
  %97 = vmatpush1.bf16.msra.mxu0 0
  %98 = vmatprep.subr.bf16.mxu0 0
  %99 = vmatpush1.bf16.msra.mxu0 0
  %100 = vmatprep.subr.bf16.mxu0 0
  %101 = vmatpush1.bf16.msra.mxu0 0
  %102 = vmatprep.subr.bf16.mxu0 0
  %103 = vmatpush1.bf16.msra.mxu0 0
  %104 = vmatprep.subr.bf16.mxu0 0
  %105 = vmatpush1.bf16.msra.mxu0 0
  %106 = vmatprep.subr.bf16.mxu0 0
  %107 = vmatpush1.bf16.msra.mxu0 0
  %108 = vmatprep.subr.bf16.mxu0 0
  %109 = vmatpush1.bf16.msra.mxu0 0
  %110 = vmatprep.subr.bf16.mxu0 0
  %111 = vmatpush1.bf16.msra.mxu0 0
  %112 = vmatprep.subr.bf16.mxu0 0
  %113 = vmatpush1.bf16.msra.mxu0 0
  %114 = vmatprep.subr.bf16.mxu0 0
  %115 = vmatpush1.bf16.msra.mxu0 0
  %116 = vmatprep.subr.bf16.mxu0 0
  %117 = vmatpush1.bf16.msra.mxu0 0
  %118 = vmatprep.subr.bf16.mxu0 0
  %119 = vmatpush1.bf16.msra.mxu0 0
  %120 = vmatprep.subr.bf16.mxu0 0
  %121 = vmatpush1.bf16.msra.mxu0 0
  %122 = vmatprep.mubr.bf16.mxu0 0
  %123 = vmatmul.mubr.bf16.gmra.mrb[0].mxu0 %v88
  %v124 = vpop.f32.mrb[0].mxu0
  %v125 = vadd.f32 0.0, %v124
  %v126 = vpop.f32.mrb[0].mxu0
  %v127 = vpop.f32.mrb[0].mxu0
  %v128 = vadd.f32 0.0, %v127
  %v129 = vpop.f32.mrb[0].mxu0
  %130 = vdwg.mxu0
  %v131 = vld [vmem:[%s8] sm:$0xff]
  %v132 = vld [vmem:[%s8 + $0x8] sm:$0xff]
  %134 = vset.pattern.permute.xlu0 0
  %135 = vperm.xlu0 %134, %v131
  %v136 = vpop.permute.xlu0 %135
  %139 = vset.pattern.permute.xlu0 0
  %140 = vperm.xlu0 %139, %v132
  %v141 = vpop.permute.xlu0 %140
  %v143 = vmul.f32 %v125, %v136
  %v144 = vmul.f32 %v128, %v141
  %v145 = vld [vmem:[%s9] sm:$0xff]
  %v146 = vld [vmem:[%s9 + $0x8] sm:$0xff]
  %148 = vset.pattern.permute.xlu0 0
  %149 = vperm.xlu0 %148, %v145
  %v150 = vpop.permute.xlu0 %149
  %153 = vset.pattern.permute.xlu0 0
  %154 = vperm.xlu0 %153, %v146
  %v155 = vpop.permute.xlu0 %154
  %v157 = vadd.f32 %v143, %v150
  %v158 = vadd.f32 %v144, %v155
  %v159 = vmax.f32 %v157, 0.0
  %v160 = vmax.f32 %v158, 0.0
  %v161 = vpack.c.bf16 %v160, %v159
  %v163 = vpack.i.b16 %v64, %v64
  %v165 = vlaneseq
  %v166 = vshrl.u32 %v165, 7
  %v167 = vsub.s32 0, %v166
  %v168 = vrot.slane %v163, %v167
  %v169 = vmul.bf16 %v161, %v168
  %171 = vrot.lane.b32.xlu0 %v161, 127
  %v172 = vpop.permute.xlu0 %171
  %173 = vrot.lane.b32.xlu0 %v161, 1
  %v174 = vpop.permute.xlu0 %173
  %vm175 = vcmask 7168
  %v178 = vsel %vm175, %v172, %v174
  %v180 = vshrl.u32 %v64, 16
  %v181 = vpack.i.b16 %v180, %v180
  %v183 = vlaneseq
  %v184 = vshrl.u32 %v183, 7
  %v185 = vsub.s32 0, %v184
  %v186 = vrot.slane %v181, %v185
  %v187 = vmul.bf16 %v178, %v186
  %v188 = vlaneseq
  %v189 = vshrl.u32 %v188, 7
  %v190 = vsub.s32 1, %v189
  %v191 = vrot.slane %v163, %v190
  %v192 = vmul.bf16 %v161, %v191
  %v193 = vlaneseq
  %v194 = vshrl.u32 %v193, 7
  %v195 = vsub.s32 1, %v194
  %v196 = vrot.slane %v181, %v195
  %v197 = vmul.bf16 %v178, %v196
  %v198 = vlaneseq
  %v199 = vshrl.u32 %v198, 7
  %v200 = vsub.s32 2, %v199
  %v201 = vrot.slane %v163, %v200
  %v202 = vmul.bf16 %v161, %v201
  %v203 = vlaneseq
  %v204 = vshrl.u32 %v203, 7
  %v205 = vsub.s32 2, %v204
  %v206 = vrot.slane %v181, %v205
  %v207 = vmul.bf16 %v178, %v206
  %v208 = vlaneseq
  %v209 = vshrl.u32 %v208, 7
  %v210 = vsub.s32 3, %v209
  %v211 = vrot.slane %v163, %v210
  %v212 = vmul.bf16 %v161, %v211
  %v213 = vlaneseq
  %v214 = vshrl.u32 %v213, 7
  %v215 = vsub.s32 3, %v214
  %v216 = vrot.slane %v181, %v215
  %v217 = vmul.bf16 %v178, %v216
  %v219 = vpack.i.b16 %v65, %v65
  %v221 = vlaneseq
  %v222 = vshrl.u32 %v221, 7
  %v223 = vsub.s32 0, %v222
  %v224 = vrot.slane %v219, %v223
  %v225 = vmul.bf16 %v161, %v224
  %v226 = vld [vmem:[%s2] sm:$0xff]
  %v227 = vld [vmem:[%s2 + $0x8] sm:$0xff]
  %v230 = vunpack.c.l.b16 %v226
  %v231 = vunpack.c.h.b16 %v226
  %v232 = vunpack.c.l.b16 %v227
  %v233 = vunpack.c.h.b16 %v227
  %v234 = vpack.c.b16 %v232, %v230
  %v235 = vpack.c.b16 %v233, %v231
  %vm237 = vcmask 130048
  %v239 = vsel %vm237, %v235, 0
  %241 = vmatprep.subr.bf16.mxu0 0
  %242 = vmatpush1.bf16.msra.mxu0 %v169
  %243 = vmatprep.subr.bf16.mxu0 0
  %244 = vmatpush1.bf16.msra.mxu0 %v187
  %245 = vmatprep.subr.bf16.mxu0 0
  %246 = vmatpush1.bf16.msra.mxu0 %v192
  %247 = vmatprep.subr.bf16.mxu0 0
  %248 = vmatpush1.bf16.msra.mxu0 %v197
  %249 = vmatprep.subr.bf16.mxu0 0
  %250 = vmatpush1.bf16.msra.mxu0 %v202
  %251 = vmatprep.subr.bf16.mxu0 0
  %252 = vmatpush1.bf16.msra.mxu0 %v207
  %253 = vmatprep.subr.bf16.mxu0 0
  %254 = vmatpush1.bf16.msra.mxu0 %v212
  %255 = vmatprep.subr.bf16.mxu0 0
  %256 = vmatpush1.bf16.msra.mxu0 %v217
  %257 = vmatprep.subr.bf16.mxu0 0
  %258 = vmatpush1.bf16.msra.mxu0 %v225
  %259 = vmatprep.subr.bf16.mxu0 0
  %260 = vmatpush1.bf16.msra.mxu0 0
  %261 = vmatprep.subr.bf16.mxu0 0
  %262 = vmatpush1.bf16.msra.mxu0 0
  %263 = vmatprep.subr.bf16.mxu0 0
  %264 = vmatpush1.bf16.msra.mxu0 0
  %265 = vmatprep.subr.bf16.mxu0 0
  %266 = vmatpush1.bf16.msra.mxu0 0
  %267 = vmatprep.subr.bf16.mxu0 0
  %268 = vmatpush1.bf16.msra.mxu0 0
  %269 = vmatprep.subr.bf16.mxu0 0
  %270 = vmatpush1.bf16.msra.mxu0 0
  %271 = vmatprep.subr.bf16.mxu0 0
  %272 = vmatpush1.bf16.msra.mxu0 0
  %273 = vmatprep.mubr.bf16.mxu0 %v239
  %274 = vmatmul.mubr.bf16.gmra.mrb[0].mxu0 %v234
  %v275 = vpop.f32.mrb[0].mxu0
  %v276 = vadd.f32 0.0, %v275
  %v277 = vpop.f32.mrb[0].mxu0
  %v278 = vpop.f32.mrb[0].mxu0
  %v279 = vadd.f32 0.0, %v278
  %v280 = vpop.f32.mrb[0].mxu0
  %281 = vdwg.mxu0
  %v282 = vld [vmem:[%s10] sm:$0xff]
  %v283 = vld [vmem:[%s10 + $0x8] sm:$0xff]
  %285 = vset.pattern.permute.xlu0 0
  %286 = vperm.xlu0 %285, %v282
  %v287 = vpop.permute.xlu0 %286
  %290 = vset.pattern.permute.xlu0 0
  %291 = vperm.xlu0 %290, %v283
  %v292 = vpop.permute.xlu0 %291
  %v294 = vmul.f32 %v276, %v287
  %v295 = vmul.f32 %v279, %v292
  %v296 = vld [vmem:[%s11] sm:$0xff]
  %v297 = vld [vmem:[%s11 + $0x8] sm:$0xff]
  %299 = vset.pattern.permute.xlu0 0
  %300 = vperm.xlu0 %299, %v296
  %v301 = vpop.permute.xlu0 %300
  %304 = vset.pattern.permute.xlu0 0
  %305 = vperm.xlu0 %304, %v297
  %v306 = vpop.permute.xlu0 %305
  %v308 = vadd.f32 %v294, %v301
  %v309 = vadd.f32 %v295, %v306
  %v310 = vmax.f32 %v308, 0.0
  %v311 = vmax.f32 %v309, 0.0
  %v312 = vpack.c.bf16 %v311, %v310
  %314 = vrot.lane.b32.xlu0 %v312, 127
  %v315 = vpop.permute.xlu0 %314
  %316 = vrot.lane.b32.xlu0 %v312, 1
  %v317 = vpop.permute.xlu0 %316
  %v320 = vsel %vm175, %v315, %v317
  %v323 = vpack.i.b16 %v66, %v66
  %v325 = vlaneseq
  %v326 = vshrl.u32 %v325, 7
  %v327 = vsub.s32 0, %v326
  %v328 = vrot.slane %v323, %v327
  %v329 = vmul.bf16 %v320, %v328
  %v330 = vshrl.u32 %v66, 16
  %v331 = vpack.i.b16 %v330, %v330
  %v333 = vlaneseq
  %v334 = vshrl.u32 %v333, 7
  %v335 = vsub.s32 0, %v334
  %v336 = vrot.slane %v331, %v335
  %v337 = vmul.bf16 %v312, %v336
  %v338 = vlaneseq
  %v339 = vshrl.u32 %v338, 7
  %v340 = vsub.s32 1, %v339
  %v341 = vrot.slane %v323, %v340
  %v342 = vmul.bf16 %v320, %v341
  %v343 = vld [vmem:[%s3] sm:$0xf]
  %v344 = vld [vmem:[%s3 + $0x4] sm:$0xf]
  %v347 = vunpack.c.l.b16 %v343
  %v348 = vunpack.c.l.b16 %v344
  %v349 = vpack.c.b16 %v348, %v347
  %vm350 = vcmask 392192
  %v352 = vsel %vm350, %v349, 0
  %354 = vmatprep.subr.bf16.mxu0 0
  %355 = vmatpush1.bf16.msra.mxu0 %v329
  %356 = vmatprep.subr.bf16.mxu0 0
  %357 = vmatpush1.bf16.msra.mxu0 %v337
  %358 = vmatprep.subr.bf16.mxu0 0
  %359 = vmatpush1.bf16.msra.mxu0 %v342
  %360 = vmatprep.subr.bf16.mxu0 0
  %361 = vmatpush1.bf16.msra.mxu0 0
  %362 = vmatprep.subr.bf16.mxu0 0
  %363 = vmatpush1.bf16.msra.mxu0 0
  %364 = vmatprep.subr.bf16.mxu0 0
  %365 = vmatpush1.bf16.msra.mxu0 0
  %366 = vmatprep.subr.bf16.mxu0 0
  %367 = vmatpush1.bf16.msra.mxu0 0
  %368 = vmatprep.subr.bf16.mxu0 0
  %369 = vmatpush1.bf16.msra.mxu0 0
  %370 = vmatprep.subr.bf16.mxu0 0
  %371 = vmatpush1.bf16.msra.mxu0 0
  %372 = vmatprep.subr.bf16.mxu0 0
  %373 = vmatpush1.bf16.msra.mxu0 0
  %374 = vmatprep.subr.bf16.mxu0 0
  %375 = vmatpush1.bf16.msra.mxu0 0
  %376 = vmatprep.subr.bf16.mxu0 0
  %377 = vmatpush1.bf16.msra.mxu0 0
  %378 = vmatprep.subr.bf16.mxu0 0
  %379 = vmatpush1.bf16.msra.mxu0 0
  %380 = vmatprep.subr.bf16.mxu0 0
  %381 = vmatpush1.bf16.msra.mxu0 0
  %382 = vmatprep.subr.bf16.mxu0 0
  %383 = vmatpush1.bf16.msra.mxu0 0
  %384 = vmatprep.subr.bf16.mxu0 0
  %385 = vmatpush1.bf16.msra.mxu0 0
  %386 = vmatprep.mubr.bf16.mxu0 0
  %387 = vmatmul.mubr.bf16.gmra.mrb[0].mxu0 %v352
  %v388 = vpop.f32.mrb[0].mxu0
  %v389 = vadd.f32 0.0, %v388
  %v390 = vpop.f32.mrb[0].mxu0
  %v391 = vpop.f32.mrb[0].mxu0
  %v392 = vadd.f32 0.0, %v391
  %v393 = vpop.f32.mrb[0].mxu0
  %394 = vdwg.mxu0
  %v395 = vld [vmem:[%s12] sm:$0xff]
  %v396 = vld [vmem:[%s12 + $0x8] sm:$0xff]
  %398 = vset.pattern.permute.xlu0 0
  %399 = vperm.xlu0 %398, %v395
  %v400 = vpop.permute.xlu0 %399
  %403 = vset.pattern.permute.xlu0 0
  %404 = vperm.xlu0 %403, %v396
  %v405 = vpop.permute.xlu0 %404
  %v407 = vmul.f32 %v389, %v400
  %v408 = vmul.f32 %v392, %v405
  %v409 = vld [vmem:[%s13] sm:$0xff]
  %v410 = vld [vmem:[%s13 + $0x8] sm:$0xff]
  %412 = vset.pattern.permute.xlu0 0
  %413 = vperm.xlu0 %412, %v409
  %v414 = vpop.permute.xlu0 %413
  %417 = vset.pattern.permute.xlu0 0
  %418 = vperm.xlu0 %417, %v410
  %v419 = vpop.permute.xlu0 %418
  %v421 = vadd.f32 %v407, %v414
  %v422 = vadd.f32 %v408, %v419
  %v423 = vmax.f32 %v421, 0.0
  %v424 = vmax.f32 %v422, 0.0
  %v425 = vld [vmem:[%s4] sm:$0xf]
  %v426 = vld [vmem:[%s4 + $0x4] sm:$0xf]
  %v427 = vld [vmem:[%s4 + $0x8] sm:$0xf]
  %v428 = vld [vmem:[%s4 + $0xc] sm:$0xf]
  %v429 = vld [vmem:[%s4 + $0x10] sm:$0xf]
  %v430 = vld [vmem:[%s4 + $0x14] sm:$0xf]
  %v431 = vld [vmem:[%s4 + $0x18] sm:$0xf]
  %v432 = vld [vmem:[%s4 + $0x1c] sm:$0xf]
  %v433 = vpack.c.bf16 %v424, %v423
  %v442 = vunpack.c.l.b16 %v425
  %v443 = vunpack.c.l.b16 %v426
  %v444 = vunpack.c.l.b16 %v427
  %v445 = vunpack.c.l.b16 %v428
  %v446 = vunpack.c.l.b16 %v429
  %v447 = vunpack.c.l.b16 %v430
  %v448 = vunpack.c.l.b16 %v431
  %v449 = vunpack.c.l.b16 %v432
  %v450 = vpack.c.b16 %v443, %v442
  %v451 = vpack.c.b16 %v445, %v444
  %v452 = vpack.c.b16 %v447, %v446
  %v453 = vpack.c.b16 %v449, %v448
  %v455 = vsel %vm237, %v450, 0
  %v458 = vsel %vm237, %v451, 0
  %v461 = vsel %vm237, %v452, 0
  %v464 = vsel %vm237, %v453, 0
  %466 = vmatprep.subr.bf16.mxu0 0
  %467 = vmatpush1.bf16.msra.mxu0 %v433
  %468 = vmatprep.subr.bf16.mxu0 0
  %469 = vmatpush1.bf16.msra.mxu0 0
  %470 = vmatprep.subr.bf16.mxu0 0
  %471 = vmatpush1.bf16.msra.mxu0 0
  %472 = vmatprep.subr.bf16.mxu0 0
  %473 = vmatpush1.bf16.msra.mxu0 0
  %474 = vmatprep.subr.bf16.mxu0 0
  %475 = vmatpush1.bf16.msra.mxu0 0
  %476 = vmatprep.subr.bf16.mxu0 0
  %477 = vmatpush1.bf16.msra.mxu0 0
  %478 = vmatprep.subr.bf16.mxu0 0
  %479 = vmatpush1.bf16.msra.mxu0 0
  %480 = vmatprep.subr.bf16.mxu0 0
  %481 = vmatpush1.bf16.msra.mxu0 0
  %482 = vmatprep.subr.bf16.mxu0 0
  %483 = vmatpush1.bf16.msra.mxu0 0
  %484 = vmatprep.subr.bf16.mxu0 0
  %485 = vmatpush1.bf16.msra.mxu0 0
  %486 = vmatprep.subr.bf16.mxu0 0
  %487 = vmatpush1.bf16.msra.mxu0 0
  %488 = vmatprep.subr.bf16.mxu0 0
  %489 = vmatpush1.bf16.msra.mxu0 0
  %490 = vmatprep.subr.bf16.mxu0 0
  %491 = vmatpush1.bf16.msra.mxu0 0
  %492 = vmatprep.subr.bf16.mxu0 0
  %493 = vmatpush1.bf16.msra.mxu0 0
  %494 = vmatprep.subr.bf16.mxu0 0
  %495 = vmatpush1.bf16.msra.mxu0 0
  %496 = vmatprep.subr.bf16.mxu0 0
  %497 = vmatpush1.bf16.msra.mxu0 0
  %498 = vmatprep.mubr.bf16.mxu0 0
  %499 = vmatmul.mubr.bf16.gmra.mrb[0].mxu0 %v455
  %v500 = vpop.f32.mrb[0].mxu0
  %v501 = vadd.f32 0.0, %v500
  %v502 = vpop.f32.mrb[0].mxu0
  %v503 = vpop.f32.mrb[0].mxu0
  %v504 = vadd.f32 0.0, %v503
  %v505 = vpop.f32.mrb[0].mxu0
  %506 = vmatprep.mubr.bf16.mxu0 0
  %507 = vmatmul.mubr.bf16.gmra.mrb[0].mxu0 %v458
  %v508 = vpop.f32.mrb[0].mxu0
  %v509 = vadd.f32 0.0, %v508
  %v510 = vpop.f32.mrb[0].mxu0
  %v511 = vpop.f32.mrb[0].mxu0
  %v512 = vadd.f32 0.0, %v511
  %v513 = vpop.f32.mrb[0].mxu0
  %514 = vmatprep.mubr.bf16.mxu0 0
  %515 = vmatmul.mubr.bf16.gmra.mrb[0].mxu0 %v461
  %v516 = vpop.f32.mrb[0].mxu0
  %v517 = vadd.f32 0.0, %v516
  %v518 = vpop.f32.mrb[0].mxu0
  %v519 = vpop.f32.mrb[0].mxu0
  %v520 = vadd.f32 0.0, %v519
  %v521 = vpop.f32.mrb[0].mxu0
  %522 = vmatprep.mubr.bf16.mxu0 0
  %523 = vmatmul.mubr.bf16.gmra.mrb[0].mxu0 %v464
  %v524 = vpop.f32.mrb[0].mxu0
  %v525 = vadd.f32 0.0, %v524
  %v526 = vpop.f32.mrb[0].mxu0
  %v527 = vpop.f32.mrb[0].mxu0
  %v528 = vadd.f32 0.0, %v527
  %v529 = vpop.f32.mrb[0].mxu0
  %530 = vdwg.mxu0
  %v531 = vld [vmem:[%s14] sm:$0xff]
  %v532 = vld [vmem:[%s14 + $0x8] sm:$0xff]
  %v533 = vld [vmem:[%s14 + $0x10] sm:$0xff]
  %v534 = vld [vmem:[%s14 + $0x18] sm:$0xff]
  %v535 = vld [vmem:[%s14 + $0x20] sm:$0xff]
  %v536 = vld [vmem:[%s14 + $0x28] sm:$0xff]
  %v537 = vld [vmem:[%s14 + $0x30] sm:$0xff]
  %v538 = vld [vmem:[%s14 + $0x38] sm:$0xff]
  %540 = vset.pattern.permute.xlu0 0
  %541 = vperm.xlu0 %540, %v531
  %v542 = vpop.permute.xlu0 %541
  %545 = vset.pattern.permute.xlu0 0
  %546 = vperm.xlu0 %545, %v532
  %v547 = vpop.permute.xlu0 %546
  %550 = vset.pattern.permute.xlu0 0
  %551 = vperm.xlu0 %550, %v533
  %v552 = vpop.permute.xlu0 %551
  %555 = vset.pattern.permute.xlu0 0
  %556 = vperm.xlu0 %555, %v534
  %v557 = vpop.permute.xlu0 %556
  %560 = vset.pattern.permute.xlu0 0
  %561 = vperm.xlu0 %560, %v535
  %v562 = vpop.permute.xlu0 %561
  %565 = vset.pattern.permute.xlu0 0
  %566 = vperm.xlu0 %565, %v536
  %v567 = vpop.permute.xlu0 %566
  %570 = vset.pattern.permute.xlu0 0
  %571 = vperm.xlu0 %570, %v537
  %v572 = vpop.permute.xlu0 %571
  %575 = vset.pattern.permute.xlu0 0
  %576 = vperm.xlu0 %575, %v538
  %v577 = vpop.permute.xlu0 %576
  %v579 = vmul.f32 %v501, %v542
  %v580 = vmul.f32 %v504, %v547
  %v581 = vmul.f32 %v509, %v552
  %v582 = vmul.f32 %v512, %v557
  %v583 = vmul.f32 %v517, %v562
  %v584 = vmul.f32 %v520, %v567
  %v585 = vmul.f32 %v525, %v572
  %v586 = vmul.f32 %v528, %v577
  %v587 = vld [vmem:[%s15] sm:$0xff]
  %v588 = vld [vmem:[%s15 + $0x8] sm:$0xff]
  %v589 = vld [vmem:[%s15 + $0x10] sm:$0xff]
  %v590 = vld [vmem:[%s15 + $0x18] sm:$0xff]
  %v591 = vld [vmem:[%s15 + $0x20] sm:$0xff]
  %v592 = vld [vmem:[%s15 + $0x28] sm:$0xff]
  %v593 = vld [vmem:[%s15 + $0x30] sm:$0xff]
  %v594 = vld [vmem:[%s15 + $0x38] sm:$0xff]
  %596 = vset.pattern.permute.xlu0 0
  %597 = vperm.xlu0 %596, %v587
  %v598 = vpop.permute.xlu0 %597
  %601 = vset.pattern.permute.xlu0 0
  %602 = vperm.xlu0 %601, %v588
  %v603 = vpop.permute.xlu0 %602
  %606 = vset.pattern.permute.xlu0 0
  %607 = vperm.xlu0 %606, %v589
  %v608 = vpop.permute.xlu0 %607
  %611 = vset.pattern.permute.xlu0 0
  %612 = vperm.xlu0 %611, %v590
  %v613 = vpop.permute.xlu0 %612
  %616 = vset.pattern.permute.xlu0 0
  %617 = vperm.xlu0 %616, %v591
  %v618 = vpop.permute.xlu0 %617
  %621 = vset.pattern.permute.xlu0 0
  %622 = vperm.xlu0 %621, %v592
  %v623 = vpop.permute.xlu0 %622
  %626 = vset.pattern.permute.xlu0 0
  %627 = vperm.xlu0 %626, %v593
  %v628 = vpop.permute.xlu0 %627
  %631 = vset.pattern.permute.xlu0 0
  %632 = vperm.xlu0 %631, %v594
  %v633 = vpop.permute.xlu0 %632
  %v635 = vadd.f32 %v579, %v598
  %v636 = vadd.f32 %v580, %v603
  %v637 = vadd.f32 %v581, %v608
  %v638 = vadd.f32 %v582, %v613
  %v639 = vadd.f32 %v583, %v618
  %v640 = vadd.f32 %v584, %v623
  %v641 = vadd.f32 %v585, %v628
  %v642 = vadd.f32 %v586, %v633
  %v643 = vld [vmem:[%s5] sm:$0xf]
  %v644 = vld [vmem:[%s5 + $0x4] sm:$0xf]
  %v645 = vld [vmem:[%s5 + $0x8] sm:$0xf]
  %v646 = vld [vmem:[%s5 + $0xc] sm:$0xf]
  %v647 = vld [vmem:[%s5 + $0x10] sm:$0xf]
  %v648 = vld [vmem:[%s5 + $0x14] sm:$0xf]
  %v649 = vld [vmem:[%s5 + $0x18] sm:$0xf]
  %v650 = vld [vmem:[%s5 + $0x1c] sm:$0xf]
  %v659 = vunpack.c.l.b16 %v643
  %v660 = vunpack.c.l.b16 %v644
  %v661 = vunpack.c.l.b16 %v645
  %v662 = vunpack.c.l.b16 %v646
  %v663 = vunpack.c.l.b16 %v647
  %v664 = vunpack.c.l.b16 %v648
  %v665 = vunpack.c.l.b16 %v649
  %v666 = vunpack.c.l.b16 %v650
  %v667 = vpack.c.b16 %v660, %v659
  %v668 = vpack.c.b16 %v662, %v661
  %v669 = vpack.c.b16 %v664, %v663
  %v670 = vpack.c.b16 %v666, %v665
  %v672 = vsel %vm86, %v667, 0
  %v675 = vsel %vm86, %v668, 0
  %v678 = vsel %vm86, %v669, 0
  %v681 = vsel %vm86, %v670, 0
  %683 = vmatprep.subr.bf16.mxu0 0
  %684 = vmatpush1.bf16.msra.mxu0 %v82
  %685 = vmatprep.subr.bf16.mxu0 0
  %686 = vmatpush1.bf16.msra.mxu0 %v83
  %687 = vmatprep.subr.bf16.mxu0 0
  %688 = vmatpush1.bf16.msra.mxu0 0
  %689 = vmatprep.subr.bf16.mxu0 0
  %690 = vmatpush1.bf16.msra.mxu0 0
  %691 = vmatprep.subr.bf16.mxu0 0
  %692 = vmatpush1.bf16.msra.mxu0 0
  %693 = vmatprep.subr.bf16.mxu0 0
  %694 = vmatpush1.bf16.msra.mxu0 0
  %695 = vmatprep.subr.bf16.mxu0 0
  %696 = vmatpush1.bf16.msra.mxu0 0
  %697 = vmatprep.subr.bf16.mxu0 0
  %698 = vmatpush1.bf16.msra.mxu0 0
  %699 = vmatprep.subr.bf16.mxu0 0
  %700 = vmatpush1.bf16.msra.mxu0 0
  %701 = vmatprep.subr.bf16.mxu0 0
  %702 = vmatpush1.bf16.msra.mxu0 0
  %703 = vmatprep.subr.bf16.mxu0 0
  %704 = vmatpush1.bf16.msra.mxu0 0
  %705 = vmatprep.subr.bf16.mxu0 0
  %706 = vmatpush1.bf16.msra.mxu0 0
  %707 = vmatprep.subr.bf16.mxu0 0
  %708 = vmatpush1.bf16.msra.mxu0 0
  %709 = vmatprep.subr.bf16.mxu0 0
  %710 = vmatpush1.bf16.msra.mxu0 0
  %711 = vmatprep.subr.bf16.mxu0 0
  %712 = vmatpush1.bf16.msra.mxu0 0
  %713 = vmatprep.subr.bf16.mxu0 0
  %714 = vmatpush1.bf16.msra.mxu0 0
  %715 = vmatprep.mubr.bf16.mxu0 0
  %716 = vmatmul.mubr.bf16.gmra.mrb[0].mxu0 %v672
  %v717 = vpop.f32.mrb[0].mxu0
  %v718 = vadd.f32 0.0, %v717
  %v719 = vpop.f32.mrb[0].mxu0
  %v720 = vpop.f32.mrb[0].mxu0
  %v721 = vadd.f32 0.0, %v720
  %v722 = vpop.f32.mrb[0].mxu0
  %723 = vmatprep.mubr.bf16.mxu0 0
  %724 = vmatmul.mubr.bf16.gmra.mrb[0].mxu0 %v675
  %v725 = vpop.f32.mrb[0].mxu0
  %v726 = vadd.f32 0.0, %v725
  %v727 = vpop.f32.mrb[0].mxu0
  %v728 = vpop.f32.mrb[0].mxu0
  %v729 = vadd.f32 0.0, %v728
  %v730 = vpop.f32.mrb[0].mxu0
  %731 = vmatprep.mubr.bf16.mxu0 0
  %732 = vmatmul.mubr.bf16.gmra.mrb[0].mxu0 %v678
  %v733 = vpop.f32.mrb[0].mxu0
  %v734 = vadd.f32 0.0, %v733
  %v735 = vpop.f32.mrb[0].mxu0
  %v736 = vpop.f32.mrb[0].mxu0
  %v737 = vadd.f32 0.0, %v736
  %v738 = vpop.f32.mrb[0].mxu0
  %739 = vmatprep.mubr.bf16.mxu0 0
  %740 = vmatmul.mubr.bf16.gmra.mrb[0].mxu0 %v681
  %v741 = vpop.f32.mrb[0].mxu0
  %v742 = vadd.f32 0.0, %v741
  %v743 = vpop.f32.mrb[0].mxu0
  %v744 = vpop.f32.mrb[0].mxu0
  %v745 = vadd.f32 0.0, %v744
  %v746 = vpop.f32.mrb[0].mxu0
  %747 = vdwg.mxu0
  %v748 = vld [vmem:[%s16] sm:$0xff]
  %v749 = vld [vmem:[%s16 + $0x8] sm:$0xff]
  %v750 = vld [vmem:[%s16 + $0x10] sm:$0xff]
  %v751 = vld [vmem:[%s16 + $0x18] sm:$0xff]
  %v752 = vld [vmem:[%s16 + $0x20] sm:$0xff]
  %v753 = vld [vmem:[%s16 + $0x28] sm:$0xff]
  %v754 = vld [vmem:[%s16 + $0x30] sm:$0xff]
  %v755 = vld [vmem:[%s16 + $0x38] sm:$0xff]
  %757 = vset.pattern.permute.xlu0 0
  %758 = vperm.xlu0 %757, %v748
  %v759 = vpop.permute.xlu0 %758
  %762 = vset.pattern.permute.xlu0 0
  %763 = vperm.xlu0 %762, %v749
  %v764 = vpop.permute.xlu0 %763
  %767 = vset.pattern.permute.xlu0 0
  %768 = vperm.xlu0 %767, %v750
  %v769 = vpop.permute.xlu0 %768
  %772 = vset.pattern.permute.xlu0 0
  %773 = vperm.xlu0 %772, %v751
  %v774 = vpop.permute.xlu0 %773
  %777 = vset.pattern.permute.xlu0 0
  %778 = vperm.xlu0 %777, %v752
  %v779 = vpop.permute.xlu0 %778
  %782 = vset.pattern.permute.xlu0 0
  %783 = vperm.xlu0 %782, %v753
  %v784 = vpop.permute.xlu0 %783
  %787 = vset.pattern.permute.xlu0 0
  %788 = vperm.xlu0 %787, %v754
  %v789 = vpop.permute.xlu0 %788
  %792 = vset.pattern.permute.xlu0 0
  %793 = vperm.xlu0 %792, %v755
  %v794 = vpop.permute.xlu0 %793
  %v796 = vmul.f32 %v718, %v759
  %v797 = vmul.f32 %v721, %v764
  %v798 = vmul.f32 %v726, %v769
  %v799 = vmul.f32 %v729, %v774
  %v800 = vmul.f32 %v734, %v779
  %v801 = vmul.f32 %v737, %v784
  %v802 = vmul.f32 %v742, %v789
  %v803 = vmul.f32 %v745, %v794
  %v804 = vld [vmem:[%s17] sm:$0xff]
  %v805 = vld [vmem:[%s17 + $0x8] sm:$0xff]
  %v806 = vld [vmem:[%s17 + $0x10] sm:$0xff]
  %v807 = vld [vmem:[%s17 + $0x18] sm:$0xff]
  %v808 = vld [vmem:[%s17 + $0x20] sm:$0xff]
  %v809 = vld [vmem:[%s17 + $0x28] sm:$0xff]
  %v810 = vld [vmem:[%s17 + $0x30] sm:$0xff]
  %v811 = vld [vmem:[%s17 + $0x38] sm:$0xff]
  %813 = vset.pattern.permute.xlu0 0
  %814 = vperm.xlu0 %813, %v804
  %v815 = vpop.permute.xlu0 %814
  %818 = vset.pattern.permute.xlu0 0
  %819 = vperm.xlu0 %818, %v805
  %v820 = vpop.permute.xlu0 %819
  %823 = vset.pattern.permute.xlu0 0
  %824 = vperm.xlu0 %823, %v806
  %v825 = vpop.permute.xlu0 %824
  %828 = vset.pattern.permute.xlu0 0
  %829 = vperm.xlu0 %828, %v807
  %v830 = vpop.permute.xlu0 %829
  %833 = vset.pattern.permute.xlu0 0
  %834 = vperm.xlu0 %833, %v808
  %v835 = vpop.permute.xlu0 %834
  %838 = vset.pattern.permute.xlu0 0
  %839 = vperm.xlu0 %838, %v809
  %v840 = vpop.permute.xlu0 %839
  %843 = vset.pattern.permute.xlu0 0
  %844 = vperm.xlu0 %843, %v810
  %v845 = vpop.permute.xlu0 %844
  %848 = vset.pattern.permute.xlu0 0
  %849 = vperm.xlu0 %848, %v811
  %v850 = vpop.permute.xlu0 %849
  %v852 = vadd.f32 %v796, %v815
  %v853 = vadd.f32 %v797, %v820
  %v854 = vadd.f32 %v798, %v825
  %v855 = vadd.f32 %v799, %v830
  %v856 = vadd.f32 %v800, %v835
  %v857 = vadd.f32 %v801, %v840
  %v858 = vadd.f32 %v802, %v845
  %v859 = vadd.f32 %v803, %v850
  %v860 = vadd.f32 %v635, %v852
  %v861 = vadd.f32 %v636, %v853
  %v862 = vadd.f32 %v637, %v854
  %v863 = vadd.f32 %v638, %v855
  %v864 = vadd.f32 %v639, %v856
  %v865 = vadd.f32 %v640, %v857
  %v866 = vadd.f32 %v641, %v858
  %v867 = vadd.f32 %v642, %v859
  %v868 = vmax.f32 %v860, 0.0
  %v869 = vmax.f32 %v861, 0.0
  %v870 = vmax.f32 %v862, 0.0
  %v871 = vmax.f32 %v863, 0.0
  %v872 = vmax.f32 %v864, 0.0
  %v873 = vmax.f32 %v865, 0.0
  %v874 = vmax.f32 %v866, 0.0
  %v875 = vmax.f32 %v867, 0.0
  %v876 = vpack.c.bf16 %v869, %v868
  %v877 = vpack.c.bf16 %v871, %v870
  %v878 = vpack.c.bf16 %v873, %v872
  %v879 = vpack.c.bf16 %v875, %v874
  %v884 = vunpack.c.l.b16 %v876
  %v885 = vunpack.c.h.b16 %v876
  %v886 = vunpack.c.l.b16 %v877
  %v887 = vunpack.c.h.b16 %v877
  %v888 = vunpack.c.l.b16 %v878
  %v889 = vunpack.c.h.b16 %v878
  %v890 = vunpack.c.l.b16 %v879
  %v891 = vunpack.c.h.b16 %v879
  %v892 = vpack.c.b16 %v884, %v884
  %v893 = vpack.c.b16 %v885, %v885
  %v894 = vpack.c.b16 %v886, %v886
  %v895 = vpack.c.b16 %v887, %v887
  %v896 = vpack.c.b16 %v888, %v888
  %v897 = vpack.c.b16 %v889, %v889
  %v898 = vpack.c.b16 %v890, %v890
  %v899 = vpack.c.b16 %v891, %v891
  %vm908 = vcmask 11264
  %909 = vst.msk [vmem:[%s18] sm:$0xf] %vm908, %v892
  %910 = vst.msk [vmem:[%s18 + $0x4] sm:$0xf] %vm908, %v893
  %911 = vst.msk [vmem:[%s18 + $0x8] sm:$0xf] %vm908, %v894
  %912 = vst.msk [vmem:[%s18 + $0xc] sm:$0xf] %vm908, %v895
  %913 = vst.msk [vmem:[%s18 + $0x10] sm:$0xf] %vm908, %v896
  %914 = vst.msk [vmem:[%s18 + $0x14] sm:$0xf] %vm908, %v897
  %915 = vst.msk [vmem:[%s18 + $0x18] sm:$0xf] %vm908, %v898
  %916 = vst.msk [vmem:[%s18 + $0x1c] sm:$0xf] %vm908, %v899
  // Predicated region
  $region74: #{_lambda_.8} parent=0 // pred_check
    _
  $region75: #{_lambda_.8} parent=0 // pred_check_branch
    %918 = sbr.rel (0) target = $region77
  $region76: #{_lambda_.8} parent=0 // pred_region
    _
  $region77: #{_lambda_.8} parent=0 // pred_fallthru
    _
  // Predicated region
  $region78: #{_lambda_.8} parent=0 // pred_check
    _
  $region79: #{_lambda_.8} parent=0 // pred_check_branch
    %920 = sbr.rel (0) target = $region81
  $region80: #{_lambda_.8} parent=0 // pred_region
    _
  $region81: #{_lambda_.8} parent=0 // pred_fallthru
    _

// kernel: _lambda_.9
$region0: #{_lambda_.9}
  #allocation0 [shape = 'u32[]', space=smem, size = 0x4, offset = 0x4, fixed_abs, tag = 'smem constant byte address 0x4 - core index']
  #allocation1 [shape = 'u32[144,128]{1,0:T(1,128)}', space=vmem, size = 0x12000, scoped, tag = 'internal scratch']
  %s0 = inlined_call_operand.vmem [shape: bf16[64,2], index: 0, kind: input, shape index: {}]
  %s1 = inlined_call_operand.vmem [shape: bf16[16,64], index: 1, kind: input, shape index: {}]
  %s2 = inlined_call_operand.vmem [shape: bf16[16,144], index: 2, kind: input, shape index: {}]
  %s3 = inlined_call_operand.vmem [shape: bf16[16,48], index: 3, kind: input, shape index: {}]
  %s4 = inlined_call_operand.vmem [shape: bf16[64,16], index: 4, kind: input, shape index: {}]
  %s5 = inlined_call_operand.vmem [shape: bf16[9,2], index: 5, kind: input, shape index: {}]
  %s6 = inlined_call_operand.vmem [shape: bf16[3,2], index: 6, kind: input, shape index: {}]
  %s7 = inlined_call_operand.vmem [shape: f32[16,1], index: 7, kind: input, shape index: {}, may-alias: {7,9,11}]
  %s8 = inlined_call_operand.vmem [shape: f32[16,1], index: 8, kind: input, shape index: {}, may-alias: {8,10,12}]
  %s9 = inlined_call_operand.vmem [shape: f32[16,1], index: 9, kind: input, shape index: {}, may-alias: {7,9,11}]
  %s10 = inlined_call_operand.vmem [shape: f32[16,1], index: 10, kind: input, shape index: {}, may-alias: {8,10,12}]
  %s11 = inlined_call_operand.vmem [shape: f32[16,1], index: 11, kind: input, shape index: {}, may-alias: {7,9,11}]
  %s12 = inlined_call_operand.vmem [shape: f32[16,1], index: 12, kind: input, shape index: {}, may-alias: {8,10,12}]
  %s13 = inlined_call_operand.vmem [shape: f32[64,1], index: 13, kind: input, shape index: {}]
  %s14 = inlined_call_operand.vmem [shape: f32[64,1], index: 14, kind: input, shape index: {}]
  %s15 = inlined_call_operand.vmem [shape: bf16[64,2], index: 15, kind: output, shape index: {}]
  %s16 = sld [smem:[#allocation0]]
  $region70: #{_lambda_.9} parent=0
    _
  %s18 = ssub.s32 1, %s16
  %s19 = scalar_select 0, %s18, %s16
  // Predicated region
  $region2: #{_lambda_.9} parent=0 // pred_check
    _
  $region3: #{_lambda_.9} parent=0 // pred_check_branch
    %21 = sbr.rel (0) target = $region5
  $region4: #{_lambda_.9} parent=0 // pred_region
    _
  $region5: #{_lambda_.9} parent=0 // pred_fallthru
    _
  // Predicated region
  $region6: #{_lambda_.9} parent=0 // pred_check
    _
  $region7: #{_lambda_.9} parent=0 // pred_check_branch
    %23 = sbr.rel (0) target = $region9
  $region8: #{_lambda_.9} parent=0 // pred_region
    _
  $region9: #{_lambda_.9} parent=0 // pred_fallthru
    _
  // Predicated region
  $region10: #{_lambda_.9} parent=0 // pred_check
    _
  $region11: #{_lambda_.9} parent=0 // pred_check_branch
    %25 = sbr.rel (0) target = $region13
  $region12: #{_lambda_.9} parent=0 // pred_region
    _
  $region13: #{_lambda_.9} parent=0 // pred_fallthru
    _
  // Predicated region
  $region14: #{_lambda_.9} parent=0 // pred_check
    _
  $region15: #{_lambda_.9} parent=0 // pred_check_branch
    %27 = sbr.rel (0) target = $region17
  $region16: #{_lambda_.9} parent=0 // pred_region
    _
  $region17: #{_lambda_.9} parent=0 // pred_fallthru
    _
  // Predicated region
  $region18: #{_lambda_.9} parent=0 // pred_check
    _
  $region19: #{_lambda_.9} parent=0 // pred_check_branch
    %29 = sbr.rel (0) target = $region21
  $region20: #{_lambda_.9} parent=0 // pred_region
    _
  $region21: #{_lambda_.9} parent=0 // pred_fallthru
    _
  // Predicated region
  $region22: #{_lambda_.9} parent=0 // pred_check
    _
  $region23: #{_lambda_.9} parent=0 // pred_check_branch
    %31 = sbr.rel (0) target = $region25
  $region24: #{_lambda_.9} parent=0 // pred_region
    _
  $region25: #{_lambda_.9} parent=0 // pred_fallthru
    _
  // Predicated region
  $region26: #{_lambda_.9} parent=0 // pred_check
    _
  $region27: #{_lambda_.9} parent=0 // pred_check_branch
    %33 = sbr.rel (0) target = $region29
  $region28: #{_lambda_.9} parent=0 // pred_region
    _
  $region29: #{_lambda_.9} parent=0 // pred_fallthru
    _
  // Predicated region
  $region30: #{_lambda_.9} parent=0 // pred_check
    _
  $region31: #{_lambda_.9} parent=0 // pred_check_branch
    %35 = sbr.rel (0) target = $region33
  $region32: #{_lambda_.9} parent=0 // pred_region
    _
  $region33: #{_lambda_.9} parent=0 // pred_fallthru
    _
  // Predicated region
  $region34: #{_lambda_.9} parent=0 // pred_check
    _
  $region35: #{_lambda_.9} parent=0 // pred_check_branch
    %37 = sbr.rel (0) target = $region37
  $region36: #{_lambda_.9} parent=0 // pred_region
    _
  $region37: #{_lambda_.9} parent=0 // pred_fallthru
    _
  // Predicated region
  $region38: #{_lambda_.9} parent=0 // pred_check
    _
  $region39: #{_lambda_.9} parent=0 // pred_check_branch
    %39 = sbr.rel (0) target = $region41
  $region40: #{_lambda_.9} parent=0 // pred_region
    _
  $region41: #{_lambda_.9} parent=0 // pred_fallthru
    _
  // Predicated region
  $region42: #{_lambda_.9} parent=0 // pred_check
    _
  $region43: #{_lambda_.9} parent=0 // pred_check_branch
    %41 = sbr.rel (0) target = $region45
  $region44: #{_lambda_.9} parent=0 // pred_region
    _
  $region45: #{_lambda_.9} parent=0 // pred_fallthru
    _
  // Predicated region
  $region46: #{_lambda_.9} parent=0 // pred_check
    _
  $region47: #{_lambda_.9} parent=0 // pred_check_branch
    %43 = sbr.rel (0) target = $region49
  $region48: #{_lambda_.9} parent=0 // pred_region
    _
  $region49: #{_lambda_.9} parent=0 // pred_fallthru
    _
  // Predicated region
  $region50: #{_lambda_.9} parent=0 // pred_check
    _
  $region51: #{_lambda_.9} parent=0 // pred_check_branch
    %45 = sbr.rel (0) target = $region53
  $region52: #{_lambda_.9} parent=0 // pred_region
    _
  $region53: #{_lambda_.9} parent=0 // pred_fallthru
    _
  // Predicated region
  $region54: #{_lambda_.9} parent=0 // pred_check
    _
  $region55: #{_lambda_.9} parent=0 // pred_check_branch
    %47 = sbr.rel (0) target = $region57
  $region56: #{_lambda_.9} parent=0 // pred_region
    _
  $region57: #{_lambda_.9} parent=0 // pred_fallthru
    _
  // Predicated region
  $region58: #{_lambda_.9} parent=0 // pred_check
    _
  $region59: #{_lambda_.9} parent=0 // pred_check_branch
    %49 = sbr.rel (0) target = $region61
  $region60: #{_lambda_.9} parent=0 // pred_region
    _
  $region61: #{_lambda_.9} parent=0 // pred_fallthru
    _
  %v51 = vld [vmem:[%s0] sm:$0xf]
  %v52 = vld [vmem:[%s0 + $0x4] sm:$0xf]
  %v53 = vld [vmem:[%s0 + $0x8] sm:$0xf]
  %v54 = vld [vmem:[%s0 + $0xc] sm:$0xf]
  %v55 = vld [vmem:[%s0 + $0x10] sm:$0xf]
  %v56 = vld [vmem:[%s0 + $0x14] sm:$0xf]
  %v57 = vld [vmem:[%s0 + $0x18] sm:$0xf]
  %v58 = vld [vmem:[%s0 + $0x1c] sm:$0xf]
  %v59 = vld [vmem:[%s5] sm:$0xf]
  %v60 = vld [vmem:[%s5 + $0x4] sm:$0x1]
  %v61 = vld [vmem:[%s6] sm:$0x3]
  %v62 = vld [vmem:[%s1] sm:$0xf]
  %v63 = vld [vmem:[%s1 + $0x4] sm:$0xf]
  %v66 = vunpack.c.l.b16 %v62
  %v67 = vunpack.c.l.b16 %v63
  %v68 = vpack.c.b16 %v67, %v66
  %v77 = vunpack.c.l.b16 %v51
  %v78 = vunpack.c.l.b16 %v52
  %v79 = vunpack.c.l.b16 %v53
  %v80 = vunpack.c.l.b16 %v54
  %v81 = vunpack.c.l.b16 %v55
  %v82 = vunpack.c.l.b16 %v56
  %v83 = vunpack.c.l.b16 %v57
  %v84 = vunpack.c.l.b16 %v58
  %v85 = vpack.c.b16 %v78, %v77
  %v86 = vpack.c.b16 %v80, %v79
  %v87 = vpack.c.b16 %v82, %v81
  %v88 = vpack.c.b16 %v84, %v83
  %vm93 = vcmask 523264
  %v95 = vsel %vm93, %v68, 0
  %97 = vmatprep.subr.bf16.mxu0 0
  %98 = vmatpush1.bf16.msra.mxu0 %v85
  %99 = vmatprep.subr.bf16.mxu0 0
  %100 = vmatpush1.bf16.msra.mxu0 %v86
  %101 = vmatprep.subr.bf16.mxu0 0
  %102 = vmatpush1.bf16.msra.mxu0 %v87
  %103 = vmatprep.subr.bf16.mxu0 0
  %104 = vmatpush1.bf16.msra.mxu0 %v88
  %105 = vmatprep.subr.bf16.mxu0 0
  %106 = vmatpush1.bf16.msra.mxu0 0
  %107 = vmatprep.subr.bf16.mxu0 0
  %108 = vmatpush1.bf16.msra.mxu0 0
  %109 = vmatprep.subr.bf16.mxu0 0
  %110 = vmatpush1.bf16.msra.mxu0 0
  %111 = vmatprep.subr.bf16.mxu0 0
  %112 = vmatpush1.bf16.msra.mxu0 0
  %113 = vmatprep.subr.bf16.mxu0 0
  %114 = vmatpush1.bf16.msra.mxu0 0
  %115 = vmatprep.subr.bf16.mxu0 0
  %116 = vmatpush1.bf16.msra.mxu0 0
  %117 = vmatprep.subr.bf16.mxu0 0
  %118 = vmatpush1.bf16.msra.mxu0 0
  %119 = vmatprep.subr.bf16.mxu0 0
  %120 = vmatpush1.bf16.msra.mxu0 0
  %121 = vmatprep.subr.bf16.mxu0 0
  %122 = vmatpush1.bf16.msra.mxu0 0
  %123 = vmatprep.subr.bf16.mxu0 0
  %124 = vmatpush1.bf16.msra.mxu0 0
  %125 = vmatprep.subr.bf16.mxu0 0
  %126 = vmatpush1.bf16.msra.mxu0 0
  %127 = vmatprep.subr.bf16.mxu0 0
  %128 = vmatpush1.bf16.msra.mxu0 0
  %129 = vmatprep.mubr.bf16.mxu0 0
  %130 = vmatmul.mubr.bf16.gmra.mrb[0].mxu0 %v95
  %v131 = vpop.f32.mrb[0].mxu0
  %v132 = vadd.f32 0.0, %v131
  %v133 = vpop.f32.mrb[0].mxu0
  %v134 = vpop.f32.mrb[0].mxu0
  %v135 = vadd.f32 0.0, %v134
  %v136 = vpop.f32.mrb[0].mxu0
  %137 = vdwg.mxu0
  %v138 = vld [vmem:[%s7] sm:$0xff]
  %v139 = vld [vmem:[%s7 + $0x8] sm:$0xff]
  %141 = vset.pattern.permute.xlu0 0
  %142 = vperm.xlu0 %141, %v138
  %v143 = vpop.permute.xlu0 %142
  %146 = vset.pattern.permute.xlu0 0
  %147 = vperm.xlu0 %146, %v139
  %v148 = vpop.permute.xlu0 %147
  %v150 = vmul.f32 %v132, %v143
  %v151 = vmul.f32 %v135, %v148
  %v152 = vld [vmem:[%s8] sm:$0xff]
  %v153 = vld [vmem:[%s8 + $0x8] sm:$0xff]
  %155 = vset.pattern.permute.xlu0 0
  %156 = vperm.xlu0 %155, %v152
  %v157 = vpop.permute.xlu0 %156
  %160 = vset.pattern.permute.xlu0 0
  %161 = vperm.xlu0 %160, %v153
  %v162 = vpop.permute.xlu0 %161
  %v164 = vadd.f32 %v150, %v157
  %v165 = vadd.f32 %v151, %v162
  %v166 = vmax.f32 %v164, 0.0
  %v167 = vmax.f32 %v165, 0.0
  %v168 = vpack.c.bf16 %v167, %v166
  %v170 = vpack.i.b16 %v59, %v59
  %v172 = vlaneseq
  %v173 = vshrl.u32 %v172, 7
  %v174 = vsub.s32 0, %v173
  %v175 = vrot.slane %v170, %v174
  %v176 = vmul.bf16 %v168, %v175
  %178 = vrot.lane.b32.xlu0 %v168, 127
  %v179 = vpop.permute.xlu0 %178
  %180 = vrot.lane.b32.xlu0 %v168, 1
  %v181 = vpop.permute.xlu0 %180
  %vm182 = vcmask 7168
  %v185 = vsel %vm182, %v179, %v181
  %v187 = vshrl.u32 %v59, 16
  %v188 = vpack.i.b16 %v187, %v187
  %v190 = vlaneseq
  %v191 = vshrl.u32 %v190, 7
  %v192 = vsub.s32 0, %v191
  %v193 = vrot.slane %v188, %v192
  %v194 = vmul.bf16 %v185, %v193
  %v195 = vlaneseq
  %v196 = vshrl.u32 %v195, 7
  %v197 = vsub.s32 1, %v196
  %v198 = vrot.slane %v170, %v197
  %v199 = vmul.bf16 %v168, %v198
  %v200 = vlaneseq
  %v201 = vshrl.u32 %v200, 7
  %v202 = vsub.s32 1, %v201
  %v203 = vrot.slane %v188, %v202
  %v204 = vmul.bf16 %v185, %v203
  %v205 = vlaneseq
  %v206 = vshrl.u32 %v205, 7
  %v207 = vsub.s32 2, %v206
  %v208 = vrot.slane %v170, %v207
  %v209 = vmul.bf16 %v168, %v208
  %v210 = vlaneseq
  %v211 = vshrl.u32 %v210, 7
  %v212 = vsub.s32 2, %v211
  %v213 = vrot.slane %v188, %v212
  %v214 = vmul.bf16 %v185, %v213
  %v215 = vlaneseq
  %v216 = vshrl.u32 %v215, 7
  %v217 = vsub.s32 3, %v216
  %v218 = vrot.slane %v170, %v217
  %v219 = vmul.bf16 %v168, %v218
  %v220 = vlaneseq
  %v221 = vshrl.u32 %v220, 7
  %v222 = vsub.s32 3, %v221
  %v223 = vrot.slane %v188, %v222
  %v224 = vmul.bf16 %v185, %v223
  %v226 = vpack.i.b16 %v60, %v60
  %v228 = vlaneseq
  %v229 = vshrl.u32 %v228, 7
  %v230 = vsub.s32 0, %v229
  %v231 = vrot.slane %v226, %v230
  %v232 = vmul.bf16 %v168, %v231
  %v233 = vld [vmem:[%s2] sm:$0xff]
  %v234 = vld [vmem:[%s2 + $0x8] sm:$0xff]
  %v237 = vunpack.c.l.b16 %v233
  %v238 = vunpack.c.h.b16 %v233
  %v239 = vunpack.c.l.b16 %v234
  %v240 = vunpack.c.h.b16 %v234
  %v241 = vpack.c.b16 %v239, %v237
  %v242 = vpack.c.b16 %v240, %v238
  %vm244 = vcmask 130048
  %v246 = vsel %vm244, %v242, 0
  %248 = vmatprep.subr.bf16.mxu0 0
  %249 = vmatpush1.bf16.msra.mxu0 %v176
  %250 = vmatprep.subr.bf16.mxu0 0
  %251 = vmatpush1.bf16.msra.mxu0 %v194
  %252 = vmatprep.subr.bf16.mxu0 0
  %253 = vmatpush1.bf16.msra.mxu0 %v199
  %254 = vmatprep.subr.bf16.mxu0 0
  %255 = vmatpush1.bf16.msra.mxu0 %v204
  %256 = vmatprep.subr.bf16.mxu0 0
  %257 = vmatpush1.bf16.msra.mxu0 %v209
  %258 = vmatprep.subr.bf16.mxu0 0
  %259 = vmatpush1.bf16.msra.mxu0 %v214
  %260 = vmatprep.subr.bf16.mxu0 0
  %261 = vmatpush1.bf16.msra.mxu0 %v219
  %262 = vmatprep.subr.bf16.mxu0 0
  %263 = vmatpush1.bf16.msra.mxu0 %v224
  %264 = vmatprep.subr.bf16.mxu0 0
  %265 = vmatpush1.bf16.msra.mxu0 %v232
  %266 = vmatprep.subr.bf16.mxu0 0
  %267 = vmatpush1.bf16.msra.mxu0 0
  %268 = vmatprep.subr.bf16.mxu0 0
  %269 = vmatpush1.bf16.msra.mxu0 0
  %270 = vmatprep.subr.bf16.mxu0 0
  %271 = vmatpush1.bf16.msra.mxu0 0
  %272 = vmatprep.subr.bf16.mxu0 0
  %273 = vmatpush1.bf16.msra.mxu0 0
  %274 = vmatprep.subr.bf16.mxu0 0
  %275 = vmatpush1.bf16.msra.mxu0 0
  %276 = vmatprep.subr.bf16.mxu0 0
  %277 = vmatpush1.bf16.msra.mxu0 0
  %278 = vmatprep.subr.bf16.mxu0 0
  %279 = vmatpush1.bf16.msra.mxu0 0
  %280 = vmatprep.mubr.bf16.mxu0 %v246
  %281 = vmatmul.mubr.bf16.gmra.mrb[0].mxu0 %v241
  %v282 = vpop.f32.mrb[0].mxu0
  %v283 = vadd.f32 0.0, %v282
  %v284 = vpop.f32.mrb[0].mxu0
  %v285 = vpop.f32.mrb[0].mxu0
  %v286 = vadd.f32 0.0, %v285
  %v287 = vpop.f32.mrb[0].mxu0
  %288 = vdwg.mxu0
  %v289 = vld [vmem:[%s9] sm:$0xff]
  %v290 = vld [vmem:[%s9 + $0x8] sm:$0xff]
  %292 = vset.pattern.permute.xlu0 0
  %293 = vperm.xlu0 %292, %v289
  %v294 = vpop.permute.xlu0 %293
  %297 = vset.pattern.permute.xlu0 0
  %298 = vperm.xlu0 %297, %v290
  %v299 = vpop.permute.xlu0 %298
  %v301 = vmul.f32 %v283, %v294
  %v302 = vmul.f32 %v286, %v299
  %v303 = vld [vmem:[%s10] sm:$0xff]
  %v304 = vld [vmem:[%s10 + $0x8] sm:$0xff]
  %306 = vset.pattern.permute.xlu0 0
  %307 = vperm.xlu0 %306, %v303
  %v308 = vpop.permute.xlu0 %307
  %311 = vset.pattern.permute.xlu0 0
  %312 = vperm.xlu0 %311, %v304
  %v313 = vpop.permute.xlu0 %312
  %v315 = vadd.f32 %v301, %v308
  %v316 = vadd.f32 %v302, %v313
  %v317 = vmax.f32 %v315, 0.0
  %v318 = vmax.f32 %v316, 0.0
  %v320 = vpack.i.b16 %v61, %v61
  %v322 = vlaneseq
  %v323 = vshrl.u32 %v322, 7
  %v324 = vsub.s32 0, %v323
  %v325 = vrot.slane %v320, %v324
  %v326 = vmul.bf16 %v185, %v325
  %v327 = vshrl.u32 %v61, 16
  %v328 = vpack.i.b16 %v327, %v327
  %v330 = vlaneseq
  %v331 = vshrl.u32 %v330, 7
  %v332 = vsub.s32 0, %v331
  %v333 = vrot.slane %v328, %v332
  %v334 = vmul.bf16 %v168, %v333
  %v335 = vlaneseq
  %v336 = vshrl.u32 %v335, 7
  %v337 = vsub.s32 1, %v336
  %v338 = vrot.slane %v320, %v337
  %v339 = vmul.bf16 %v185, %v338
  %v340 = vld [vmem:[%s3] sm:$0xf]
  %v341 = vld [vmem:[%s3 + $0x4] sm:$0xf]
  %v344 = vunpack.c.l.b16 %v340
  %v345 = vunpack.c.l.b16 %v341
  %v346 = vpack.c.b16 %v345, %v344
  %vm347 = vcmask 392192
  %v349 = vsel %vm347, %v346, 0
  %351 = vmatprep.subr.bf16.mxu0 0
  %352 = vmatpush1.bf16.msra.mxu0 %v326
  %353 = vmatprep.subr.bf16.mxu0 0
  %354 = vmatpush1.bf16.msra.mxu0 %v334
  %355 = vmatprep.subr.bf16.mxu0 0
  %356 = vmatpush1.bf16.msra.mxu0 %v339
  %357 = vmatprep.subr.bf16.mxu0 0
  %358 = vmatpush1.bf16.msra.mxu0 0
  %359 = vmatprep.subr.bf16.mxu0 0
  %360 = vmatpush1.bf16.msra.mxu0 0
  %361 = vmatprep.subr.bf16.mxu0 0
  %362 = vmatpush1.bf16.msra.mxu0 0
  %363 = vmatprep.subr.bf16.mxu0 0
  %364 = vmatpush1.bf16.msra.mxu0 0
  %365 = vmatprep.subr.bf16.mxu0 0
  %366 = vmatpush1.bf16.msra.mxu0 0
  %367 = vmatprep.subr.bf16.mxu0 0
  %368 = vmatpush1.bf16.msra.mxu0 0
  %369 = vmatprep.subr.bf16.mxu0 0
  %370 = vmatpush1.bf16.msra.mxu0 0
  %371 = vmatprep.subr.bf16.mxu0 0
  %372 = vmatpush1.bf16.msra.mxu0 0
  %373 = vmatprep.subr.bf16.mxu0 0
  %374 = vmatpush1.bf16.msra.mxu0 0
  %375 = vmatprep.subr.bf16.mxu0 0
  %376 = vmatpush1.bf16.msra.mxu0 0
  %377 = vmatprep.subr.bf16.mxu0 0
  %378 = vmatpush1.bf16.msra.mxu0 0
  %379 = vmatprep.subr.bf16.mxu0 0
  %380 = vmatpush1.bf16.msra.mxu0 0
  %381 = vmatprep.subr.bf16.mxu0 0
  %382 = vmatpush1.bf16.msra.mxu0 0
  %383 = vmatprep.mubr.bf16.mxu0 0
  %384 = vmatmul.mubr.bf16.gmra.mrb[0].mxu0 %v349
  %v385 = vpop.f32.mrb[0].mxu0
  %v386 = vadd.f32 0.0, %v385
  %v387 = vpop.f32.mrb[0].mxu0
  %v388 = vpop.f32.mrb[0].mxu0
  %v389 = vadd.f32 0.0, %v388
  %v390 = vpop.f32.mrb[0].mxu0
  %391 = vdwg.mxu0
  %v392 = vld [vmem:[%s11] sm:$0xff]
  %v393 = vld [vmem:[%s11 + $0x8] sm:$0xff]
  %395 = vset.pattern.permute.xlu0 0
  %396 = vperm.xlu0 %395, %v392
  %v397 = vpop.permute.xlu0 %396
  %400 = vset.pattern.permute.xlu0 0
  %401 = vperm.xlu0 %400, %v393
  %v402 = vpop.permute.xlu0 %401
  %v404 = vmul.f32 %v386, %v397
  %v405 = vmul.f32 %v389, %v402
  %v406 = vld [vmem:[%s12] sm:$0xff]
  %v407 = vld [vmem:[%s12 + $0x8] sm:$0xff]
  %409 = vset.pattern.permute.xlu0 0
  %410 = vperm.xlu0 %409, %v406
  %v411 = vpop.permute.xlu0 %410
  %414 = vset.pattern.permute.xlu0 0
  %415 = vperm.xlu0 %414, %v407
  %v416 = vpop.permute.xlu0 %415
  %v418 = vadd.f32 %v404, %v411
  %v419 = vadd.f32 %v405, %v416
  %v420 = vmax.f32 %v418, 0.0
  %v421 = vmax.f32 %v419, 0.0
  %v422 = vadd.f32 %v420, %v317
  %v423 = vadd.f32 %v421, %v318
  %v424 = vld [vmem:[%s4] sm:$0xf]
  %v425 = vld [vmem:[%s4 + $0x4] sm:$0xf]
  %v426 = vld [vmem:[%s4 + $0x8] sm:$0xf]
  %v427 = vld [vmem:[%s4 + $0xc] sm:$0xf]
  %v428 = vld [vmem:[%s4 + $0x10] sm:$0xf]
  %v429 = vld [vmem:[%s4 + $0x14] sm:$0xf]
  %v430 = vld [vmem:[%s4 + $0x18] sm:$0xf]
  %v431 = vld [vmem:[%s4 + $0x1c] sm:$0xf]
  %v432 = vpack.c.bf16 %v423, %v422
  %v441 = vunpack.c.l.b16 %v424
  %v442 = vunpack.c.l.b16 %v425
  %v443 = vunpack.c.l.b16 %v426
  %v444 = vunpack.c.l.b16 %v427
  %v445 = vunpack.c.l.b16 %v428
  %v446 = vunpack.c.l.b16 %v429
  %v447 = vunpack.c.l.b16 %v430
  %v448 = vunpack.c.l.b16 %v431
  %v449 = vpack.c.b16 %v442, %v441
  %v450 = vpack.c.b16 %v444, %v443
  %v451 = vpack.c.b16 %v446, %v445
  %v452 = vpack.c.b16 %v448, %v447
  %v454 = vsel %vm244, %v449, 0
  %v457 = vsel %vm244, %v450, 0
  %v460 = vsel %vm244, %v451, 0
  %v463 = vsel %vm244, %v452, 0
  %465 = vmatprep.subr.bf16.mxu0 0
  %466 = vmatpush1.bf16.msra.mxu0 %v432
  %467 = vmatprep.subr.bf16.mxu0 0
  %468 = vmatpush1.bf16.msra.mxu0 0
  %469 = vmatprep.subr.bf16.mxu0 0
  %470 = vmatpush1.bf16.msra.mxu0 0
  %471 = vmatprep.subr.bf16.mxu0 0
  %472 = vmatpush1.bf16.msra.mxu0 0
  %473 = vmatprep.subr.bf16.mxu0 0
  %474 = vmatpush1.bf16.msra.mxu0 0
  %475 = vmatprep.subr.bf16.mxu0 0
  %476 = vmatpush1.bf16.msra.mxu0 0
  %477 = vmatprep.subr.bf16.mxu0 0
  %478 = vmatpush1.bf16.msra.mxu0 0
  %479 = vmatprep.subr.bf16.mxu0 0
  %480 = vmatpush1.bf16.msra.mxu0 0
  %481 = vmatprep.subr.bf16.mxu0 0
  %482 = vmatpush1.bf16.msra.mxu0 0
  %483 = vmatprep.subr.bf16.mxu0 0
  %484 = vmatpush1.bf16.msra.mxu0 0
  %485 = vmatprep.subr.bf16.mxu0 0
  %486 = vmatpush1.bf16.msra.mxu0 0
  %487 = vmatprep.subr.bf16.mxu0 0
  %488 = vmatpush1.bf16.msra.mxu0 0
  %489 = vmatprep.subr.bf16.mxu0 0
  %490 = vmatpush1.bf16.msra.mxu0 0
  %491 = vmatprep.subr.bf16.mxu0 0
  %492 = vmatpush1.bf16.msra.mxu0 0
  %493 = vmatprep.subr.bf16.mxu0 0
  %494 = vmatpush1.bf16.msra.mxu0 0
  %495 = vmatprep.subr.bf16.mxu0 0
  %496 = vmatpush1.bf16.msra.mxu0 0
  %497 = vmatprep.mubr.bf16.mxu0 0
  %498 = vmatmul.mubr.bf16.gmra.mrb[0].mxu0 %v454
  %v499 = vpop.f32.mrb[0].mxu0
  %v500 = vadd.f32 0.0, %v499
  %v501 = vpop.f32.mrb[0].mxu0
  %v502 = vpop.f32.mrb[0].mxu0
  %v503 = vadd.f32 0.0, %v502
  %v504 = vpop.f32.mrb[0].mxu0
  %505 = vmatprep.mubr.bf16.mxu0 0
  %506 = vmatmul.mubr.bf16.gmra.mrb[0].mxu0 %v457
  %v507 = vpop.f32.mrb[0].mxu0
  %v508 = vadd.f32 0.0, %v507
  %v509 = vpop.f32.mrb[0].mxu0
  %v510 = vpop.f32.mrb[0].mxu0
  %v511 = vadd.f32 0.0, %v510
  %v512 = vpop.f32.mrb[0].mxu0
  %513 = vmatprep.mubr.bf16.mxu0 0
  %514 = vmatmul.mubr.bf16.gmra.mrb[0].mxu0 %v460
  %v515 = vpop.f32.mrb[0].mxu0
  %v516 = vadd.f32 0.0, %v515
  %v517 = vpop.f32.mrb[0].mxu0
  %v518 = vpop.f32.mrb[0].mxu0
  %v519 = vadd.f32 0.0, %v518
  %v520 = vpop.f32.mrb[0].mxu0
  %521 = vmatprep.mubr.bf16.mxu0 0
  %522 = vmatmul.mubr.bf16.gmra.mrb[0].mxu0 %v463
  %v523 = vpop.f32.mrb[0].mxu0
  %v524 = vadd.f32 0.0, %v523
  %v525 = vpop.f32.mrb[0].mxu0
  %v526 = vpop.f32.mrb[0].mxu0
  %v527 = vadd.f32 0.0, %v526
  %v528 = vpop.f32.mrb[0].mxu0
  %529 = vdwg.mxu0
  %v530 = vld [vmem:[%s13] sm:$0xff]
  %v531 = vld [vmem:[%s13 + $0x8] sm:$0xff]
  %v532 = vld [vmem:[%s13 + $0x10] sm:$0xff]
  %v533 = vld [vmem:[%s13 + $0x18] sm:$0xff]
  %v534 = vld [vmem:[%s13 + $0x20] sm:$0xff]
  %v535 = vld [vmem:[%s13 + $0x28] sm:$0xff]
  %v536 = vld [vmem:[%s13 + $0x30] sm:$0xff]
  %v537 = vld [vmem:[%s13 + $0x38] sm:$0xff]
  %539 = vset.pattern.permute.xlu0 0
  %540 = vperm.xlu0 %539, %v530
  %v541 = vpop.permute.xlu0 %540
  %544 = vset.pattern.permute.xlu0 0
  %545 = vperm.xlu0 %544, %v531
  %v546 = vpop.permute.xlu0 %545
  %549 = vset.pattern.permute.xlu0 0
  %550 = vperm.xlu0 %549, %v532
  %v551 = vpop.permute.xlu0 %550
  %554 = vset.pattern.permute.xlu0 0
  %555 = vperm.xlu0 %554, %v533
  %v556 = vpop.permute.xlu0 %555
  %559 = vset.pattern.permute.xlu0 0
  %560 = vperm.xlu0 %559, %v534
  %v561 = vpop.permute.xlu0 %560
  %564 = vset.pattern.permute.xlu0 0
  %565 = vperm.xlu0 %564, %v535
  %v566 = vpop.permute.xlu0 %565
  %569 = vset.pattern.permute.xlu0 0
  %570 = vperm.xlu0 %569, %v536
  %v571 = vpop.permute.xlu0 %570
  %574 = vset.pattern.permute.xlu0 0
  %575 = vperm.xlu0 %574, %v537
  %v576 = vpop.permute.xlu0 %575
  %v578 = vmul.f32 %v500, %v541
  %v579 = vmul.f32 %v503, %v546
  %v580 = vmul.f32 %v508, %v551
  %v581 = vmul.f32 %v511, %v556
  %v582 = vmul.f32 %v516, %v561
  %v583 = vmul.f32 %v519, %v566
  %v584 = vmul.f32 %v524, %v571
  %v585 = vmul.f32 %v527, %v576
  %v586 = vld [vmem:[%s14] sm:$0xff]
  %v587 = vld [vmem:[%s14 + $0x8] sm:$0xff]
  %v588 = vld [vmem:[%s14 + $0x10] sm:$0xff]
  %v589 = vld [vmem:[%s14 + $0x18] sm:$0xff]
  %v590 = vld [vmem:[%s14 + $0x20] sm:$0xff]
  %v591 = vld [vmem:[%s14 + $0x28] sm:$0xff]
  %v592 = vld [vmem:[%s14 + $0x30] sm:$0xff]
  %v593 = vld [vmem:[%s14 + $0x38] sm:$0xff]
  %595 = vset.pattern.permute.xlu0 0
  %596 = vperm.xlu0 %595, %v586
  %v597 = vpop.permute.xlu0 %596
  %600 = vset.pattern.permute.xlu0 0
  %601 = vperm.xlu0 %600, %v587
  %v602 = vpop.permute.xlu0 %601
  %605 = vset.pattern.permute.xlu0 0
  %606 = vperm.xlu0 %605, %v588
  %v607 = vpop.permute.xlu0 %606
  %610 = vset.pattern.permute.xlu0 0
  %611 = vperm.xlu0 %610, %v589
  %v612 = vpop.permute.xlu0 %611
  %615 = vset.pattern.permute.xlu0 0
  %616 = vperm.xlu0 %615, %v590
  %v617 = vpop.permute.xlu0 %616
  %620 = vset.pattern.permute.xlu0 0
  %621 = vperm.xlu0 %620, %v591
  %v622 = vpop.permute.xlu0 %621
  %625 = vset.pattern.permute.xlu0 0
  %626 = vperm.xlu0 %625, %v592
  %v627 = vpop.permute.xlu0 %626
  %630 = vset.pattern.permute.xlu0 0
  %631 = vperm.xlu0 %630, %v593
  %v632 = vpop.permute.xlu0 %631
  %v634 = vadd.f32 %v578, %v597
  %v635 = vadd.f32 %v579, %v602
  %v636 = vadd.f32 %v580, %v607
  %v637 = vadd.f32 %v581, %v612
  %v638 = vadd.f32 %v582, %v617
  %v639 = vadd.f32 %v583, %v622
  %v640 = vadd.f32 %v584, %v627
  %v641 = vadd.f32 %v585, %v632
  %v642 = vunpack.c.l.bf16 %v51
  %v643 = vunpack.c.l.bf16 %v52
  %v644 = vunpack.c.l.bf16 %v53
  %v645 = vunpack.c.l.bf16 %v54
  %v646 = vunpack.c.l.bf16 %v55
  %v647 = vunpack.c.l.bf16 %v56
  %v648 = vunpack.c.l.bf16 %v57
  %v649 = vunpack.c.l.bf16 %v58
  %v650 = vadd.f32 %v634, %v642
  %v651 = vadd.f32 %v635, %v643
  %v652 = vadd.f32 %v636, %v644
  %v653 = vadd.f32 %v637, %v645
  %v654 = vadd.f32 %v638, %v646
  %v655 = vadd.f32 %v639, %v647
  %v656 = vadd.f32 %v640, %v648
  %v657 = vadd.f32 %v641, %v649
  %v658 = vmax.f32 %v650, 0.0
  %v659 = vmax.f32 %v651, 0.0
  %v660 = vmax.f32 %v652, 0.0
  %v661 = vmax.f32 %v653, 0.0
  %v662 = vmax.f32 %v654, 0.0
  %v663 = vmax.f32 %v655, 0.0
  %v664 = vmax.f32 %v656, 0.0
  %v665 = vmax.f32 %v657, 0.0
  %v666 = vpack.c.bf16 %v659, %v658
  %v667 = vpack.c.bf16 %v661, %v660
  %v668 = vpack.c.bf16 %v663, %v662
  %v669 = vpack.c.bf16 %v665, %v664
  %v674 = vunpack.c.l.b16 %v666
  %v675 = vunpack.c.h.b16 %v666
  %v676 = vunpack.c.l.b16 %v667
  %v677 = vunpack.c.h.b16 %v667
  %v678 = vunpack.c.l.b16 %v668
  %v679 = vunpack.c.h.b16 %v668
  %v680 = vunpack.c.l.b16 %v669
  %v681 = vunpack.c.h.b16 %v669
  %v682 = vpack.c.b16 %v674, %v674
  %v683 = vpack.c.b16 %v675, %v675
  %v684 = vpack.c.b16 %v676, %v676
  %v685 = vpack.c.b16 %v677, %v677
  %v686 = vpack.c.b16 %v678, %v678
  %v687 = vpack.c.b16 %v679, %v679
  %v688 = vpack.c.b16 %v680, %v680
  %v689 = vpack.c.b16 %v681, %v681
  %vm698 = vcmask 11264
  %699 = vst.msk [vmem:[%s15] sm:$0xf] %vm698, %v682
  %700 = vst.msk [vmem:[%s15 + $0x4] sm:$0xf] %vm698, %v683
  %701 = vst.msk [vmem:[%s15 + $0x8] sm:$0xf] %vm698, %v684
  %702 = vst.msk [vmem:[%s15 + $0xc] sm:$0xf] %vm698, %v685
  %703 = vst.msk [vmem:[%s15 + $0x10] sm:$0xf] %vm698, %v686
  %704 = vst.msk [vmem:[%s15 + $0x14] sm:$0xf] %vm698, %v687
  %705 = vst.msk [vmem:[%s15 + $0x18] sm:$0xf] %vm698, %v688
  %706 = vst.msk [vmem:[%s15 + $0x1c] sm:$0xf] %vm698, %v689
  // Predicated region
  $region62: #{_lambda_.9} parent=0 // pred_check
    _
  $region63: #{_lambda_.9} parent=0 // pred_check_branch
    %708 = sbr.rel (0) target = $region65
  $region64: #{_lambda_.9} parent=0 // pred_region
    _
  $region65: #{_lambda_.9} parent=0 // pred_fallthru
    _
  // Predicated region
  $region66: #{_lambda_.9} parent=0 // pred_check
    _
  $region67: #{_lambda_.9} parent=0 // pred_check_branch
    %710 = sbr.rel (0) target = $region69
  $region68: #{_lambda_.9} parent=0 // pred_region
    _
  $region69: #{_lambda_.9} parent=0 // pred_fallthru
    _

</llo_original>
